<compile_context>
chip_gen: v6e
topology: v6e:2x2x1
jax: 0.10.0
libtpu: 0.0.40
codegen_flags: <defaults>
</compile_context>

<pallas_src>
import functools

import jax
import jax.numpy as jnp
from jax.experimental import pallas as pl
from jax.experimental.pallas import tpu as pltpu

C_IN = 384
C_OUT = 256
KSIZE = 3


def _conv3x3_relu_kernel(xp_ref, w_ref, b_ref, o_ref, *, H, W):
    """One batch element: 3x3 conv (input already spatially padded) + bias + ReLU.

    xp_ref: (1, H+2, W+2, Cin)   padded NHWC input tile
    w_ref : (9, Cin, Cout)       per-tap weight matrices (resident in VMEM)
    b_ref : (1, Cout)            bias
    o_ref : (1, H*W, Cout)       lane-dense output tile
    """
    cin = xp_ref.shape[-1]
    cout = o_ref.shape[-1]
    hw = H * W

    xp = xp_ref[0]                                   # [H+2, W+2, Cin]
    acc = jnp.zeros((hw, cout), jnp.float32)
    # 9 static taps -> 9 MXU matmuls accumulated in f32 (fully unrolled).
    for t in range(KSIZE * KSIZE):
        dy, dx = t // KSIZE, t % KSIZE
        patch = xp[dy:dy + H, dx:dx + W, :].reshape(hw, cin)
        acc = acc + jnp.dot(patch, w_ref[t], preferred_element_type=jnp.float32)

    out = acc + b_ref[...]                           # bias broadcast over rows
    o_ref[0] = jnp.maximum(out, 0.0).astype(o_ref.dtype)


def prepare_conv_params(weight_oihw, bias):
    """One-time parameter prep (NOT per forward call).

    PyTorch Conv2d weight [Cout, Cin, 3, 3] -> tap-major [9, Cin, Cout], and bias
    -> [1, Cout], so the kernel never re-transposes / re-pads the weight per call.
    """
    cout, cin, kh, kw = weight_oihw.shape
    w_taps = jnp.transpose(weight_oihw, (2, 3, 1, 0)).reshape(kh * kw, cin, cout)
    return w_taps, bias.reshape(1, cout)


def alexnet_features4_forward(x_nchw, w_taps, bias2d):
    """Conv2d(384->256, k=3, p=1) + ReLU.  x_nchw: [B, 384, H, W] -> [B, 256, H, W]."""
    B, cin, H, W = x_nchw.shape
    cout = w_taps.shape[-1]
    hw = H * W
    hp, wp = H + 2, W + 2

    # NCHW -> NHWC (channels on the lane axis) and same-padding by 1 pixel.
    x_nhwc = jnp.transpose(x_nchw, (0, 2, 3, 1))
    xp = jnp.pad(x_nhwc, ((0, 0), (1, 1), (1, 1), (0, 0)))

    kernel = functools.partial(_conv3x3_relu_kernel, H=H, W=W)
    bytes_accessed = 4 * (xp.size + w_taps.size + bias2d.size + B * hw * cout)

    out = pl.pallas_call(
        kernel,
        out_shape=jax.ShapeDtypeStruct((B, hw, cout), x_nchw.dtype),
        grid_spec=pltpu.PrefetchScalarGridSpec(
            num_scalar_prefetch=0,
            grid=(B,),  # one big step per batch element -> negligible grid overhead
            in_specs=[
                pl.BlockSpec((1, hp, wp, cin), lambda b: (b, 0, 0, 0)),
                # Same block index every step -> weight DMA'd once, stays resident.
                pl.BlockSpec((KSIZE * KSIZE, cin, cout), lambda b: (0, 0, 0)),
                pl.BlockSpec((1, cout), lambda b: (0, 0)),
            ],
            out_specs=pl.BlockSpec((1, hw, cout), lambda b: (b, 0, 0)),
        ),
        compiler_params=pltpu.CompilerParams(
            dimension_semantics=("parallel",),  # batch axis can shard across TCs (v7x)
        ),
        cost_estimate=pl.CostEstimate(
            flops=2 * B * hw * KSIZE * KSIZE * cin * cout,
            transcendentals=0,
            bytes_accessed=bytes_accessed,
        ),
    )(xp, w_taps, bias2d)

    # [B, H*W, Cout] -> [B, Cout, H, W] (back to PyTorch NCHW).
    return jnp.transpose(out.reshape(B, H, W, cout), (0, 3, 1, 2))


if __name__ == "__main__":
    key = jax.random.PRNGKey(0)
    k_x, k_w, k_b = jax.random.split(key, 3)

    # Small shapes consistent with the module: Cin is fixed at 384 by the spec.
    B, H, W = 2, 8, 8

    # TODO(synk): torch.load('./cifar_AlexNet_features4.pth') cannot be read here;
    # use deterministic PyTorch-default-style uniform init as a synthetic checkpoint.
    fan_in = C_IN * KSIZE * KSIZE
    bound = 1.0 / (fan_in ** 0.5)
    weight = jax.random.uniform(
        k_w, (C_OUT, C_IN, KSIZE, KSIZE), jnp.float32, -bound, bound
    )
    bias = jax.random.uniform(k_b, (C_OUT,), jnp.float32, -bound, bound)
    x = jax.random.normal(k_x, (B, C_IN, H, W), jnp.float32)

    # One-time parameter preparation (model-init time, not per forward).
    w_taps, bias2d = prepare_conv_params(weight, bias)

    out = alexnet_features4_forward(x, w_taps, bias2d)
    out = jax.block_until_ready(out)

    # Reference: XLA conv (high precision) + bias + ReLU.
    ref = jax.lax.conv_general_dilated(
        x, weight, window_strides=(1, 1), padding=((1, 1), (1, 1)),
        dimension_numbers=("NCHW", "OIHW", "NCHW"),
        precision=jax.lax.Precision.HIGHEST,
    )
    ref = jnp.maximum(ref + bias.reshape(1, C_OUT, 1, 1), 0.0)

    assert out.shape == (B, C_OUT, H, W)
    assert jnp.allclose(out, ref, atol=1e-3, rtol=1e-3), (
        float(jnp.max(jnp.abs(out - ref)))
    )

    print("KERNEL_OK")
</pallas_src>

<mosaic_0001>
module attributes {stable_mosaic.version = 11 : i64} {
  func.func @_conv3x3_relu_kernel(%arg0: i32, %arg1: memref<1x10x10x384xf32, #tpu.memory_space<vmem>>, %arg2: memref<9x384x256xf32, #tpu.memory_space<vmem>>, %arg3: memref<1x256xf32, #tpu.memory_space<vmem>>, %arg4: memref<1x64x256xf32, #tpu.memory_space<vmem>>) attributes {dimension_semantics = [#tpu.dimension_semantics<parallel>], iteration_bounds = array<i64: 2>, scalar_prefetch = 0 : i64, scratch_operands = 0 : i64, tpu.core_type = #tpu.core_type<tc>, window_params = [{transform_indices = @transform_0, window_bounds = array<i64: 1, 10, 10, 384>}, {pipeline_mode = #tpu.pipeline_mode<synchronous>, transform_indices = @transform_1, window_bounds = array<i64: 9, 384, 256>}, {pipeline_mode = #tpu.pipeline_mode<synchronous>, transform_indices = @transform_2, window_bounds = array<i64: 1, 256>}, {transform_indices = @transform_3, window_bounds = array<i64: 1, 64, 256>}]} {
    %c0 = arith.constant 0 : index
    %c0_0 = arith.constant 0 : index
    %c0_1 = arith.constant 0 : index
    %c0_2 = arith.constant 0 : index
    %0 = vector.load %arg1[%c0, %c0_0, %c0_1, %c0_2] : memref<1x10x10x384xf32, #tpu.memory_space<vmem>>, vector<1x10x10x384xf32>
    %1 = vector.shape_cast %0 : vector<1x10x10x384xf32> to vector<10x10x384xf32>
    %cst = arith.constant 0.000000e+00 : f32
    %2 = vector.broadcast %cst : f32 to vector<64x256xf32>
    %3 = vector.extract_strided_slice %1 {offsets = [0, 0, 0], sizes = [8, 8, 384], strides = [1, 1, 1]} : vector<10x10x384xf32> to vector<8x8x384xf32>
    %4 = vector.shape_cast %3 : vector<8x8x384xf32> to vector<64x384xf32>
    %c0_3 = arith.constant 0 : index
    %c0_4 = arith.constant 0 : index
    %c0_5 = arith.constant 0 : index
    %5 = vector.load %arg2[%c0_3, %c0_4, %c0_5] : memref<9x384x256xf32, #tpu.memory_space<vmem>>, vector<1x384x256xf32>
    %6 = vector.shape_cast %5 : vector<1x384x256xf32> to vector<384x256xf32>
    %cst_6 = arith.constant dense<0.000000e+00> : vector<64x256xf32>
    %7 = tpu.matmul %4, %6, %cst_6 {dimension_numbers = #tpu.dot_dimension_numbers<[1], [0], [0], [1], [0, 0, 1, 1], [], []>} : vector<64x384xf32>, vector<384x256xf32>, vector<64x256xf32> -> vector<64x256xf32>
    %8 = arith.addf %2, %7 : vector<64x256xf32>
    %9 = vector.extract_strided_slice %1 {offsets = [0, 1, 0], sizes = [8, 8, 384], strides = [1, 1, 1]} : vector<10x10x384xf32> to vector<8x8x384xf32>
    %10 = vector.shape_cast %9 : vector<8x8x384xf32> to vector<64x384xf32>
    %c1 = arith.constant 1 : index
    %c0_7 = arith.constant 0 : index
    %c0_8 = arith.constant 0 : index
    %11 = vector.load %arg2[%c1, %c0_7, %c0_8] : memref<9x384x256xf32, #tpu.memory_space<vmem>>, vector<1x384x256xf32>
    %12 = vector.shape_cast %11 : vector<1x384x256xf32> to vector<384x256xf32>
    %cst_9 = arith.constant dense<0.000000e+00> : vector<64x256xf32>
    %13 = tpu.matmul %10, %12, %cst_9 {dimension_numbers = #tpu.dot_dimension_numbers<[1], [0], [0], [1], [0, 0, 1, 1], [], []>} : vector<64x384xf32>, vector<384x256xf32>, vector<64x256xf32> -> vector<64x256xf32>
    %14 = arith.addf %8, %13 : vector<64x256xf32>
    %15 = vector.extract_strided_slice %1 {offsets = [0, 2, 0], sizes = [8, 8, 384], strides = [1, 1, 1]} : vector<10x10x384xf32> to vector<8x8x384xf32>
    %16 = vector.shape_cast %15 : vector<8x8x384xf32> to vector<64x384xf32>
    %c2 = arith.constant 2 : index
    %c0_10 = arith.constant 0 : index
    %c0_11 = arith.constant 0 : index
    %17 = vector.load %arg2[%c2, %c0_10, %c0_11] : memref<9x384x256xf32, #tpu.memory_space<vmem>>, vector<1x384x256xf32>
    %18 = vector.shape_cast %17 : vector<1x384x256xf32> to vector<384x256xf32>
    %cst_12 = arith.constant dense<0.000000e+00> : vector<64x256xf32>
    %19 = tpu.matmul %16, %18, %cst_12 {dimension_numbers = #tpu.dot_dimension_numbers<[1], [0], [0], [1], [0, 0, 1, 1], [], []>} : vector<64x384xf32>, vector<384x256xf32>, vector<64x256xf32> -> vector<64x256xf32>
    %20 = arith.addf %14, %19 : vector<64x256xf32>
    %21 = vector.extract_strided_slice %1 {offsets = [1, 0, 0], sizes = [8, 8, 384], strides = [1, 1, 1]} : vector<10x10x384xf32> to vector<8x8x384xf32>
    %22 = vector.shape_cast %21 : vector<8x8x384xf32> to vector<64x384xf32>
    %c3 = arith.constant 3 : index
    %c0_13 = arith.constant 0 : index
    %c0_14 = arith.constant 0 : index
    %23 = vector.load %arg2[%c3, %c0_13, %c0_14] : memref<9x384x256xf32, #tpu.memory_space<vmem>>, vector<1x384x256xf32>
    %24 = vector.shape_cast %23 : vector<1x384x256xf32> to vector<384x256xf32>
    %cst_15 = arith.constant dense<0.000000e+00> : vector<64x256xf32>
    %25 = tpu.matmul %22, %24, %cst_15 {dimension_numbers = #tpu.dot_dimension_numbers<[1], [0], [0], [1], [0, 0, 1, 1], [], []>} : vector<64x384xf32>, vector<384x256xf32>, vector<64x256xf32> -> vector<64x256xf32>
    %26 = arith.addf %20, %25 : vector<64x256xf32>
    %27 = vector.extract_strided_slice %1 {offsets = [1, 1, 0], sizes = [8, 8, 384], strides = [1, 1, 1]} : vector<10x10x384xf32> to vector<8x8x384xf32>
    %28 = vector.shape_cast %27 : vector<8x8x384xf32> to vector<64x384xf32>
    %c4 = arith.constant 4 : index
    %c0_16 = arith.constant 0 : index
    %c0_17 = arith.constant 0 : index
    %29 = vector.load %arg2[%c4, %c0_16, %c0_17] : memref<9x384x256xf32, #tpu.memory_space<vmem>>, vector<1x384x256xf32>
    %30 = vector.shape_cast %29 : vector<1x384x256xf32> to vector<384x256xf32>
    %cst_18 = arith.constant dense<0.000000e+00> : vector<64x256xf32>
    %31 = tpu.matmul %28, %30, %cst_18 {dimension_numbers = #tpu.dot_dimension_numbers<[1], [0], [0], [1], [0, 0, 1, 1], [], []>} : vector<64x384xf32>, vector<384x256xf32>, vector<64x256xf32> -> vector<64x256xf32>
    %32 = arith.addf %26, %31 : vector<64x256xf32>
    %33 = vector.extract_strided_slice %1 {offsets = [1, 2, 0], sizes = [8, 8, 384], strides = [1, 1, 1]} : vector<10x10x384xf32> to vector<8x8x384xf32>
    %34 = vector.shape_cast %33 : vector<8x8x384xf32> to vector<64x384xf32>
    %c5 = arith.constant 5 : index
    %c0_19 = arith.constant 0 : index
    %c0_20 = arith.constant 0 : index
    %35 = vector.load %arg2[%c5, %c0_19, %c0_20] : memref<9x384x256xf32, #tpu.memory_space<vmem>>, vector<1x384x256xf32>
    %36 = vector.shape_cast %35 : vector<1x384x256xf32> to vector<384x256xf32>
    %cst_21 = arith.constant dense<0.000000e+00> : vector<64x256xf32>
    %37 = tpu.matmul %34, %36, %cst_21 {dimension_numbers = #tpu.dot_dimension_numbers<[1], [0], [0], [1], [0, 0, 1, 1], [], []>} : vector<64x384xf32>, vector<384x256xf32>, vector<64x256xf32> -> vector<64x256xf32>
    %38 = arith.addf %32, %37 : vector<64x256xf32>
    %39 = vector.extract_strided_slice %1 {offsets = [2, 0, 0], sizes = [8, 8, 384], strides = [1, 1, 1]} : vector<10x10x384xf32> to vector<8x8x384xf32>
    %40 = vector.shape_cast %39 : vector<8x8x384xf32> to vector<64x384xf32>
    %c6 = arith.constant 6 : index
    %c0_22 = arith.constant 0 : index
    %c0_23 = arith.constant 0 : index
    %41 = vector.load %arg2[%c6, %c0_22, %c0_23] : memref<9x384x256xf32, #tpu.memory_space<vmem>>, vector<1x384x256xf32>
    %42 = vector.shape_cast %41 : vector<1x384x256xf32> to vector<384x256xf32>
    %cst_24 = arith.constant dense<0.000000e+00> : vector<64x256xf32>
    %43 = tpu.matmul %40, %42, %cst_24 {dimension_numbers = #tpu.dot_dimension_numbers<[1], [0], [0], [1], [0, 0, 1, 1], [], []>} : vector<64x384xf32>, vector<384x256xf32>, vector<64x256xf32> -> vector<64x256xf32>
    %44 = arith.addf %38, %43 : vector<64x256xf32>
    %45 = vector.extract_strided_slice %1 {offsets = [2, 1, 0], sizes = [8, 8, 384], strides = [1, 1, 1]} : vector<10x10x384xf32> to vector<8x8x384xf32>
    %46 = vector.shape_cast %45 : vector<8x8x384xf32> to vector<64x384xf32>
    %c7 = arith.constant 7 : index
    %c0_25 = arith.constant 0 : index
    %c0_26 = arith.constant 0 : index
    %47 = vector.load %arg2[%c7, %c0_25, %c0_26] : memref<9x384x256xf32, #tpu.memory_space<vmem>>, vector<1x384x256xf32>
    %48 = vector.shape_cast %47 : vector<1x384x256xf32> to vector<384x256xf32>
    %cst_27 = arith.constant dense<0.000000e+00> : vector<64x256xf32>
    %49 = tpu.matmul %46, %48, %cst_27 {dimension_numbers = #tpu.dot_dimension_numbers<[1], [0], [0], [1], [0, 0, 1, 1], [], []>} : vector<64x384xf32>, vector<384x256xf32>, vector<64x256xf32> -> vector<64x256xf32>
    %50 = arith.addf %44, %49 : vector<64x256xf32>
    %51 = vector.extract_strided_slice %1 {offsets = [2, 2, 0], sizes = [8, 8, 384], strides = [1, 1, 1]} : vector<10x10x384xf32> to vector<8x8x384xf32>
    %52 = vector.shape_cast %51 : vector<8x8x384xf32> to vector<64x384xf32>
    %c8 = arith.constant 8 : index
    %c0_28 = arith.constant 0 : index
    %c0_29 = arith.constant 0 : index
    %53 = vector.load %arg2[%c8, %c0_28, %c0_29] : memref<9x384x256xf32, #tpu.memory_space<vmem>>, vector<1x384x256xf32>
    %54 = vector.shape_cast %53 : vector<1x384x256xf32> to vector<384x256xf32>
    %cst_30 = arith.constant dense<0.000000e+00> : vector<64x256xf32>
    %55 = tpu.matmul %52, %54, %cst_30 {dimension_numbers = #tpu.dot_dimension_numbers<[1], [0], [0], [1], [0, 0, 1, 1], [], []>} : vector<64x384xf32>, vector<384x256xf32>, vector<64x256xf32> -> vector<64x256xf32>
    %56 = arith.addf %50, %55 : vector<64x256xf32>
    %c0_31 = arith.constant 0 : index
    %c0_32 = arith.constant 0 : index
    %57 = vector.load %arg3[%c0_31, %c0_32] : memref<1x256xf32, #tpu.memory_space<vmem>>, vector<1x256xf32>
    %58 = vector.broadcast %57 : vector<1x256xf32> to vector<64x256xf32>
    %59 = arith.addf %56, %58 : vector<64x256xf32>
    %cst_33 = arith.constant 0.000000e+00 : f32
    %60 = vector.broadcast %cst_33 : f32 to vector<64x256xf32>
    %61 = arith.maximumf %59, %60 : vector<64x256xf32>
    %c0_34 = arith.constant 0 : index
    %c0_35 = arith.constant 0 : index
    %c0_36 = arith.constant 0 : index
    %62 = vector.load %arg4[%c0_34, %c0_35, %c0_36] : memref<1x64x256xf32, #tpu.memory_space<vmem>>, vector<1x64x256xf32>
    %63 = vector.shape_cast %62 : vector<1x64x256xf32> to vector<64x256xf32>
    %64 = vector.shape_cast %61 : vector<64x256xf32> to vector<1x64x256xf32>
    tpu.vector_store %arg4[%c0_34, %c0_35, %c0_36], %64 {strides = array<i32>} : memref<1x64x256xf32, #tpu.memory_space<vmem>>, vector<1x64x256xf32>,
    return
  }
  func.func @transform_0(%arg0: i32) -> (i32, i32, i32, i32) {
    %c0_i32 = arith.constant 0 : i32
    %c0_i32_0 = arith.constant 0 : i32
    %c0_i32_1 = arith.constant 0 : i32
    %c0_i32_2 = arith.constant 0 : i32
    return %arg0, %c0_i32, %c0_i32_0, %c0_i32_1 : i32, i32, i32, i32
  }
  func.func @transform_1(%arg0: i32) -> (i32, i32, i32) {
    %c0_i32 = arith.constant 0 : i32
    %c0_i32_0 = arith.constant 0 : i32
    %c0_i32_1 = arith.constant 0 : i32
    %c0_i32_2 = arith.constant 0 : i32
    return %c0_i32, %c0_i32_0, %c0_i32_1 : i32, i32, i32
  }
  func.func @transform_2(%arg0: i32) -> (i32, i32) {
    %c0_i32 = arith.constant 0 : i32
    %c0_i32_0 = arith.constant 0 : i32
    %c0_i32_1 = arith.constant 0 : i32
    return %c0_i32, %c0_i32_0 : i32, i32
  }
  func.func @transform_3(%arg0: i32) -> (i32, i32, i32) {
    %c0_i32 = arith.constant 0 : i32
    %c0_i32_0 = arith.constant 0 : i32
    %c0_i32_1 = arith.constant 0 : i32
    return %arg0, %c0_i32, %c0_i32_0 : i32, i32, i32
  }
}

</mosaic_0001>

<llo_original>
// kernel: tpu_custom_call.1
$region0: #{tpu_custom_call.1}
  #allocation0 [shape = 'u32[]', space=smem, size = 0x4, offset = 0x4, fixed_abs, tag = 'smem constant byte address 0x4 - core index']
  #allocation1 [shape = 'u32[144,128]{1,0:T(1,128)}', space=vmem, size = 0x12000, scoped, tag = 'internal scratch']
  %s0 = inlined_call_operand.vmem [shape: f32[2,10,10,384], index: 0, kind: input, shape index: {}]
  %s1 = inlined_call_operand.hbm [shape: f32[9,384,256], index: 1, kind: input, shape index: {}]
  %s2 = inlined_call_operand.hbm [shape: f32[1,256], index: 2, kind: input, shape index: {}]
  %s3 = inlined_call_operand.hbm [shape: f32[2,64,256], index: 3, kind: output, shape index: {}]
  %s4 = sld [smem:[#allocation0]]
  $region53: #{tpu_custom_call.1} parent=0
    _
  %s6 = ssub.s32 1, %s4
  %s7 = scalar_select 0, %s6, %s4
  $region1: #{tpu_custom_call.1} parent=0
    #allocation2 [shape = 'u8[3538944]{0}', space=vmem, size = 0x360000, scoped, tag = 'input window, operand 1, single buffered']
    #allocation3 [shape = 's32[2]{0}', space=sflag, size = 0x8, scoped, tag = 'scoped memory for tpu_custom_call.1']
    #allocation4 [shape = 's32[2]{0}', space=sflag, size = 0x8, scoped, tag = 'scoped memory for tpu_custom_call.1']
    #allocation5 [shape = 'u8[1024]{0}', space=vmem, size = 0x400, scoped, tag = 'input window, operand 2, single buffered']
    #allocation6 [shape = 's32[1]{0}', space=sflag, size = 0x4, scoped, tag = 'scoped memory for tpu_custom_call.1']
    #allocation7 [shape = 'u8[131072]{0}', space=vmem, size = 0x20000, scoped, tag = 'output window, operand 0']
    %8 = vsyncpa [#allocation3], 0
    %9 = vsyncpa [#allocation6], 0
    %10 = vsyncpa [#allocation4], 0
    %s11 = scalar_lea.sflag [#allocation4], 1
    %12 = vsyncpa %s11, 0
    loop: start=0, step=1, limit=4
    $region2: #{tpu_custom_call.1} parent=1 // loop_pre_header
      _
    $region3: #{tpu_custom_call.1} parent=1 // loop_header
      %s14 = sphi 0, %s18
      %p15 = scmp.ge.s32.totalorder %s14, 4
      %s24 = sphi 0, %s26
      %s27 = sphi 0, %s24
      %s28 = sphi 0, %s27
      %s44 = sphi 0, %s28
      %s48 = sphi 0, %s48
      %s50 = sphi 0, %s48
      %s51 = sphi 0, %s50
      %s65 = sphi 0, %s51
      %s69 = sphi 0, %s69
      %s71 = sphi 0, %s69
      %s72 = sphi 0, %s71
      %s86 = sphi 0, %s72
      %s92 = sphi 0, %s94
      %s95 = sphi 0, %s92
      %s96 = sphi 0, %s95
      %s112 = sphi 0, %s96
    $region4: #{tpu_custom_call.1} parent=1 // loop_header_branch
      %17 = sbr.rel (%p15) target = $region8
    $region5: #{tpu_custom_call.1} parent=1 // loop_body
      %s19 = ssub.s32 %s14, 1
      %s20 = ssub.s32 %s14, 2
      %s21 = sadd.s32 %s14, 1
      %s22 = ssub.s32 %s14, %s21
      %p23 = scmp.eq.s32.totalorder %s22, 0
      %s25 = sadd.s32 %s24, 1
      %s26 = scalar_select %p23, %s24, %s25
      %p29 = pneg %p23
      %p30 = scmp.eq.s32.totalorder %s14, 1
      %p31 = por %p29, %p30
      %p32 = scmp.ne.s32.totalorder %s24, %s27
      %p33 = scmp.eq.s32.totalorder %s14, 0
      %p34 = por %p32, %p33
      %p35 = scmp.ne.s32.totalorder %s24, %s27
      %p36 = scmp.eq.s32.totalorder %s19, 1
      %p37 = por %p35, %p36
      %p38 = scmp.ne.s32.totalorder %s27, %s28
      %p39 = scmp.eq.s32.totalorder %s19, 0
      %p40 = por %p38, %p39
      %p41 = scmp.ne.s32.totalorder %s27, %s28
      %p42 = scmp.eq.s32.totalorder %s20, 1
      %p43 = por %p41, %p42
      %p45 = scmp.ne.s32.totalorder %s28, %s44
      %p46 = scmp.eq.s32.totalorder %s20, 0
      %p47 = por %p45, %p46
      %s49 = sadd.s32 %s48, 1
      %p52 = scmp.eq.s32.totalorder %s14, 1
      %p53 = scmp.ne.s32.totalorder %s48, %s50
      %p54 = scmp.eq.s32.totalorder %s14, 0
      %p55 = por %p53, %p54
      %p56 = scmp.ne.s32.totalorder %s48, %s50
      %p57 = scmp.eq.s32.totalorder %s19, 1
      %p58 = por %p56, %p57
      %p59 = scmp.ne.s32.totalorder %s50, %s51
      %p60 = scmp.eq.s32.totalorder %s19, 0
      %p61 = por %p59, %p60
      %p62 = scmp.ne.s32.totalorder %s50, %s51
      %p63 = scmp.eq.s32.totalorder %s20, 1
      %p64 = por %p62, %p63
      %p66 = scmp.ne.s32.totalorder %s51, %s65
      %p67 = scmp.eq.s32.totalorder %s20, 0
      %p68 = por %p66, %p67
      %s70 = sadd.s32 %s69, 1
      %p73 = scmp.eq.s32.totalorder %s14, 1
      %p74 = scmp.ne.s32.totalorder %s69, %s71
      %p75 = scmp.eq.s32.totalorder %s14, 0
      %p76 = por %p74, %p75
      %p77 = scmp.ne.s32.totalorder %s69, %s71
      %p78 = scmp.eq.s32.totalorder %s19, 1
      %p79 = por %p77, %p78
      %p80 = scmp.ne.s32.totalorder %s71, %s72
      %p81 = scmp.eq.s32.totalorder %s19, 0
      %p82 = por %p80, %p81
      %p83 = scmp.ne.s32.totalorder %s71, %s72
      %p84 = scmp.eq.s32.totalorder %s20, 1
      %p85 = por %p83, %p84
      %p87 = scmp.ne.s32.totalorder %s72, %s86
      %p88 = scmp.eq.s32.totalorder %s20, 0
      %p89 = por %p87, %p88
      %s90 = ssub.s32 %s14, %s21
      %p91 = scmp.eq.s32.totalorder %s90, 0
      %s93 = sadd.s32 %s92, 1
      %s94 = scalar_select %p91, %s92, %s93
      %p97 = pneg %p91
      %p98 = scmp.eq.s32.totalorder %s14, 1
      %p99 = por %p97, %p98
      %p100 = scmp.ne.s32.totalorder %s92, %s95
      %p101 = scmp.eq.s32.totalorder %s14, 0
      %p102 = por %p100, %p101
      %p103 = scmp.ne.s32.totalorder %s92, %s95
      %p104 = scmp.eq.s32.totalorder %s19, 1
      %p105 = por %p103, %p104
      %p106 = scmp.ne.s32.totalorder %s95, %s96
      %p107 = scmp.eq.s32.totalorder %s19, 0
      %p108 = por %p106, %p107
      %p109 = scmp.ne.s32.totalorder %s95, %s96
      %p110 = scmp.eq.s32.totalorder %s20, 1
      %p111 = por %p109, %p110
      %p113 = scmp.ne.s32.totalorder %s96, %s112
      %p114 = scmp.eq.s32.totalorder %s20, 0
      %p115 = por %p113, %p114
      %p116 = scmp.le.s32.totalorder 1, %s14
      %p117 = scmp.lt.s32.totalorder %s14, 3
      %p118 = pnand %p116, %p117
      %p119 = pneg %p118
      // Predicated region
      $region9: #{tpu_custom_call.1} parent=5 // pred_check
        _
      $region10: #{tpu_custom_call.1} parent=5 // pred_check_branch
        %121 = sbr.rel (%p118) target = $region12
      $region11: #{tpu_custom_call.1} parent=5 // pred_region
        %s122 = ssub.s32 %s14, 1
        // Predicated region
        $region13: #{tpu_custom_call.1} parent=11 // pred_check
          %p123 = pneg %p61
        $region14: #{tpu_custom_call.1} parent=11 // pred_check_branch
          %125 = sbr.rel (%p123) target = $region16
        $region15: #{tpu_custom_call.1} parent=11 // pred_region
          %s127 = ssub.s32 110592, 110592
          %128 = vsyncadd [#allocation3], %s127
          %s129 = sshll.u32 [#allocation2], 4
          %s130 = int_to_ptr.vmem [resolvable:$true] %s129
          %135 = dma.hbm_to_vmem [thread:$0]  %s1, 110592, %s130, [#allocation3], 256, 256, 16
        $region16: #{tpu_custom_call.1} parent=11 // pred_fallthru
          _
        // Predicated region
        $region17: #{tpu_custom_call.1} parent=11 // pred_check
          %p136 = pneg %p82
        $region18: #{tpu_custom_call.1} parent=11 // pred_check_branch
          %138 = sbr.rel (%p136) target = $region20
        $region19: #{tpu_custom_call.1} parent=11 // pred_region
          %s140 = ssub.s32 32, 32
          %141 = vsyncadd [#allocation6], %s140
          %s143 = sshll.u32 [#allocation5], 4
          %s144 = int_to_ptr.vmem [resolvable:$true] %s143
          %146 = dma.hbm_to_vmem [thread:$0]  %s2, 32, %s144, [#allocation6]
        $region20: #{tpu_custom_call.1} parent=11 // pred_fallthru
          _
      $region12: #{tpu_custom_call.1} parent=5 // pred_fallthru
        _
      %p147 = scmp.lt.s32.totalorder %s14, 2
      // Predicated region
      $region21: #{tpu_custom_call.1} parent=5 // pred_check
        %p148 = pneg %p147
      $region22: #{tpu_custom_call.1} parent=5 // pred_check_branch
        %150 = sbr.rel (%p148) target = $region24
      $region23: #{tpu_custom_call.1} parent=5 // pred_region
        // Predicated region
        $region25: #{tpu_custom_call.1} parent=23 // pred_check
          %p151 = pneg %p34
        $region26: #{tpu_custom_call.1} parent=23 // pred_check_branch
          %153 = sbr.rel (%p151) target = $region28
        $region27: #{tpu_custom_call.1} parent=23 // pred_region
          %p154 = scmp.lt.s32.totalorder %s14, 1
          %s155 = scalar_select %p154, %s14, 1
          %s156 = smul.addr %s155, 60
          %s157 = smul.addr %s156, 8
          %s158 = scalar_lea.vmem %s0, %s157
        $region28: #{tpu_custom_call.1} parent=23 // pred_fallthru
          _
      $region24: #{tpu_custom_call.1} parent=5 // pred_fallthru
        _
      %p159 = scmp.le.s32.totalorder 1, %s14
      %p160 = scmp.lt.s32.totalorder %s14, 3
      %p161 = pnand %p159, %p160
      %p162 = pneg %p161
      // Predicated region
      $region29: #{tpu_custom_call.1} parent=5 // pred_check
        _
      $region30: #{tpu_custom_call.1} parent=5 // pred_check_branch
        %164 = sbr.rel (%p161) target = $region32
      $region31: #{tpu_custom_call.1} parent=5 // pred_region
        %s165 = ssub.s32 %s14, 1
        // Predicated region
        $region33: #{tpu_custom_call.1} parent=31 // pred_check
          %p166 = pneg %p61
        $region34: #{tpu_custom_call.1} parent=31 // pred_check_branch
          %168 = sbr.rel (%p166) target = $region36
        $region35: #{tpu_custom_call.1} parent=31 // pred_region
          %169 = dma.done [#allocation3], 110592
        $region36: #{tpu_custom_call.1} parent=31 // pred_fallthru
          _
        // Predicated region
        $region37: #{tpu_custom_call.1} parent=31 // pred_check
          %p170 = pneg %p82
        $region38: #{tpu_custom_call.1} parent=31 // pred_check_branch
          %172 = sbr.rel (%p170) target = $region40
        $region39: #{tpu_custom_call.1} parent=31 // pred_region
          %173 = dma.done [#allocation6], 32
        $region40: #{tpu_custom_call.1} parent=31 // pred_fallthru
          _
        %p174 = scmp.lt.s32.totalorder %s19, 1
        %s175 = scalar_select %p174, %s19, 1
        %s176 = smul.addr %s175, 60
        %s177 = smul.addr %s176, 8
        %s178 = scalar_lea.vmem %s0, %s177
        %p179 = pneg %p40
        %p180 = pneg %p37
        %p181 = pneg %p61
        %p182 = pneg %p58
        %p183 = pneg %p82
        %p184 = pneg %p79
        %p185 = pneg %p108
        %p186 = pneg %p105
        %s187 = sand.u32 %s95, 1
        %s188 = scalar_lea.sflag [#allocation4], %s187
        %s189 = sand.u32 %s95, 1
        %s190 = smul.addr %s189, 128
        %s191 = scalar_lea.vmem [#allocation7], %s190
        %p192 = scmp.lt.s32.totalorder %s19, 1
        %s193 = scalar_select %p192, %s19, 1
        %s194 = smul.addr %s193, 60
        %s195 = smul.addr %s194, 8
        %s196 = scalar_lea.vmem %s0, %s195
        %v197 = vld [vmem:[%s196] sm:$0xff]
        %v198 = vld [vmem:[%s196 + $0x8] sm:$0xff]
        %v199 = vld [vmem:[%s196 + $0x10] sm:$0xff]
        %v200 = vld [vmem:[%s196 + $0x18] sm:$0x3]
        %v201 = vld [vmem:[%s196 + $0x20] sm:$0x3]
        %v202 = vld [vmem:[%s196 + $0x28] sm:$0x3]
        %v203 = vld [vmem:[%s196 + $0x30] sm:$0xff]
        %v204 = vld [vmem:[%s196 + $0x38] sm:$0xff]
        %v205 = vld [vmem:[%s196 + $0x40] sm:$0xff]
        %v206 = vld [vmem:[%s196 + $0x48] sm:$0x3]
        %v207 = vld [vmem:[%s196 + $0x50] sm:$0x3]
        %v208 = vld [vmem:[%s196 + $0x58] sm:$0x3]
        %v209 = vld [vmem:[%s196 + $0x60] sm:$0xff]
        %v210 = vld [vmem:[%s196 + $0x68] sm:$0xff]
        %v211 = vld [vmem:[%s196 + $0x70] sm:$0xff]
        %v212 = vld [vmem:[%s196 + $0x78] sm:$0x3]
        %v213 = vld [vmem:[%s196 + $0x80] sm:$0x3]
        %v214 = vld [vmem:[%s196 + $0x88] sm:$0x3]
        %v215 = vld [vmem:[%s196 + $0x90] sm:$0xff]
        %v216 = vld [vmem:[%s196 + $0x98] sm:$0xff]
        %v217 = vld [vmem:[%s196 + $0xa0] sm:$0xff]
        %v218 = vld [vmem:[%s196 + $0xa8] sm:$0x3]
        %v219 = vld [vmem:[%s196 + $0xb0] sm:$0x3]
        %v220 = vld [vmem:[%s196 + $0xb8] sm:$0x3]
        %v221 = vld [vmem:[%s196 + $0xc0] sm:$0xff]
        %v222 = vld [vmem:[%s196 + $0xc8] sm:$0xff]
        %v223 = vld [vmem:[%s196 + $0xd0] sm:$0xff]
        %v224 = vld [vmem:[%s196 + $0xd8] sm:$0x3]
        %v225 = vld [vmem:[%s196 + $0xe0] sm:$0x3]
        %v226 = vld [vmem:[%s196 + $0xe8] sm:$0x3]
        %v227 = vld [vmem:[%s196 + $0xf0] sm:$0xff]
        %v228 = vld [vmem:[%s196 + $0xf8] sm:$0xff]
        %v229 = vld [vmem:[%s196 + $0x100] sm:$0xff]
        %v230 = vld [vmem:[%s196 + $0x108] sm:$0x3]
        %v231 = vld [vmem:[%s196 + $0x110] sm:$0x3]
        %v232 = vld [vmem:[%s196 + $0x118] sm:$0x3]
        %v233 = vld [vmem:[%s196 + $0x120] sm:$0xff]
        %v234 = vld [vmem:[%s196 + $0x128] sm:$0xff]
        %v235 = vld [vmem:[%s196 + $0x130] sm:$0xff]
        %v236 = vld [vmem:[%s196 + $0x138] sm:$0x3]
        %v237 = vld [vmem:[%s196 + $0x140] sm:$0x3]
        %v238 = vld [vmem:[%s196 + $0x148] sm:$0x3]
        %v239 = vld [vmem:[%s196 + $0x150] sm:$0xff]
        %v240 = vld [vmem:[%s196 + $0x158] sm:$0xff]
        %v241 = vld [vmem:[%s196 + $0x160] sm:$0xff]
        %v242 = vld [vmem:[%s196 + $0x168] sm:$0x3]
        %v243 = vld [vmem:[%s196 + $0x170] sm:$0x3]
        %v244 = vld [vmem:[%s196 + $0x178] sm:$0x3]
        %v245 = vld [vmem:[%s196 + $0x180] sm:$0xff]
        %v246 = vld [vmem:[%s196 + $0x188] sm:$0xff]
        %v247 = vld [vmem:[%s196 + $0x190] sm:$0xff]
        %v248 = vld [vmem:[%s196 + $0x198] sm:$0x3]
        %v249 = vld [vmem:[%s196 + $0x1a0] sm:$0x3]
        %v250 = vld [vmem:[%s196 + $0x1a8] sm:$0x3]
        %v251 = vld [vmem:[%s196 + $0x1b0] sm:$0xff]
        %v252 = vld [vmem:[%s196 + $0x1b8] sm:$0xff]
        %v253 = vld [vmem:[%s196 + $0x1c0] sm:$0xff]
        %v254 = vld [vmem:[%s196 + $0x1c8] sm:$0x3]
        %v255 = vld [vmem:[%s196 + $0x1d0] sm:$0x3]
        %v256 = vld [vmem:[%s196 + $0x1d8] sm:$0x3]
        %v257 = vld [vmem:[#allocation2] sm:$0xff]
        %v258 = vld [vmem:[#allocation2 + $0x8] sm:$0xff]
        %v259 = vld [vmem:[#allocation2 + $0x10] sm:$0xff]
        %v260 = vld [vmem:[#allocation2 + $0x18] sm:$0xff]
        %v261 = vld [vmem:[#allocation2 + $0x20] sm:$0xff]
        %v262 = vld [vmem:[#allocation2 + $0x28] sm:$0xff]
        %v263 = vld [vmem:[#allocation2 + $0x30] sm:$0xff]
        %v264 = vld [vmem:[#allocation2 + $0x38] sm:$0xff]
        %v265 = vld [vmem:[#allocation2 + $0x40] sm:$0xff]
        %v266 = vld [vmem:[#allocation2 + $0x48] sm:$0xff]
        %v267 = vld [vmem:[#allocation2 + $0x50] sm:$0xff]
        %v268 = vld [vmem:[#allocation2 + $0x58] sm:$0xff]
        %v269 = vld [vmem:[#allocation2 + $0x60] sm:$0xff]
        %v270 = vld [vmem:[#allocation2 + $0x68] sm:$0xff]
        %v271 = vld [vmem:[#allocation2 + $0x70] sm:$0xff]
        %v272 = vld [vmem:[#allocation2 + $0x78] sm:$0xff]
        %v273 = vld [vmem:[#allocation2 + $0x80] sm:$0xff]
        %v274 = vld [vmem:[#allocation2 + $0x88] sm:$0xff]
        %v275 = vld [vmem:[#allocation2 + $0x90] sm:$0xff]
        %v276 = vld [vmem:[#allocation2 + $0x98] sm:$0xff]
        %v277 = vld [vmem:[#allocation2 + $0xa0] sm:$0xff]
        %v278 = vld [vmem:[#allocation2 + $0xa8] sm:$0xff]
        %v279 = vld [vmem:[#allocation2 + $0xb0] sm:$0xff]
        %v280 = vld [vmem:[#allocation2 + $0xb8] sm:$0xff]
        %v281 = vld [vmem:[#allocation2 + $0xc0] sm:$0xff]
        %v282 = vld [vmem:[#allocation2 + $0xc8] sm:$0xff]
        %v283 = vld [vmem:[#allocation2 + $0xd0] sm:$0xff]
        %v284 = vld [vmem:[#allocation2 + $0xd8] sm:$0xff]
        %v285 = vld [vmem:[#allocation2 + $0xe0] sm:$0xff]
        %v286 = vld [vmem:[#allocation2 + $0xe8] sm:$0xff]
        %v287 = vld [vmem:[#allocation2 + $0xf0] sm:$0xff]
        %v288 = vld [vmem:[#allocation2 + $0xf8] sm:$0xff]
        %v289 = vld [vmem:[#allocation2 + $0x100] sm:$0xff]
        %v290 = vld [vmem:[#allocation2 + $0x108] sm:$0xff]
        %v291 = vld [vmem:[#allocation2 + $0x110] sm:$0xff]
        %v292 = vld [vmem:[#allocation2 + $0x118] sm:$0xff]
        %v293 = vld [vmem:[#allocation2 + $0x120] sm:$0xff]
        %v294 = vld [vmem:[#allocation2 + $0x128] sm:$0xff]
        %v295 = vld [vmem:[#allocation2 + $0x130] sm:$0xff]
        %v296 = vld [vmem:[#allocation2 + $0x138] sm:$0xff]
        %v297 = vld [vmem:[#allocation2 + $0x140] sm:$0xff]
        %v298 = vld [vmem:[#allocation2 + $0x148] sm:$0xff]
        %v299 = vld [vmem:[#allocation2 + $0x150] sm:$0xff]
        %v300 = vld [vmem:[#allocation2 + $0x158] sm:$0xff]
        %v301 = vld [vmem:[#allocation2 + $0x160] sm:$0xff]
        %v302 = vld [vmem:[#allocation2 + $0x168] sm:$0xff]
        %v303 = vld [vmem:[#allocation2 + $0x170] sm:$0xff]
        %v304 = vld [vmem:[#allocation2 + $0x178] sm:$0xff]
        %v305 = vld [vmem:[#allocation2 + $0x180] sm:$0xff]
        %v306 = vld [vmem:[#allocation2 + $0x188] sm:$0xff]
        %v307 = vld [vmem:[#allocation2 + $0x190] sm:$0xff]
        %v308 = vld [vmem:[#allocation2 + $0x198] sm:$0xff]
        %v309 = vld [vmem:[#allocation2 + $0x1a0] sm:$0xff]
        %v310 = vld [vmem:[#allocation2 + $0x1a8] sm:$0xff]
        %v311 = vld [vmem:[#allocation2 + $0x1b0] sm:$0xff]
        %v312 = vld [vmem:[#allocation2 + $0x1b8] sm:$0xff]
        %v313 = vld [vmem:[#allocation2 + $0x1c0] sm:$0xff]
        %v314 = vld [vmem:[#allocation2 + $0x1c8] sm:$0xff]
        %v315 = vld [vmem:[#allocation2 + $0x1d0] sm:$0xff]
        %v316 = vld [vmem:[#allocation2 + $0x1d8] sm:$0xff]
        %v317 = vld [vmem:[#allocation2 + $0x1e0] sm:$0xff]
        %v318 = vld [vmem:[#allocation2 + $0x1e8] sm:$0xff]
        %v319 = vld [vmem:[#allocation2 + $0x1f0] sm:$0xff]
        %v320 = vld [vmem:[#allocation2 + $0x1f8] sm:$0xff]
        %v321 = vld [vmem:[#allocation2 + $0x200] sm:$0xff]
        %v322 = vld [vmem:[#allocation2 + $0x208] sm:$0xff]
        %v323 = vld [vmem:[#allocation2 + $0x210] sm:$0xff]
        %v324 = vld [vmem:[#allocation2 + $0x218] sm:$0xff]
        %v325 = vld [vmem:[#allocation2 + $0x220] sm:$0xff]
        %v326 = vld [vmem:[#allocation2 + $0x228] sm:$0xff]
        %v327 = vld [vmem:[#allocation2 + $0x230] sm:$0xff]
        %v328 = vld [vmem:[#allocation2 + $0x238] sm:$0xff]
        %v329 = vld [vmem:[#allocation2 + $0x240] sm:$0xff]
        %v330 = vld [vmem:[#allocation2 + $0x248] sm:$0xff]
        %v331 = vld [vmem:[#allocation2 + $0x250] sm:$0xff]
        %v332 = vld [vmem:[#allocation2 + $0x258] sm:$0xff]
        %v333 = vld [vmem:[#allocation2 + $0x260] sm:$0xff]
        %v334 = vld [vmem:[#allocation2 + $0x268] sm:$0xff]
        %v335 = vld [vmem:[#allocation2 + $0x270] sm:$0xff]
        %v336 = vld [vmem:[#allocation2 + $0x278] sm:$0xff]
        %v337 = vld [vmem:[#allocation2 + $0x280] sm:$0xff]
        %v338 = vld [vmem:[#allocation2 + $0x288] sm:$0xff]
        %v339 = vld [vmem:[#allocation2 + $0x290] sm:$0xff]
        %v340 = vld [vmem:[#allocation2 + $0x298] sm:$0xff]
        %v341 = vld [vmem:[#allocation2 + $0x2a0] sm:$0xff]
        %v342 = vld [vmem:[#allocation2 + $0x2a8] sm:$0xff]
        %v343 = vld [vmem:[#allocation2 + $0x2b0] sm:$0xff]
        %v344 = vld [vmem:[#allocation2 + $0x2b8] sm:$0xff]
        %v345 = vld [vmem:[#allocation2 + $0x2c0] sm:$0xff]
        %v346 = vld [vmem:[#allocation2 + $0x2c8] sm:$0xff]
        %v347 = vld [vmem:[#allocation2 + $0x2d0] sm:$0xff]
        %v348 = vld [vmem:[#allocation2 + $0x2d8] sm:$0xff]
        %v349 = vld [vmem:[#allocation2 + $0x2e0] sm:$0xff]
        %v350 = vld [vmem:[#allocation2 + $0x2e8] sm:$0xff]
        %v351 = vld [vmem:[#allocation2 + $0x2f0] sm:$0xff]
        %v352 = vld [vmem:[#allocation2 + $0x2f8] sm:$0xff]
        %vm401 = vcmask 1046528
        %v402 = vrot.slane %v197, 1
        %v403 = vrot.slane %v200, 1
        %v404 = vsel %vm401, %v402, %v403
        %v405 = vrot.slane %v198, 1
        %v406 = vrot.slane %v201, 1
        %v407 = vsel %vm401, %v405, %v406
        %v408 = vrot.slane %v199, 1
        %v409 = vrot.slane %v202, 1
        %v410 = vsel %vm401, %v408, %v409
        %v411 = vrot.slane %v203, 1
        %v412 = vrot.slane %v206, 1
        %v413 = vsel %vm401, %v411, %v412
        %v414 = vrot.slane %v204, 1
        %v415 = vrot.slane %v207, 1
        %v416 = vsel %vm401, %v414, %v415
        %v417 = vrot.slane %v205, 1
        %v418 = vrot.slane %v208, 1
        %v419 = vsel %vm401, %v417, %v418
        %v420 = vrot.slane %v209, 1
        %v421 = vrot.slane %v212, 1
        %v422 = vsel %vm401, %v420, %v421
        %v423 = vrot.slane %v210, 1
        %v424 = vrot.slane %v213, 1
        %v425 = vsel %vm401, %v423, %v424
        %v426 = vrot.slane %v211, 1
        %v427 = vrot.slane %v214, 1
        %v428 = vsel %vm401, %v426, %v427
        %v429 = vrot.slane %v215, 1
        %v430 = vrot.slane %v218, 1
        %v431 = vsel %vm401, %v429, %v430
        %v432 = vrot.slane %v216, 1
        %v433 = vrot.slane %v219, 1
        %v434 = vsel %vm401, %v432, %v433
        %v435 = vrot.slane %v217, 1
        %v436 = vrot.slane %v220, 1
        %v437 = vsel %vm401, %v435, %v436
        %v438 = vrot.slane %v221, 1
        %v439 = vrot.slane %v224, 1
        %v440 = vsel %vm401, %v438, %v439
        %v441 = vrot.slane %v222, 1
        %v442 = vrot.slane %v225, 1
        %v443 = vsel %vm401, %v441, %v442
        %v444 = vrot.slane %v223, 1
        %v445 = vrot.slane %v226, 1
        %v446 = vsel %vm401, %v444, %v445
        %v447 = vrot.slane %v227, 1
        %v448 = vrot.slane %v230, 1
        %v449 = vsel %vm401, %v447, %v448
        %v450 = vrot.slane %v228, 1
        %v451 = vrot.slane %v231, 1
        %v452 = vsel %vm401, %v450, %v451
        %v453 = vrot.slane %v229, 1
        %v454 = vrot.slane %v232, 1
        %v455 = vsel %vm401, %v453, %v454
        %v456 = vrot.slane %v233, 1
        %v457 = vrot.slane %v236, 1
        %v458 = vsel %vm401, %v456, %v457
        %v459 = vrot.slane %v234, 1
        %v460 = vrot.slane %v237, 1
        %v461 = vsel %vm401, %v459, %v460
        %v462 = vrot.slane %v235, 1
        %v463 = vrot.slane %v238, 1
        %v464 = vsel %vm401, %v462, %v463
        %v465 = vrot.slane %v239, 1
        %v466 = vrot.slane %v242, 1
        %v467 = vsel %vm401, %v465, %v466
        %v468 = vrot.slane %v240, 1
        %v469 = vrot.slane %v243, 1
        %v470 = vsel %vm401, %v468, %v469
        %v471 = vrot.slane %v241, 1
        %v472 = vrot.slane %v244, 1
        %v473 = vsel %vm401, %v471, %v472
        %s498 = scalar_lea.vmem [#allocation2], 768
        %v499 = vld [vmem:[%s498] sm:$0xff]
        %v500 = vld [vmem:[%s498 + $0x8] sm:$0xff]
        %v501 = vld [vmem:[%s498 + $0x10] sm:$0xff]
        %v502 = vld [vmem:[%s498 + $0x18] sm:$0xff]
        %v503 = vld [vmem:[%s498 + $0x20] sm:$0xff]
        %v504 = vld [vmem:[%s498 + $0x28] sm:$0xff]
        %v505 = vld [vmem:[%s498 + $0x30] sm:$0xff]
        %v506 = vld [vmem:[%s498 + $0x38] sm:$0xff]
        %v507 = vld [vmem:[%s498 + $0x40] sm:$0xff]
        %v508 = vld [vmem:[%s498 + $0x48] sm:$0xff]
        %v509 = vld [vmem:[%s498 + $0x50] sm:$0xff]
        %v510 = vld [vmem:[%s498 + $0x58] sm:$0xff]
        %v511 = vld [vmem:[%s498 + $0x60] sm:$0xff]
        %v512 = vld [vmem:[%s498 + $0x68] sm:$0xff]
        %v513 = vld [vmem:[%s498 + $0x70] sm:$0xff]
        %v514 = vld [vmem:[%s498 + $0x78] sm:$0xff]
        %v515 = vld [vmem:[%s498 + $0x80] sm:$0xff]
        %v516 = vld [vmem:[%s498 + $0x88] sm:$0xff]
        %v517 = vld [vmem:[%s498 + $0x90] sm:$0xff]
        %v518 = vld [vmem:[%s498 + $0x98] sm:$0xff]
        %v519 = vld [vmem:[%s498 + $0xa0] sm:$0xff]
        %v520 = vld [vmem:[%s498 + $0xa8] sm:$0xff]
        %v521 = vld [vmem:[%s498 + $0xb0] sm:$0xff]
        %v522 = vld [vmem:[%s498 + $0xb8] sm:$0xff]
        %v523 = vld [vmem:[%s498 + $0xc0] sm:$0xff]
        %v524 = vld [vmem:[%s498 + $0xc8] sm:$0xff]
        %v525 = vld [vmem:[%s498 + $0xd0] sm:$0xff]
        %v526 = vld [vmem:[%s498 + $0xd8] sm:$0xff]
        %v527 = vld [vmem:[%s498 + $0xe0] sm:$0xff]
        %v528 = vld [vmem:[%s498 + $0xe8] sm:$0xff]
        %v529 = vld [vmem:[%s498 + $0xf0] sm:$0xff]
        %v530 = vld [vmem:[%s498 + $0xf8] sm:$0xff]
        %v531 = vld [vmem:[%s498 + $0x100] sm:$0xff]
        %v532 = vld [vmem:[%s498 + $0x108] sm:$0xff]
        %v533 = vld [vmem:[%s498 + $0x110] sm:$0xff]
        %v534 = vld [vmem:[%s498 + $0x118] sm:$0xff]
        %v535 = vld [vmem:[%s498 + $0x120] sm:$0xff]
        %v536 = vld [vmem:[%s498 + $0x128] sm:$0xff]
        %v537 = vld [vmem:[%s498 + $0x130] sm:$0xff]
        %v538 = vld [vmem:[%s498 + $0x138] sm:$0xff]
        %v539 = vld [vmem:[%s498 + $0x140] sm:$0xff]
        %v540 = vld [vmem:[%s498 + $0x148] sm:$0xff]
        %v541 = vld [vmem:[%s498 + $0x150] sm:$0xff]
        %v542 = vld [vmem:[%s498 + $0x158] sm:$0xff]
        %v543 = vld [vmem:[%s498 + $0x160] sm:$0xff]
        %v544 = vld [vmem:[%s498 + $0x168] sm:$0xff]
        %v545 = vld [vmem:[%s498 + $0x170] sm:$0xff]
        %v546 = vld [vmem:[%s498 + $0x178] sm:$0xff]
        %v547 = vld [vmem:[%s498 + $0x180] sm:$0xff]
        %v548 = vld [vmem:[%s498 + $0x188] sm:$0xff]
        %v549 = vld [vmem:[%s498 + $0x190] sm:$0xff]
        %v550 = vld [vmem:[%s498 + $0x198] sm:$0xff]
        %v551 = vld [vmem:[%s498 + $0x1a0] sm:$0xff]
        %v552 = vld [vmem:[%s498 + $0x1a8] sm:$0xff]
        %v553 = vld [vmem:[%s498 + $0x1b0] sm:$0xff]
        %v554 = vld [vmem:[%s498 + $0x1b8] sm:$0xff]
        %v555 = vld [vmem:[%s498 + $0x1c0] sm:$0xff]
        %v556 = vld [vmem:[%s498 + $0x1c8] sm:$0xff]
        %v557 = vld [vmem:[%s498 + $0x1d0] sm:$0xff]
        %v558 = vld [vmem:[%s498 + $0x1d8] sm:$0xff]
        %v559 = vld [vmem:[%s498 + $0x1e0] sm:$0xff]
        %v560 = vld [vmem:[%s498 + $0x1e8] sm:$0xff]
        %v561 = vld [vmem:[%s498 + $0x1f0] sm:$0xff]
        %v562 = vld [vmem:[%s498 + $0x1f8] sm:$0xff]
        %v563 = vld [vmem:[%s498 + $0x200] sm:$0xff]
        %v564 = vld [vmem:[%s498 + $0x208] sm:$0xff]
        %v565 = vld [vmem:[%s498 + $0x210] sm:$0xff]
        %v566 = vld [vmem:[%s498 + $0x218] sm:$0xff]
        %v567 = vld [vmem:[%s498 + $0x220] sm:$0xff]
        %v568 = vld [vmem:[%s498 + $0x228] sm:$0xff]
        %v569 = vld [vmem:[%s498 + $0x230] sm:$0xff]
        %v570 = vld [vmem:[%s498 + $0x238] sm:$0xff]
        %v571 = vld [vmem:[%s498 + $0x240] sm:$0xff]
        %v572 = vld [vmem:[%s498 + $0x248] sm:$0xff]
        %v573 = vld [vmem:[%s498 + $0x250] sm:$0xff]
        %v574 = vld [vmem:[%s498 + $0x258] sm:$0xff]
        %v575 = vld [vmem:[%s498 + $0x260] sm:$0xff]
        %v576 = vld [vmem:[%s498 + $0x268] sm:$0xff]
        %v577 = vld [vmem:[%s498 + $0x270] sm:$0xff]
        %v578 = vld [vmem:[%s498 + $0x278] sm:$0xff]
        %v579 = vld [vmem:[%s498 + $0x280] sm:$0xff]
        %v580 = vld [vmem:[%s498 + $0x288] sm:$0xff]
        %v581 = vld [vmem:[%s498 + $0x290] sm:$0xff]
        %v582 = vld [vmem:[%s498 + $0x298] sm:$0xff]
        %v583 = vld [vmem:[%s498 + $0x2a0] sm:$0xff]
        %v584 = vld [vmem:[%s498 + $0x2a8] sm:$0xff]
        %v585 = vld [vmem:[%s498 + $0x2b0] sm:$0xff]
        %v586 = vld [vmem:[%s498 + $0x2b8] sm:$0xff]
        %v587 = vld [vmem:[%s498 + $0x2c0] sm:$0xff]
        %v588 = vld [vmem:[%s498 + $0x2c8] sm:$0xff]
        %v589 = vld [vmem:[%s498 + $0x2d0] sm:$0xff]
        %v590 = vld [vmem:[%s498 + $0x2d8] sm:$0xff]
        %v591 = vld [vmem:[%s498 + $0x2e0] sm:$0xff]
        %v592 = vld [vmem:[%s498 + $0x2e8] sm:$0xff]
        %v593 = vld [vmem:[%s498 + $0x2f0] sm:$0xff]
        %v594 = vld [vmem:[%s498 + $0x2f8] sm:$0xff]
        %595 = vmatprep.subr.mxu0 %v530
        %596 = vmatpush1.msra.mxu0 %v529
        %597 = vmatprep.subr.mxu0 %v528
        %598 = vmatpush1.msra.mxu0 %v527
        %599 = vmatprep.subr.mxu0 %v526
        %600 = vmatpush1.msra.mxu0 %v525
        %601 = vmatprep.subr.mxu0 %v524
        %602 = vmatpush1.msra.mxu0 %v523
        %603 = vmatprep.subr.mxu0 %v522
        %604 = vmatpush1.msra.mxu0 %v521
        %605 = vmatprep.subr.mxu0 %v520
        %606 = vmatpush1.msra.mxu0 %v519
        %607 = vmatprep.subr.mxu0 %v518
        %608 = vmatpush1.msra.mxu0 %v517
        %609 = vmatprep.subr.mxu0 %v516
        %610 = vmatpush1.msra.mxu0 %v515
        %611 = vmatprep.subr.mxu0 %v514
        %612 = vmatpush1.msra.mxu0 %v513
        %613 = vmatprep.subr.mxu0 %v512
        %614 = vmatpush1.msra.mxu0 %v511
        %615 = vmatprep.subr.mxu0 %v510
        %616 = vmatpush1.msra.mxu0 %v509
        %617 = vmatprep.subr.mxu0 %v508
        %618 = vmatpush1.msra.mxu0 %v507
        %619 = vmatprep.subr.mxu0 %v506
        %620 = vmatpush1.msra.mxu0 %v505
        %621 = vmatprep.subr.mxu0 %v504
        %622 = vmatpush1.msra.mxu0 %v503
        %623 = vmatprep.subr.mxu0 %v502
        %624 = vmatpush1.msra.mxu0 %v501
        %625 = vmatprep.subr.mxu0 %v500
        %626 = vmatpush1.msra.mxu0 %v499
        %627 = vmatprep.subr.mxu0 %v562
        %628 = vmatpush2.msra.mxu0 %v561
        %629 = vmatprep.subr.mxu0 %v560
        %630 = vmatpush2.msra.mxu0 %v559
        %631 = vmatprep.subr.mxu0 %v558
        %632 = vmatpush2.msra.mxu0 %v557
        %633 = vmatprep.subr.mxu0 %v556
        %634 = vmatpush2.msra.mxu0 %v555
        %635 = vmatprep.subr.mxu0 %v554
        %636 = vmatpush2.msra.mxu0 %v553
        %637 = vmatprep.subr.mxu0 %v552
        %638 = vmatpush2.msra.mxu0 %v551
        %639 = vmatprep.subr.mxu0 %v550
        %640 = vmatpush2.msra.mxu0 %v549
        %641 = vmatprep.subr.mxu0 %v548
        %642 = vmatpush2.msra.mxu0 %v547
        %643 = vmatprep.subr.mxu0 %v546
        %644 = vmatpush2.msra.mxu0 %v545
        %645 = vmatprep.subr.mxu0 %v544
        %646 = vmatpush2.msra.mxu0 %v543
        %647 = vmatprep.subr.mxu0 %v542
        %648 = vmatpush2.msra.mxu0 %v541
        %649 = vmatprep.subr.mxu0 %v540
        %650 = vmatpush2.msra.mxu0 %v539
        %651 = vmatprep.subr.mxu0 %v538
        %652 = vmatpush2.msra.mxu0 %v537
        %653 = vmatprep.subr.mxu0 %v536
        %654 = vmatpush2.msra.mxu0 %v535
        %655 = vmatprep.subr.mxu0 %v534
        %656 = vmatpush2.msra.mxu0 %v533
        %657 = vmatprep.subr.mxu0 %v532
        %658 = vmatpush2.msra.mxu0 %v531
        %659 = vmatprep.mubr.f32.mxu0 %v407
        %660 = vmatmul.mubr.f32.gmra.mxu0 %v404
        %v661 = vpop.f32.mrf.mxu0
        %v662 = vadd.f32 0.0, %v661
        %v663 = vpop.f32.mrf.mxu0
        %v664 = vadd.f32 0.0, %v663
        %665 = vmatprep.mubr.f32.mxu0 %v416
        %666 = vmatmul.mubr.f32.gmra.mxu0 %v413
        %v667 = vpop.f32.mrf.mxu0
        %v668 = vadd.f32 0.0, %v667
        %v669 = vpop.f32.mrf.mxu0
        %v670 = vadd.f32 0.0, %v669
        %671 = vmatprep.mubr.f32.mxu0 %v425
        %672 = vmatmul.mubr.f32.gmra.mxu0 %v422
        %v673 = vpop.f32.mrf.mxu0
        %v674 = vadd.f32 0.0, %v673
        %v675 = vpop.f32.mrf.mxu0
        %v676 = vadd.f32 0.0, %v675
        %677 = vmatprep.mubr.f32.mxu0 %v434
        %678 = vmatmul.mubr.f32.gmra.mxu0 %v431
        %v679 = vpop.f32.mrf.mxu0
        %v680 = vadd.f32 0.0, %v679
        %v681 = vpop.f32.mrf.mxu0
        %v682 = vadd.f32 0.0, %v681
        %683 = vmatprep.mubr.f32.mxu0 %v443
        %684 = vmatmul.mubr.f32.gmra.mxu0 %v440
        %v685 = vpop.f32.mrf.mxu0
        %v686 = vadd.f32 0.0, %v685
        %v687 = vpop.f32.mrf.mxu0
        %v688 = vadd.f32 0.0, %v687
        %689 = vmatprep.mubr.f32.mxu0 %v452
        %690 = vmatmul.mubr.f32.gmra.mxu0 %v449
        %v691 = vpop.f32.mrf.mxu0
        %v692 = vadd.f32 0.0, %v691
        %v693 = vpop.f32.mrf.mxu0
        %v694 = vadd.f32 0.0, %v693
        %695 = vmatprep.mubr.f32.mxu0 %v461
        %696 = vmatmul.mubr.f32.gmra.mxu0 %v458
        %v697 = vpop.f32.mrf.mxu0
        %v698 = vadd.f32 0.0, %v697
        %v699 = vpop.f32.mrf.mxu0
        %v700 = vadd.f32 0.0, %v699
        %701 = vmatprep.mubr.f32.mxu0 %v470
        %702 = vmatmul.mubr.f32.gmra.mxu0 %v467
        %v703 = vpop.f32.mrf.mxu0
        %v704 = vadd.f32 0.0, %v703
        %v705 = vpop.f32.mrf.mxu0
        %v706 = vadd.f32 0.0, %v705
        %707 = vdwg.mxu0
        %708 = vmatprep.subr.mxu0 %v594
        %709 = vmatpush1.msra.mxu0 %v593
        %710 = vmatprep.subr.mxu0 %v592
        %711 = vmatpush1.msra.mxu0 %v591
        %712 = vmatprep.subr.mxu0 %v590
        %713 = vmatpush1.msra.mxu0 %v589
        %714 = vmatprep.subr.mxu0 %v588
        %715 = vmatpush1.msra.mxu0 %v587
        %716 = vmatprep.subr.mxu0 %v586
        %717 = vmatpush1.msra.mxu0 %v585
        %718 = vmatprep.subr.mxu0 %v584
        %719 = vmatpush1.msra.mxu0 %v583
        %720 = vmatprep.subr.mxu0 %v582
        %721 = vmatpush1.msra.mxu0 %v581
        %722 = vmatprep.subr.mxu0 %v580
        %723 = vmatpush1.msra.mxu0 %v579
        %724 = vmatprep.subr.mxu0 %v578
        %725 = vmatpush1.msra.mxu0 %v577
        %726 = vmatprep.subr.mxu0 %v576
        %727 = vmatpush1.msra.mxu0 %v575
        %728 = vmatprep.subr.mxu0 %v574
        %729 = vmatpush1.msra.mxu0 %v573
        %730 = vmatprep.subr.mxu0 %v572
        %731 = vmatpush1.msra.mxu0 %v571
        %732 = vmatprep.subr.mxu0 %v570
        %733 = vmatpush1.msra.mxu0 %v569
        %734 = vmatprep.subr.mxu0 %v568
        %735 = vmatpush1.msra.mxu0 %v567
        %736 = vmatprep.subr.mxu0 %v566
        %737 = vmatpush1.msra.mxu0 %v565
        %738 = vmatprep.subr.mxu0 %v564
        %739 = vmatpush1.msra.mxu0 %v563
        %740 = vmatprep.subr.mxu0 0.0
        %741 = vmatpush2.msra.mxu0 0.0
        %742 = vmatprep.subr.mxu0 0.0
        %743 = vmatpush2.msra.mxu0 0.0
        %744 = vmatprep.subr.mxu0 0.0
        %745 = vmatpush2.msra.mxu0 0.0
        %746 = vmatprep.subr.mxu0 0.0
        %747 = vmatpush2.msra.mxu0 0.0
        %748 = vmatprep.subr.mxu0 0.0
        %749 = vmatpush2.msra.mxu0 0.0
        %750 = vmatprep.subr.mxu0 0.0
        %751 = vmatpush2.msra.mxu0 0.0
        %752 = vmatprep.subr.mxu0 0.0
        %753 = vmatpush2.msra.mxu0 0.0
        %754 = vmatprep.subr.mxu0 0.0
        %755 = vmatpush2.msra.mxu0 0.0
        %756 = vmatprep.subr.mxu0 0.0
        %757 = vmatpush2.msra.mxu0 0.0
        %758 = vmatprep.subr.mxu0 0.0
        %759 = vmatpush2.msra.mxu0 0.0
        %760 = vmatprep.subr.mxu0 0.0
        %761 = vmatpush2.msra.mxu0 0.0
        %762 = vmatprep.subr.mxu0 0.0
        %763 = vmatpush2.msra.mxu0 0.0
        %764 = vmatprep.subr.mxu0 0.0
        %765 = vmatpush2.msra.mxu0 0.0
        %766 = vmatprep.subr.mxu0 0.0
        %767 = vmatpush2.msra.mxu0 0.0
        %768 = vmatprep.subr.mxu0 0.0
        %769 = vmatpush2.msra.mxu0 0.0
        %770 = vmatprep.subr.mxu0 0.0
        %771 = vmatpush2.msra.mxu0 0.0
        %772 = vmatprep.mubr.f32.mxu0 0.0
        %773 = vmatmul.mubr.f32.gmra.mxu0 %v410
        %v774 = vpop.f32.mrf.mxu0
        %v775 = vadd.f32 %v662, %v774
        %v776 = vpop.f32.mrf.mxu0
        %v777 = vadd.f32 %v664, %v776
        %778 = vmatprep.mubr.f32.mxu0 0.0
        %779 = vmatmul.mubr.f32.gmra.mxu0 %v419
        %v780 = vpop.f32.mrf.mxu0
        %v781 = vadd.f32 %v668, %v780
        %v782 = vpop.f32.mrf.mxu0
        %v783 = vadd.f32 %v670, %v782
        %784 = vmatprep.mubr.f32.mxu0 0.0
        %785 = vmatmul.mubr.f32.gmra.mxu0 %v428
        %v786 = vpop.f32.mrf.mxu0
        %v787 = vadd.f32 %v674, %v786
        %v788 = vpop.f32.mrf.mxu0
        %v789 = vadd.f32 %v676, %v788
        %790 = vmatprep.mubr.f32.mxu0 0.0
        %791 = vmatmul.mubr.f32.gmra.mxu0 %v437
        %v792 = vpop.f32.mrf.mxu0
        %v793 = vadd.f32 %v680, %v792
        %v794 = vpop.f32.mrf.mxu0
        %v795 = vadd.f32 %v682, %v794
        %796 = vmatprep.mubr.f32.mxu0 0.0
        %797 = vmatmul.mubr.f32.gmra.mxu0 %v446
        %v798 = vpop.f32.mrf.mxu0
        %v799 = vadd.f32 %v686, %v798
        %v800 = vpop.f32.mrf.mxu0
        %v801 = vadd.f32 %v688, %v800
        %802 = vmatprep.mubr.f32.mxu0 0.0
        %803 = vmatmul.mubr.f32.gmra.mxu0 %v455
        %v804 = vpop.f32.mrf.mxu0
        %v805 = vadd.f32 %v692, %v804
        %v806 = vpop.f32.mrf.mxu0
        %v807 = vadd.f32 %v694, %v806
        %808 = vmatprep.mubr.f32.mxu0 0.0
        %809 = vmatmul.mubr.f32.gmra.mxu0 %v464
        %v810 = vpop.f32.mrf.mxu0
        %v811 = vadd.f32 %v698, %v810
        %v812 = vpop.f32.mrf.mxu0
        %v813 = vadd.f32 %v700, %v812
        %814 = vmatprep.mubr.f32.mxu0 0.0
        %815 = vmatmul.mubr.f32.gmra.mxu0 %v473
        %v816 = vpop.f32.mrf.mxu0
        %v817 = vadd.f32 %v704, %v816
        %v818 = vpop.f32.mrf.mxu0
        %v819 = vadd.f32 %v706, %v818
        %820 = vdwg.mxu0
        %821 = vmatprep.subr.mxu0 %v288
        %822 = vmatpush1.msra.mxu0 %v287
        %823 = vmatprep.subr.mxu0 %v286
        %824 = vmatpush1.msra.mxu0 %v285
        %825 = vmatprep.subr.mxu0 %v284
        %826 = vmatpush1.msra.mxu0 %v283
        %827 = vmatprep.subr.mxu0 %v282
        %828 = vmatpush1.msra.mxu0 %v281
        %829 = vmatprep.subr.mxu0 %v280
        %830 = vmatpush1.msra.mxu0 %v279
        %831 = vmatprep.subr.mxu0 %v278
        %832 = vmatpush1.msra.mxu0 %v277
        %833 = vmatprep.subr.mxu0 %v276
        %834 = vmatpush1.msra.mxu0 %v275
        %835 = vmatprep.subr.mxu0 %v274
        %836 = vmatpush1.msra.mxu0 %v273
        %837 = vmatprep.subr.mxu0 %v272
        %838 = vmatpush1.msra.mxu0 %v271
        %839 = vmatprep.subr.mxu0 %v270
        %840 = vmatpush1.msra.mxu0 %v269
        %841 = vmatprep.subr.mxu0 %v268
        %842 = vmatpush1.msra.mxu0 %v267
        %843 = vmatprep.subr.mxu0 %v266
        %844 = vmatpush1.msra.mxu0 %v265
        %845 = vmatprep.subr.mxu0 %v264
        %846 = vmatpush1.msra.mxu0 %v263
        %847 = vmatprep.subr.mxu0 %v262
        %848 = vmatpush1.msra.mxu0 %v261
        %849 = vmatprep.subr.mxu0 %v260
        %850 = vmatpush1.msra.mxu0 %v259
        %851 = vmatprep.subr.mxu0 %v258
        %852 = vmatpush1.msra.mxu0 %v257
        %853 = vmatprep.subr.mxu0 %v320
        %854 = vmatpush2.msra.mxu0 %v319
        %855 = vmatprep.subr.mxu0 %v318
        %856 = vmatpush2.msra.mxu0 %v317
        %857 = vmatprep.subr.mxu0 %v316
        %858 = vmatpush2.msra.mxu0 %v315
        %859 = vmatprep.subr.mxu0 %v314
        %860 = vmatpush2.msra.mxu0 %v313
        %861 = vmatprep.subr.mxu0 %v312
        %862 = vmatpush2.msra.mxu0 %v311
        %863 = vmatprep.subr.mxu0 %v310
        %864 = vmatpush2.msra.mxu0 %v309
        %865 = vmatprep.subr.mxu0 %v308
        %866 = vmatpush2.msra.mxu0 %v307
        %867 = vmatprep.subr.mxu0 %v306
        %868 = vmatpush2.msra.mxu0 %v305
        %869 = vmatprep.subr.mxu0 %v304
        %870 = vmatpush2.msra.mxu0 %v303
        %871 = vmatprep.subr.mxu0 %v302
        %872 = vmatpush2.msra.mxu0 %v301
        %873 = vmatprep.subr.mxu0 %v300
        %874 = vmatpush2.msra.mxu0 %v299
        %875 = vmatprep.subr.mxu0 %v298
        %876 = vmatpush2.msra.mxu0 %v297
        %877 = vmatprep.subr.mxu0 %v296
        %878 = vmatpush2.msra.mxu0 %v295
        %879 = vmatprep.subr.mxu0 %v294
        %880 = vmatpush2.msra.mxu0 %v293
        %881 = vmatprep.subr.mxu0 %v292
        %882 = vmatpush2.msra.mxu0 %v291
        %883 = vmatprep.subr.mxu0 %v290
        %884 = vmatpush2.msra.mxu0 %v289
        %885 = vmatprep.mubr.f32.mxu0 %v198
        %886 = vmatmul.mubr.f32.gmra.mxu0 %v197
        %v887 = vpop.f32.mrf.mxu0
        %v888 = vadd.f32 %v775, %v887
        %v889 = vpop.f32.mrf.mxu0
        %v890 = vadd.f32 %v777, %v889
        %891 = vmatprep.mubr.f32.mxu0 %v204
        %892 = vmatmul.mubr.f32.gmra.mxu0 %v203
        %v893 = vpop.f32.mrf.mxu0
        %v894 = vadd.f32 %v781, %v893
        %v895 = vpop.f32.mrf.mxu0
        %v896 = vadd.f32 %v783, %v895
        %897 = vmatprep.mubr.f32.mxu0 %v210
        %898 = vmatmul.mubr.f32.gmra.mxu0 %v209
        %v899 = vpop.f32.mrf.mxu0
        %v900 = vadd.f32 %v787, %v899
        %v901 = vpop.f32.mrf.mxu0
        %v902 = vadd.f32 %v789, %v901
        %903 = vmatprep.mubr.f32.mxu0 %v216
        %904 = vmatmul.mubr.f32.gmra.mxu0 %v215
        %v905 = vpop.f32.mrf.mxu0
        %v906 = vadd.f32 %v793, %v905
        %v907 = vpop.f32.mrf.mxu0
        %v908 = vadd.f32 %v795, %v907
        %909 = vmatprep.mubr.f32.mxu0 %v222
        %910 = vmatmul.mubr.f32.gmra.mxu0 %v221
        %v911 = vpop.f32.mrf.mxu0
        %v912 = vadd.f32 %v799, %v911
        %v913 = vpop.f32.mrf.mxu0
        %v914 = vadd.f32 %v801, %v913
        %915 = vmatprep.mubr.f32.mxu0 %v228
        %916 = vmatmul.mubr.f32.gmra.mxu0 %v227
        %v917 = vpop.f32.mrf.mxu0
        %v918 = vadd.f32 %v805, %v917
        %v919 = vpop.f32.mrf.mxu0
        %v920 = vadd.f32 %v807, %v919
        %921 = vmatprep.mubr.f32.mxu0 %v234
        %922 = vmatmul.mubr.f32.gmra.mxu0 %v233
        %v923 = vpop.f32.mrf.mxu0
        %v924 = vadd.f32 %v811, %v923
        %v925 = vpop.f32.mrf.mxu0
        %v926 = vadd.f32 %v813, %v925
        %927 = vmatprep.mubr.f32.mxu0 %v240
        %928 = vmatmul.mubr.f32.gmra.mxu0 %v239
        %v929 = vpop.f32.mrf.mxu0
        %v930 = vadd.f32 %v817, %v929
        %v931 = vpop.f32.mrf.mxu0
        %v932 = vadd.f32 %v819, %v931
        %933 = vdwg.mxu0
        %934 = vmatprep.subr.mxu0 %v352
        %935 = vmatpush1.msra.mxu0 %v351
        %936 = vmatprep.subr.mxu0 %v350
        %937 = vmatpush1.msra.mxu0 %v349
        %938 = vmatprep.subr.mxu0 %v348
        %939 = vmatpush1.msra.mxu0 %v347
        %940 = vmatprep.subr.mxu0 %v346
        %941 = vmatpush1.msra.mxu0 %v345
        %942 = vmatprep.subr.mxu0 %v344
        %943 = vmatpush1.msra.mxu0 %v343
        %944 = vmatprep.subr.mxu0 %v342
        %945 = vmatpush1.msra.mxu0 %v341
        %946 = vmatprep.subr.mxu0 %v340
        %947 = vmatpush1.msra.mxu0 %v339
        %948 = vmatprep.subr.mxu0 %v338
        %949 = vmatpush1.msra.mxu0 %v337
        %950 = vmatprep.subr.mxu0 %v336
        %951 = vmatpush1.msra.mxu0 %v335
        %952 = vmatprep.subr.mxu0 %v334
        %953 = vmatpush1.msra.mxu0 %v333
        %954 = vmatprep.subr.mxu0 %v332
        %955 = vmatpush1.msra.mxu0 %v331
        %956 = vmatprep.subr.mxu0 %v330
        %957 = vmatpush1.msra.mxu0 %v329
        %958 = vmatprep.subr.mxu0 %v328
        %959 = vmatpush1.msra.mxu0 %v327
        %960 = vmatprep.subr.mxu0 %v326
        %961 = vmatpush1.msra.mxu0 %v325
        %962 = vmatprep.subr.mxu0 %v324
        %963 = vmatpush1.msra.mxu0 %v323
        %964 = vmatprep.subr.mxu0 %v322
        %965 = vmatpush1.msra.mxu0 %v321
        %966 = vmatprep.subr.mxu0 0.0
        %967 = vmatpush2.msra.mxu0 0.0
        %968 = vmatprep.subr.mxu0 0.0
        %969 = vmatpush2.msra.mxu0 0.0
        %970 = vmatprep.subr.mxu0 0.0
        %971 = vmatpush2.msra.mxu0 0.0
        %972 = vmatprep.subr.mxu0 0.0
        %973 = vmatpush2.msra.mxu0 0.0
        %974 = vmatprep.subr.mxu0 0.0
        %975 = vmatpush2.msra.mxu0 0.0
        %976 = vmatprep.subr.mxu0 0.0
        %977 = vmatpush2.msra.mxu0 0.0
        %978 = vmatprep.subr.mxu0 0.0
        %979 = vmatpush2.msra.mxu0 0.0
        %980 = vmatprep.subr.mxu0 0.0
        %981 = vmatpush2.msra.mxu0 0.0
        %982 = vmatprep.subr.mxu0 0.0
        %983 = vmatpush2.msra.mxu0 0.0
        %984 = vmatprep.subr.mxu0 0.0
        %985 = vmatpush2.msra.mxu0 0.0
        %986 = vmatprep.subr.mxu0 0.0
        %987 = vmatpush2.msra.mxu0 0.0
        %988 = vmatprep.subr.mxu0 0.0
        %989 = vmatpush2.msra.mxu0 0.0
        %990 = vmatprep.subr.mxu0 0.0
        %991 = vmatpush2.msra.mxu0 0.0
        %992 = vmatprep.subr.mxu0 0.0
        %993 = vmatpush2.msra.mxu0 0.0
        %994 = vmatprep.subr.mxu0 0.0
        %995 = vmatpush2.msra.mxu0 0.0
        %996 = vmatprep.subr.mxu0 0.0
        %997 = vmatpush2.msra.mxu0 0.0
        %998 = vmatprep.mubr.f32.mxu0 0.0
        %999 = vmatmul.mubr.f32.gmra.mxu0 %v199
        %v1000 = vpop.f32.mrf.mxu0
        %v1001 = vadd.f32 %v888, %v1000
        %v1002 = vpop.f32.mrf.mxu0
        %v1003 = vadd.f32 %v890, %v1002
        %1004 = vmatprep.mubr.f32.mxu0 0.0
        %1005 = vmatmul.mubr.f32.gmra.mxu0 %v205
        %v1006 = vpop.f32.mrf.mxu0
        %v1007 = vadd.f32 %v894, %v1006
        %v1008 = vpop.f32.mrf.mxu0
        %v1009 = vadd.f32 %v896, %v1008
        %1010 = vmatprep.mubr.f32.mxu0 0.0
        %1011 = vmatmul.mubr.f32.gmra.mxu0 %v211
        %v1012 = vpop.f32.mrf.mxu0
        %v1013 = vadd.f32 %v900, %v1012
        %v1014 = vpop.f32.mrf.mxu0
        %v1015 = vadd.f32 %v902, %v1014
        %1016 = vmatprep.mubr.f32.mxu0 0.0
        %1017 = vmatmul.mubr.f32.gmra.mxu0 %v217
        %v1018 = vpop.f32.mrf.mxu0
        %v1019 = vadd.f32 %v906, %v1018
        %v1020 = vpop.f32.mrf.mxu0
        %v1021 = vadd.f32 %v908, %v1020
        %1022 = vmatprep.mubr.f32.mxu0 0.0
        %1023 = vmatmul.mubr.f32.gmra.mxu0 %v223
        %v1024 = vpop.f32.mrf.mxu0
        %v1025 = vadd.f32 %v912, %v1024
        %v1026 = vpop.f32.mrf.mxu0
        %v1027 = vadd.f32 %v914, %v1026
        %1028 = vmatprep.mubr.f32.mxu0 0.0
        %1029 = vmatmul.mubr.f32.gmra.mxu0 %v229
        %v1030 = vpop.f32.mrf.mxu0
        %v1031 = vadd.f32 %v918, %v1030
        %v1032 = vpop.f32.mrf.mxu0
        %v1033 = vadd.f32 %v920, %v1032
        %1034 = vmatprep.mubr.f32.mxu0 0.0
        %1035 = vmatmul.mubr.f32.gmra.mxu0 %v235
        %v1036 = vpop.f32.mrf.mxu0
        %v1037 = vadd.f32 %v924, %v1036
        %v1038 = vpop.f32.mrf.mxu0
        %v1039 = vadd.f32 %v926, %v1038
        %1040 = vmatprep.mubr.f32.mxu0 0.0
        %1041 = vmatmul.mubr.f32.gmra.mxu0 %v241
        %v1042 = vpop.f32.mrf.mxu0
        %v1043 = vadd.f32 %v930, %v1042
        %v1044 = vpop.f32.mrf.mxu0
        %v1045 = vadd.f32 %v932, %v1044
        %1046 = vdwg.mxu0
        %vm1047 = vcmask 1045504
        %v1048 = vrot.slane %v197, 2
        %v1049 = vrot.slane %v200, 2
        %v1050 = vsel %vm1047, %v1048, %v1049
        %v1051 = vrot.slane %v198, 2
        %v1052 = vrot.slane %v201, 2
        %v1053 = vsel %vm1047, %v1051, %v1052
        %v1054 = vrot.slane %v199, 2
        %v1055 = vrot.slane %v202, 2
        %v1056 = vsel %vm1047, %v1054, %v1055
        %v1057 = vrot.slane %v203, 2
        %v1058 = vrot.slane %v206, 2
        %v1059 = vsel %vm1047, %v1057, %v1058
        %v1060 = vrot.slane %v204, 2
        %v1061 = vrot.slane %v207, 2
        %v1062 = vsel %vm1047, %v1060, %v1061
        %v1063 = vrot.slane %v205, 2
        %v1064 = vrot.slane %v208, 2
        %v1065 = vsel %vm1047, %v1063, %v1064
        %v1066 = vrot.slane %v209, 2
        %v1067 = vrot.slane %v212, 2
        %v1068 = vsel %vm1047, %v1066, %v1067
        %v1069 = vrot.slane %v210, 2
        %v1070 = vrot.slane %v213, 2
        %v1071 = vsel %vm1047, %v1069, %v1070
        %v1072 = vrot.slane %v211, 2
        %v1073 = vrot.slane %v214, 2
        %v1074 = vsel %vm1047, %v1072, %v1073
        %v1075 = vrot.slane %v215, 2
        %v1076 = vrot.slane %v218, 2
        %v1077 = vsel %vm1047, %v1075, %v1076
        %v1078 = vrot.slane %v216, 2
        %v1079 = vrot.slane %v219, 2
        %v1080 = vsel %vm1047, %v1078, %v1079
        %v1081 = vrot.slane %v217, 2
        %v1082 = vrot.slane %v220, 2
        %v1083 = vsel %vm1047, %v1081, %v1082
        %v1084 = vrot.slane %v221, 2
        %v1085 = vrot.slane %v224, 2
        %v1086 = vsel %vm1047, %v1084, %v1085
        %v1087 = vrot.slane %v222, 2
        %v1088 = vrot.slane %v225, 2
        %v1089 = vsel %vm1047, %v1087, %v1088
        %v1090 = vrot.slane %v223, 2
        %v1091 = vrot.slane %v226, 2
        %v1092 = vsel %vm1047, %v1090, %v1091
        %v1093 = vrot.slane %v227, 2
        %v1094 = vrot.slane %v230, 2
        %v1095 = vsel %vm1047, %v1093, %v1094
        %v1096 = vrot.slane %v228, 2
        %v1097 = vrot.slane %v231, 2
        %v1098 = vsel %vm1047, %v1096, %v1097
        %v1099 = vrot.slane %v229, 2
        %v1100 = vrot.slane %v232, 2
        %v1101 = vsel %vm1047, %v1099, %v1100
        %v1102 = vrot.slane %v233, 2
        %v1103 = vrot.slane %v236, 2
        %v1104 = vsel %vm1047, %v1102, %v1103
        %v1105 = vrot.slane %v234, 2
        %v1106 = vrot.slane %v237, 2
        %v1107 = vsel %vm1047, %v1105, %v1106
        %v1108 = vrot.slane %v235, 2
        %v1109 = vrot.slane %v238, 2
        %v1110 = vsel %vm1047, %v1108, %v1109
        %v1111 = vrot.slane %v239, 2
        %v1112 = vrot.slane %v242, 2
        %v1113 = vsel %vm1047, %v1111, %v1112
        %v1114 = vrot.slane %v240, 2
        %v1115 = vrot.slane %v243, 2
        %v1116 = vsel %vm1047, %v1114, %v1115
        %v1117 = vrot.slane %v241, 2
        %v1118 = vrot.slane %v244, 2
        %v1119 = vsel %vm1047, %v1117, %v1118
        %s1144 = scalar_lea.vmem [#allocation2], 1536
        %v1145 = vld [vmem:[%s1144] sm:$0xff]
        %v1146 = vld [vmem:[%s1144 + $0x8] sm:$0xff]
        %v1147 = vld [vmem:[%s1144 + $0x10] sm:$0xff]
        %v1148 = vld [vmem:[%s1144 + $0x18] sm:$0xff]
        %v1149 = vld [vmem:[%s1144 + $0x20] sm:$0xff]
        %v1150 = vld [vmem:[%s1144 + $0x28] sm:$0xff]
        %v1151 = vld [vmem:[%s1144 + $0x30] sm:$0xff]
        %v1152 = vld [vmem:[%s1144 + $0x38] sm:$0xff]
        %v1153 = vld [vmem:[%s1144 + $0x40] sm:$0xff]
        %v1154 = vld [vmem:[%s1144 + $0x48] sm:$0xff]
        %v1155 = vld [vmem:[%s1144 + $0x50] sm:$0xff]
        %v1156 = vld [vmem:[%s1144 + $0x58] sm:$0xff]
        %v1157 = vld [vmem:[%s1144 + $0x60] sm:$0xff]
        %v1158 = vld [vmem:[%s1144 + $0x68] sm:$0xff]
        %v1159 = vld [vmem:[%s1144 + $0x70] sm:$0xff]
        %v1160 = vld [vmem:[%s1144 + $0x78] sm:$0xff]
        %v1161 = vld [vmem:[%s1144 + $0x80] sm:$0xff]
        %v1162 = vld [vmem:[%s1144 + $0x88] sm:$0xff]
        %v1163 = vld [vmem:[%s1144 + $0x90] sm:$0xff]
        %v1164 = vld [vmem:[%s1144 + $0x98] sm:$0xff]
        %v1165 = vld [vmem:[%s1144 + $0xa0] sm:$0xff]
        %v1166 = vld [vmem:[%s1144 + $0xa8] sm:$0xff]
        %v1167 = vld [vmem:[%s1144 + $0xb0] sm:$0xff]
        %v1168 = vld [vmem:[%s1144 + $0xb8] sm:$0xff]
        %v1169 = vld [vmem:[%s1144 + $0xc0] sm:$0xff]
        %v1170 = vld [vmem:[%s1144 + $0xc8] sm:$0xff]
        %v1171 = vld [vmem:[%s1144 + $0xd0] sm:$0xff]
        %v1172 = vld [vmem:[%s1144 + $0xd8] sm:$0xff]
        %v1173 = vld [vmem:[%s1144 + $0xe0] sm:$0xff]
        %v1174 = vld [vmem:[%s1144 + $0xe8] sm:$0xff]
        %v1175 = vld [vmem:[%s1144 + $0xf0] sm:$0xff]
        %v1176 = vld [vmem:[%s1144 + $0xf8] sm:$0xff]
        %v1177 = vld [vmem:[%s1144 + $0x100] sm:$0xff]
        %v1178 = vld [vmem:[%s1144 + $0x108] sm:$0xff]
        %v1179 = vld [vmem:[%s1144 + $0x110] sm:$0xff]
        %v1180 = vld [vmem:[%s1144 + $0x118] sm:$0xff]
        %v1181 = vld [vmem:[%s1144 + $0x120] sm:$0xff]
        %v1182 = vld [vmem:[%s1144 + $0x128] sm:$0xff]
        %v1183 = vld [vmem:[%s1144 + $0x130] sm:$0xff]
        %v1184 = vld [vmem:[%s1144 + $0x138] sm:$0xff]
        %v1185 = vld [vmem:[%s1144 + $0x140] sm:$0xff]
        %v1186 = vld [vmem:[%s1144 + $0x148] sm:$0xff]
        %v1187 = vld [vmem:[%s1144 + $0x150] sm:$0xff]
        %v1188 = vld [vmem:[%s1144 + $0x158] sm:$0xff]
        %v1189 = vld [vmem:[%s1144 + $0x160] sm:$0xff]
        %v1190 = vld [vmem:[%s1144 + $0x168] sm:$0xff]
        %v1191 = vld [vmem:[%s1144 + $0x170] sm:$0xff]
        %v1192 = vld [vmem:[%s1144 + $0x178] sm:$0xff]
        %v1193 = vld [vmem:[%s1144 + $0x180] sm:$0xff]
        %v1194 = vld [vmem:[%s1144 + $0x188] sm:$0xff]
        %v1195 = vld [vmem:[%s1144 + $0x190] sm:$0xff]
        %v1196 = vld [vmem:[%s1144 + $0x198] sm:$0xff]
        %v1197 = vld [vmem:[%s1144 + $0x1a0] sm:$0xff]
        %v1198 = vld [vmem:[%s1144 + $0x1a8] sm:$0xff]
        %v1199 = vld [vmem:[%s1144 + $0x1b0] sm:$0xff]
        %v1200 = vld [vmem:[%s1144 + $0x1b8] sm:$0xff]
        %v1201 = vld [vmem:[%s1144 + $0x1c0] sm:$0xff]
        %v1202 = vld [vmem:[%s1144 + $0x1c8] sm:$0xff]
        %v1203 = vld [vmem:[%s1144 + $0x1d0] sm:$0xff]
        %v1204 = vld [vmem:[%s1144 + $0x1d8] sm:$0xff]
        %v1205 = vld [vmem:[%s1144 + $0x1e0] sm:$0xff]
        %v1206 = vld [vmem:[%s1144 + $0x1e8] sm:$0xff]
        %v1207 = vld [vmem:[%s1144 + $0x1f0] sm:$0xff]
        %v1208 = vld [vmem:[%s1144 + $0x1f8] sm:$0xff]
        %v1209 = vld [vmem:[%s1144 + $0x200] sm:$0xff]
        %v1210 = vld [vmem:[%s1144 + $0x208] sm:$0xff]
        %v1211 = vld [vmem:[%s1144 + $0x210] sm:$0xff]
        %v1212 = vld [vmem:[%s1144 + $0x218] sm:$0xff]
        %v1213 = vld [vmem:[%s1144 + $0x220] sm:$0xff]
        %v1214 = vld [vmem:[%s1144 + $0x228] sm:$0xff]
        %v1215 = vld [vmem:[%s1144 + $0x230] sm:$0xff]
        %v1216 = vld [vmem:[%s1144 + $0x238] sm:$0xff]
        %v1217 = vld [vmem:[%s1144 + $0x240] sm:$0xff]
        %v1218 = vld [vmem:[%s1144 + $0x248] sm:$0xff]
        %v1219 = vld [vmem:[%s1144 + $0x250] sm:$0xff]
        %v1220 = vld [vmem:[%s1144 + $0x258] sm:$0xff]
        %v1221 = vld [vmem:[%s1144 + $0x260] sm:$0xff]
        %v1222 = vld [vmem:[%s1144 + $0x268] sm:$0xff]
        %v1223 = vld [vmem:[%s1144 + $0x270] sm:$0xff]
        %v1224 = vld [vmem:[%s1144 + $0x278] sm:$0xff]
        %v1225 = vld [vmem:[%s1144 + $0x280] sm:$0xff]
        %v1226 = vld [vmem:[%s1144 + $0x288] sm:$0xff]
        %v1227 = vld [vmem:[%s1144 + $0x290] sm:$0xff]
        %v1228 = vld [vmem:[%s1144 + $0x298] sm:$0xff]
        %v1229 = vld [vmem:[%s1144 + $0x2a0] sm:$0xff]
        %v1230 = vld [vmem:[%s1144 + $0x2a8] sm:$0xff]
        %v1231 = vld [vmem:[%s1144 + $0x2b0] sm:$0xff]
        %v1232 = vld [vmem:[%s1144 + $0x2b8] sm:$0xff]
        %v1233 = vld [vmem:[%s1144 + $0x2c0] sm:$0xff]
        %v1234 = vld [vmem:[%s1144 + $0x2c8] sm:$0xff]
        %v1235 = vld [vmem:[%s1144 + $0x2d0] sm:$0xff]
        %v1236 = vld [vmem:[%s1144 + $0x2d8] sm:$0xff]
        %v1237 = vld [vmem:[%s1144 + $0x2e0] sm:$0xff]
        %v1238 = vld [vmem:[%s1144 + $0x2e8] sm:$0xff]
        %v1239 = vld [vmem:[%s1144 + $0x2f0] sm:$0xff]
        %v1240 = vld [vmem:[%s1144 + $0x2f8] sm:$0xff]
        %1241 = vmatprep.subr.mxu0 %v1176
        %1242 = vmatpush1.msra.mxu0 %v1175
        %1243 = vmatprep.subr.mxu0 %v1174
        %1244 = vmatpush1.msra.mxu0 %v1173
        %1245 = vmatprep.subr.mxu0 %v1172
        %1246 = vmatpush1.msra.mxu0 %v1171
        %1247 = vmatprep.subr.mxu0 %v1170
        %1248 = vmatpush1.msra.mxu0 %v1169
        %1249 = vmatprep.subr.mxu0 %v1168
        %1250 = vmatpush1.msra.mxu0 %v1167
        %1251 = vmatprep.subr.mxu0 %v1166
        %1252 = vmatpush1.msra.mxu0 %v1165
        %1253 = vmatprep.subr.mxu0 %v1164
        %1254 = vmatpush1.msra.mxu0 %v1163
        %1255 = vmatprep.subr.mxu0 %v1162
        %1256 = vmatpush1.msra.mxu0 %v1161
        %1257 = vmatprep.subr.mxu0 %v1160
        %1258 = vmatpush1.msra.mxu0 %v1159
        %1259 = vmatprep.subr.mxu0 %v1158
        %1260 = vmatpush1.msra.mxu0 %v1157
        %1261 = vmatprep.subr.mxu0 %v1156
        %1262 = vmatpush1.msra.mxu0 %v1155
        %1263 = vmatprep.subr.mxu0 %v1154
        %1264 = vmatpush1.msra.mxu0 %v1153
        %1265 = vmatprep.subr.mxu0 %v1152
        %1266 = vmatpush1.msra.mxu0 %v1151
        %1267 = vmatprep.subr.mxu0 %v1150
        %1268 = vmatpush1.msra.mxu0 %v1149
        %1269 = vmatprep.subr.mxu0 %v1148
        %1270 = vmatpush1.msra.mxu0 %v1147
        %1271 = vmatprep.subr.mxu0 %v1146
        %1272 = vmatpush1.msra.mxu0 %v1145
        %1273 = vmatprep.subr.mxu0 %v1208
        %1274 = vmatpush2.msra.mxu0 %v1207
        %1275 = vmatprep.subr.mxu0 %v1206
        %1276 = vmatpush2.msra.mxu0 %v1205
        %1277 = vmatprep.subr.mxu0 %v1204
        %1278 = vmatpush2.msra.mxu0 %v1203
        %1279 = vmatprep.subr.mxu0 %v1202
        %1280 = vmatpush2.msra.mxu0 %v1201
        %1281 = vmatprep.subr.mxu0 %v1200
        %1282 = vmatpush2.msra.mxu0 %v1199
        %1283 = vmatprep.subr.mxu0 %v1198
        %1284 = vmatpush2.msra.mxu0 %v1197
        %1285 = vmatprep.subr.mxu0 %v1196
        %1286 = vmatpush2.msra.mxu0 %v1195
        %1287 = vmatprep.subr.mxu0 %v1194
        %1288 = vmatpush2.msra.mxu0 %v1193
        %1289 = vmatprep.subr.mxu0 %v1192
        %1290 = vmatpush2.msra.mxu0 %v1191
        %1291 = vmatprep.subr.mxu0 %v1190
        %1292 = vmatpush2.msra.mxu0 %v1189
        %1293 = vmatprep.subr.mxu0 %v1188
        %1294 = vmatpush2.msra.mxu0 %v1187
        %1295 = vmatprep.subr.mxu0 %v1186
        %1296 = vmatpush2.msra.mxu0 %v1185
        %1297 = vmatprep.subr.mxu0 %v1184
        %1298 = vmatpush2.msra.mxu0 %v1183
        %1299 = vmatprep.subr.mxu0 %v1182
        %1300 = vmatpush2.msra.mxu0 %v1181
        %1301 = vmatprep.subr.mxu0 %v1180
        %1302 = vmatpush2.msra.mxu0 %v1179
        %1303 = vmatprep.subr.mxu0 %v1178
        %1304 = vmatpush2.msra.mxu0 %v1177
        %1305 = vmatprep.mubr.f32.mxu0 %v1053
        %1306 = vmatmul.mubr.f32.gmra.mxu0 %v1050
        %v1307 = vpop.f32.mrf.mxu0
        %v1308 = vadd.f32 0.0, %v1307
        %v1309 = vpop.f32.mrf.mxu0
        %v1310 = vadd.f32 0.0, %v1309
        %1311 = vmatprep.mubr.f32.mxu0 %v1062
        %1312 = vmatmul.mubr.f32.gmra.mxu0 %v1059
        %v1313 = vpop.f32.mrf.mxu0
        %v1314 = vadd.f32 0.0, %v1313
        %v1315 = vpop.f32.mrf.mxu0
        %v1316 = vadd.f32 0.0, %v1315
        %1317 = vmatprep.mubr.f32.mxu0 %v1071
        %1318 = vmatmul.mubr.f32.gmra.mxu0 %v1068
        %v1319 = vpop.f32.mrf.mxu0
        %v1320 = vadd.f32 0.0, %v1319
        %v1321 = vpop.f32.mrf.mxu0
        %v1322 = vadd.f32 0.0, %v1321
        %1323 = vmatprep.mubr.f32.mxu0 %v1080
        %1324 = vmatmul.mubr.f32.gmra.mxu0 %v1077
        %v1325 = vpop.f32.mrf.mxu0
        %v1326 = vadd.f32 0.0, %v1325
        %v1327 = vpop.f32.mrf.mxu0
        %v1328 = vadd.f32 0.0, %v1327
        %1329 = vmatprep.mubr.f32.mxu0 %v1089
        %1330 = vmatmul.mubr.f32.gmra.mxu0 %v1086
        %v1331 = vpop.f32.mrf.mxu0
        %v1332 = vadd.f32 0.0, %v1331
        %v1333 = vpop.f32.mrf.mxu0
        %v1334 = vadd.f32 0.0, %v1333
        %1335 = vmatprep.mubr.f32.mxu0 %v1098
        %1336 = vmatmul.mubr.f32.gmra.mxu0 %v1095
        %v1337 = vpop.f32.mrf.mxu0
        %v1338 = vadd.f32 0.0, %v1337
        %v1339 = vpop.f32.mrf.mxu0
        %v1340 = vadd.f32 0.0, %v1339
        %1341 = vmatprep.mubr.f32.mxu0 %v1107
        %1342 = vmatmul.mubr.f32.gmra.mxu0 %v1104
        %v1343 = vpop.f32.mrf.mxu0
        %v1344 = vadd.f32 0.0, %v1343
        %v1345 = vpop.f32.mrf.mxu0
        %v1346 = vadd.f32 0.0, %v1345
        %1347 = vmatprep.mubr.f32.mxu0 %v1116
        %1348 = vmatmul.mubr.f32.gmra.mxu0 %v1113
        %v1349 = vpop.f32.mrf.mxu0
        %v1350 = vadd.f32 0.0, %v1349
        %v1351 = vpop.f32.mrf.mxu0
        %v1352 = vadd.f32 0.0, %v1351
        %1353 = vdwg.mxu0
        %1354 = vmatprep.subr.mxu0 %v1240
        %1355 = vmatpush1.msra.mxu0 %v1239
        %1356 = vmatprep.subr.mxu0 %v1238
        %1357 = vmatpush1.msra.mxu0 %v1237
        %1358 = vmatprep.subr.mxu0 %v1236
        %1359 = vmatpush1.msra.mxu0 %v1235
        %1360 = vmatprep.subr.mxu0 %v1234
        %1361 = vmatpush1.msra.mxu0 %v1233
        %1362 = vmatprep.subr.mxu0 %v1232
        %1363 = vmatpush1.msra.mxu0 %v1231
        %1364 = vmatprep.subr.mxu0 %v1230
        %1365 = vmatpush1.msra.mxu0 %v1229
        %1366 = vmatprep.subr.mxu0 %v1228
        %1367 = vmatpush1.msra.mxu0 %v1227
        %1368 = vmatprep.subr.mxu0 %v1226
        %1369 = vmatpush1.msra.mxu0 %v1225
        %1370 = vmatprep.subr.mxu0 %v1224
        %1371 = vmatpush1.msra.mxu0 %v1223
        %1372 = vmatprep.subr.mxu0 %v1222
        %1373 = vmatpush1.msra.mxu0 %v1221
        %1374 = vmatprep.subr.mxu0 %v1220
        %1375 = vmatpush1.msra.mxu0 %v1219
        %1376 = vmatprep.subr.mxu0 %v1218
        %1377 = vmatpush1.msra.mxu0 %v1217
        %1378 = vmatprep.subr.mxu0 %v1216
        %1379 = vmatpush1.msra.mxu0 %v1215
        %1380 = vmatprep.subr.mxu0 %v1214
        %1381 = vmatpush1.msra.mxu0 %v1213
        %1382 = vmatprep.subr.mxu0 %v1212
        %1383 = vmatpush1.msra.mxu0 %v1211
        %1384 = vmatprep.subr.mxu0 %v1210
        %1385 = vmatpush1.msra.mxu0 %v1209
        %1386 = vmatprep.subr.mxu0 0.0
        %1387 = vmatpush2.msra.mxu0 0.0
        %1388 = vmatprep.subr.mxu0 0.0
        %1389 = vmatpush2.msra.mxu0 0.0
        %1390 = vmatprep.subr.mxu0 0.0
        %1391 = vmatpush2.msra.mxu0 0.0
        %1392 = vmatprep.subr.mxu0 0.0
        %1393 = vmatpush2.msra.mxu0 0.0
        %1394 = vmatprep.subr.mxu0 0.0
        %1395 = vmatpush2.msra.mxu0 0.0
        %1396 = vmatprep.subr.mxu0 0.0
        %1397 = vmatpush2.msra.mxu0 0.0
        %1398 = vmatprep.subr.mxu0 0.0
        %1399 = vmatpush2.msra.mxu0 0.0
        %1400 = vmatprep.subr.mxu0 0.0
        %1401 = vmatpush2.msra.mxu0 0.0
        %1402 = vmatprep.subr.mxu0 0.0
        %1403 = vmatpush2.msra.mxu0 0.0
        %1404 = vmatprep.subr.mxu0 0.0
        %1405 = vmatpush2.msra.mxu0 0.0
        %1406 = vmatprep.subr.mxu0 0.0
        %1407 = vmatpush2.msra.mxu0 0.0
        %1408 = vmatprep.subr.mxu0 0.0
        %1409 = vmatpush2.msra.mxu0 0.0
        %1410 = vmatprep.subr.mxu0 0.0
        %1411 = vmatpush2.msra.mxu0 0.0
        %1412 = vmatprep.subr.mxu0 0.0
        %1413 = vmatpush2.msra.mxu0 0.0
        %1414 = vmatprep.subr.mxu0 0.0
        %1415 = vmatpush2.msra.mxu0 0.0
        %1416 = vmatprep.subr.mxu0 0.0
        %1417 = vmatpush2.msra.mxu0 0.0
        %1418 = vmatprep.mubr.f32.mxu0 0.0
        %1419 = vmatmul.mubr.f32.gmra.mxu0 %v1056
        %v1420 = vpop.f32.mrf.mxu0
        %v1421 = vadd.f32 %v1308, %v1420
        %v1422 = vpop.f32.mrf.mxu0
        %v1423 = vadd.f32 %v1310, %v1422
        %1424 = vmatprep.mubr.f32.mxu0 0.0
        %1425 = vmatmul.mubr.f32.gmra.mxu0 %v1065
        %v1426 = vpop.f32.mrf.mxu0
        %v1427 = vadd.f32 %v1314, %v1426
        %v1428 = vpop.f32.mrf.mxu0
        %v1429 = vadd.f32 %v1316, %v1428
        %1430 = vmatprep.mubr.f32.mxu0 0.0
        %1431 = vmatmul.mubr.f32.gmra.mxu0 %v1074
        %v1432 = vpop.f32.mrf.mxu0
        %v1433 = vadd.f32 %v1320, %v1432
        %v1434 = vpop.f32.mrf.mxu0
        %v1435 = vadd.f32 %v1322, %v1434
        %1436 = vmatprep.mubr.f32.mxu0 0.0
        %1437 = vmatmul.mubr.f32.gmra.mxu0 %v1083
        %v1438 = vpop.f32.mrf.mxu0
        %v1439 = vadd.f32 %v1326, %v1438
        %v1440 = vpop.f32.mrf.mxu0
        %v1441 = vadd.f32 %v1328, %v1440
        %1442 = vmatprep.mubr.f32.mxu0 0.0
        %1443 = vmatmul.mubr.f32.gmra.mxu0 %v1092
        %v1444 = vpop.f32.mrf.mxu0
        %v1445 = vadd.f32 %v1332, %v1444
        %v1446 = vpop.f32.mrf.mxu0
        %v1447 = vadd.f32 %v1334, %v1446
        %1448 = vmatprep.mubr.f32.mxu0 0.0
        %1449 = vmatmul.mubr.f32.gmra.mxu0 %v1101
        %v1450 = vpop.f32.mrf.mxu0
        %v1451 = vadd.f32 %v1338, %v1450
        %v1452 = vpop.f32.mrf.mxu0
        %v1453 = vadd.f32 %v1340, %v1452
        %1454 = vmatprep.mubr.f32.mxu0 0.0
        %1455 = vmatmul.mubr.f32.gmra.mxu0 %v1110
        %v1456 = vpop.f32.mrf.mxu0
        %v1457 = vadd.f32 %v1344, %v1456
        %v1458 = vpop.f32.mrf.mxu0
        %v1459 = vadd.f32 %v1346, %v1458
        %1460 = vmatprep.mubr.f32.mxu0 0.0
        %1461 = vmatmul.mubr.f32.gmra.mxu0 %v1119
        %v1462 = vpop.f32.mrf.mxu0
        %v1463 = vadd.f32 %v1350, %v1462
        %v1464 = vpop.f32.mrf.mxu0
        %v1465 = vadd.f32 %v1352, %v1464
        %1466 = vdwg.mxu0
        %v1467 = vadd.f32 %v1001, %v1421
        %v1468 = vadd.f32 %v1003, %v1423
        %v1469 = vadd.f32 %v1007, %v1427
        %v1470 = vadd.f32 %v1009, %v1429
        %v1471 = vadd.f32 %v1013, %v1433
        %v1472 = vadd.f32 %v1015, %v1435
        %v1473 = vadd.f32 %v1019, %v1439
        %v1474 = vadd.f32 %v1021, %v1441
        %v1475 = vadd.f32 %v1025, %v1445
        %v1476 = vadd.f32 %v1027, %v1447
        %v1477 = vadd.f32 %v1031, %v1451
        %v1478 = vadd.f32 %v1033, %v1453
        %v1479 = vadd.f32 %v1037, %v1457
        %v1480 = vadd.f32 %v1039, %v1459
        %v1481 = vadd.f32 %v1043, %v1463
        %v1482 = vadd.f32 %v1045, %v1465
        %s1483 = scalar_lea.vmem [#allocation2], 2304
        %v1484 = vld [vmem:[%s1483] sm:$0xff]
        %v1485 = vld [vmem:[%s1483 + $0x8] sm:$0xff]
        %v1486 = vld [vmem:[%s1483 + $0x10] sm:$0xff]
        %v1487 = vld [vmem:[%s1483 + $0x18] sm:$0xff]
        %v1488 = vld [vmem:[%s1483 + $0x20] sm:$0xff]
        %v1489 = vld [vmem:[%s1483 + $0x28] sm:$0xff]
        %v1490 = vld [vmem:[%s1483 + $0x30] sm:$0xff]
        %v1491 = vld [vmem:[%s1483 + $0x38] sm:$0xff]
        %v1492 = vld [vmem:[%s1483 + $0x40] sm:$0xff]
        %v1493 = vld [vmem:[%s1483 + $0x48] sm:$0xff]
        %v1494 = vld [vmem:[%s1483 + $0x50] sm:$0xff]
        %v1495 = vld [vmem:[%s1483 + $0x58] sm:$0xff]
        %v1496 = vld [vmem:[%s1483 + $0x60] sm:$0xff]
        %v1497 = vld [vmem:[%s1483 + $0x68] sm:$0xff]
        %v1498 = vld [vmem:[%s1483 + $0x70] sm:$0xff]
        %v1499 = vld [vmem:[%s1483 + $0x78] sm:$0xff]
        %v1500 = vld [vmem:[%s1483 + $0x80] sm:$0xff]
        %v1501 = vld [vmem:[%s1483 + $0x88] sm:$0xff]
        %v1502 = vld [vmem:[%s1483 + $0x90] sm:$0xff]
        %v1503 = vld [vmem:[%s1483 + $0x98] sm:$0xff]
        %v1504 = vld [vmem:[%s1483 + $0xa0] sm:$0xff]
        %v1505 = vld [vmem:[%s1483 + $0xa8] sm:$0xff]
        %v1506 = vld [vmem:[%s1483 + $0xb0] sm:$0xff]
        %v1507 = vld [vmem:[%s1483 + $0xb8] sm:$0xff]
        %v1508 = vld [vmem:[%s1483 + $0xc0] sm:$0xff]
        %v1509 = vld [vmem:[%s1483 + $0xc8] sm:$0xff]
        %v1510 = vld [vmem:[%s1483 + $0xd0] sm:$0xff]
        %v1511 = vld [vmem:[%s1483 + $0xd8] sm:$0xff]
        %v1512 = vld [vmem:[%s1483 + $0xe0] sm:$0xff]
        %v1513 = vld [vmem:[%s1483 + $0xe8] sm:$0xff]
        %v1514 = vld [vmem:[%s1483 + $0xf0] sm:$0xff]
        %v1515 = vld [vmem:[%s1483 + $0xf8] sm:$0xff]
        %v1516 = vld [vmem:[%s1483 + $0x100] sm:$0xff]
        %v1517 = vld [vmem:[%s1483 + $0x108] sm:$0xff]
        %v1518 = vld [vmem:[%s1483 + $0x110] sm:$0xff]
        %v1519 = vld [vmem:[%s1483 + $0x118] sm:$0xff]
        %v1520 = vld [vmem:[%s1483 + $0x120] sm:$0xff]
        %v1521 = vld [vmem:[%s1483 + $0x128] sm:$0xff]
        %v1522 = vld [vmem:[%s1483 + $0x130] sm:$0xff]
        %v1523 = vld [vmem:[%s1483 + $0x138] sm:$0xff]
        %v1524 = vld [vmem:[%s1483 + $0x140] sm:$0xff]
        %v1525 = vld [vmem:[%s1483 + $0x148] sm:$0xff]
        %v1526 = vld [vmem:[%s1483 + $0x150] sm:$0xff]
        %v1527 = vld [vmem:[%s1483 + $0x158] sm:$0xff]
        %v1528 = vld [vmem:[%s1483 + $0x160] sm:$0xff]
        %v1529 = vld [vmem:[%s1483 + $0x168] sm:$0xff]
        %v1530 = vld [vmem:[%s1483 + $0x170] sm:$0xff]
        %v1531 = vld [vmem:[%s1483 + $0x178] sm:$0xff]
        %v1532 = vld [vmem:[%s1483 + $0x180] sm:$0xff]
        %v1533 = vld [vmem:[%s1483 + $0x188] sm:$0xff]
        %v1534 = vld [vmem:[%s1483 + $0x190] sm:$0xff]
        %v1535 = vld [vmem:[%s1483 + $0x198] sm:$0xff]
        %v1536 = vld [vmem:[%s1483 + $0x1a0] sm:$0xff]
        %v1537 = vld [vmem:[%s1483 + $0x1a8] sm:$0xff]
        %v1538 = vld [vmem:[%s1483 + $0x1b0] sm:$0xff]
        %v1539 = vld [vmem:[%s1483 + $0x1b8] sm:$0xff]
        %v1540 = vld [vmem:[%s1483 + $0x1c0] sm:$0xff]
        %v1541 = vld [vmem:[%s1483 + $0x1c8] sm:$0xff]
        %v1542 = vld [vmem:[%s1483 + $0x1d0] sm:$0xff]
        %v1543 = vld [vmem:[%s1483 + $0x1d8] sm:$0xff]
        %v1544 = vld [vmem:[%s1483 + $0x1e0] sm:$0xff]
        %v1545 = vld [vmem:[%s1483 + $0x1e8] sm:$0xff]
        %v1546 = vld [vmem:[%s1483 + $0x1f0] sm:$0xff]
        %v1547 = vld [vmem:[%s1483 + $0x1f8] sm:$0xff]
        %v1548 = vld [vmem:[%s1483 + $0x200] sm:$0xff]
        %v1549 = vld [vmem:[%s1483 + $0x208] sm:$0xff]
        %v1550 = vld [vmem:[%s1483 + $0x210] sm:$0xff]
        %v1551 = vld [vmem:[%s1483 + $0x218] sm:$0xff]
        %v1552 = vld [vmem:[%s1483 + $0x220] sm:$0xff]
        %v1553 = vld [vmem:[%s1483 + $0x228] sm:$0xff]
        %v1554 = vld [vmem:[%s1483 + $0x230] sm:$0xff]
        %v1555 = vld [vmem:[%s1483 + $0x238] sm:$0xff]
        %v1556 = vld [vmem:[%s1483 + $0x240] sm:$0xff]
        %v1557 = vld [vmem:[%s1483 + $0x248] sm:$0xff]
        %v1558 = vld [vmem:[%s1483 + $0x250] sm:$0xff]
        %v1559 = vld [vmem:[%s1483 + $0x258] sm:$0xff]
        %v1560 = vld [vmem:[%s1483 + $0x260] sm:$0xff]
        %v1561 = vld [vmem:[%s1483 + $0x268] sm:$0xff]
        %v1562 = vld [vmem:[%s1483 + $0x270] sm:$0xff]
        %v1563 = vld [vmem:[%s1483 + $0x278] sm:$0xff]
        %v1564 = vld [vmem:[%s1483 + $0x280] sm:$0xff]
        %v1565 = vld [vmem:[%s1483 + $0x288] sm:$0xff]
        %v1566 = vld [vmem:[%s1483 + $0x290] sm:$0xff]
        %v1567 = vld [vmem:[%s1483 + $0x298] sm:$0xff]
        %v1568 = vld [vmem:[%s1483 + $0x2a0] sm:$0xff]
        %v1569 = vld [vmem:[%s1483 + $0x2a8] sm:$0xff]
        %v1570 = vld [vmem:[%s1483 + $0x2b0] sm:$0xff]
        %v1571 = vld [vmem:[%s1483 + $0x2b8] sm:$0xff]
        %v1572 = vld [vmem:[%s1483 + $0x2c0] sm:$0xff]
        %v1573 = vld [vmem:[%s1483 + $0x2c8] sm:$0xff]
        %v1574 = vld [vmem:[%s1483 + $0x2d0] sm:$0xff]
        %v1575 = vld [vmem:[%s1483 + $0x2d8] sm:$0xff]
        %v1576 = vld [vmem:[%s1483 + $0x2e0] sm:$0xff]
        %v1577 = vld [vmem:[%s1483 + $0x2e8] sm:$0xff]
        %v1578 = vld [vmem:[%s1483 + $0x2f0] sm:$0xff]
        %v1579 = vld [vmem:[%s1483 + $0x2f8] sm:$0xff]
        %1580 = vmatprep.subr.mxu0 %v1515
        %1581 = vmatpush1.msra.mxu0 %v1514
        %1582 = vmatprep.subr.mxu0 %v1513
        %1583 = vmatpush1.msra.mxu0 %v1512
        %1584 = vmatprep.subr.mxu0 %v1511
        %1585 = vmatpush1.msra.mxu0 %v1510
        %1586 = vmatprep.subr.mxu0 %v1509
        %1587 = vmatpush1.msra.mxu0 %v1508
        %1588 = vmatprep.subr.mxu0 %v1507
        %1589 = vmatpush1.msra.mxu0 %v1506
        %1590 = vmatprep.subr.mxu0 %v1505
        %1591 = vmatpush1.msra.mxu0 %v1504
        %1592 = vmatprep.subr.mxu0 %v1503
        %1593 = vmatpush1.msra.mxu0 %v1502
        %1594 = vmatprep.subr.mxu0 %v1501
        %1595 = vmatpush1.msra.mxu0 %v1500
        %1596 = vmatprep.subr.mxu0 %v1499
        %1597 = vmatpush1.msra.mxu0 %v1498
        %1598 = vmatprep.subr.mxu0 %v1497
        %1599 = vmatpush1.msra.mxu0 %v1496
        %1600 = vmatprep.subr.mxu0 %v1495
        %1601 = vmatpush1.msra.mxu0 %v1494
        %1602 = vmatprep.subr.mxu0 %v1493
        %1603 = vmatpush1.msra.mxu0 %v1492
        %1604 = vmatprep.subr.mxu0 %v1491
        %1605 = vmatpush1.msra.mxu0 %v1490
        %1606 = vmatprep.subr.mxu0 %v1489
        %1607 = vmatpush1.msra.mxu0 %v1488
        %1608 = vmatprep.subr.mxu0 %v1487
        %1609 = vmatpush1.msra.mxu0 %v1486
        %1610 = vmatprep.subr.mxu0 %v1485
        %1611 = vmatpush1.msra.mxu0 %v1484
        %1612 = vmatprep.subr.mxu0 %v1547
        %1613 = vmatpush2.msra.mxu0 %v1546
        %1614 = vmatprep.subr.mxu0 %v1545
        %1615 = vmatpush2.msra.mxu0 %v1544
        %1616 = vmatprep.subr.mxu0 %v1543
        %1617 = vmatpush2.msra.mxu0 %v1542
        %1618 = vmatprep.subr.mxu0 %v1541
        %1619 = vmatpush2.msra.mxu0 %v1540
        %1620 = vmatprep.subr.mxu0 %v1539
        %1621 = vmatpush2.msra.mxu0 %v1538
        %1622 = vmatprep.subr.mxu0 %v1537
        %1623 = vmatpush2.msra.mxu0 %v1536
        %1624 = vmatprep.subr.mxu0 %v1535
        %1625 = vmatpush2.msra.mxu0 %v1534
        %1626 = vmatprep.subr.mxu0 %v1533
        %1627 = vmatpush2.msra.mxu0 %v1532
        %1628 = vmatprep.subr.mxu0 %v1531
        %1629 = vmatpush2.msra.mxu0 %v1530
        %1630 = vmatprep.subr.mxu0 %v1529
        %1631 = vmatpush2.msra.mxu0 %v1528
        %1632 = vmatprep.subr.mxu0 %v1527
        %1633 = vmatpush2.msra.mxu0 %v1526
        %1634 = vmatprep.subr.mxu0 %v1525
        %1635 = vmatpush2.msra.mxu0 %v1524
        %1636 = vmatprep.subr.mxu0 %v1523
        %1637 = vmatpush2.msra.mxu0 %v1522
        %1638 = vmatprep.subr.mxu0 %v1521
        %1639 = vmatpush2.msra.mxu0 %v1520
        %1640 = vmatprep.subr.mxu0 %v1519
        %1641 = vmatpush2.msra.mxu0 %v1518
        %1642 = vmatprep.subr.mxu0 %v1517
        %1643 = vmatpush2.msra.mxu0 %v1516
        %1644 = vmatprep.mubr.f32.mxu0 %v204
        %1645 = vmatmul.mubr.f32.gmra.mxu0 %v203
        %v1646 = vpop.f32.mrf.mxu0
        %v1647 = vadd.f32 0.0, %v1646
        %v1648 = vpop.f32.mrf.mxu0
        %v1649 = vadd.f32 0.0, %v1648
        %1650 = vmatprep.mubr.f32.mxu0 %v210
        %1651 = vmatmul.mubr.f32.gmra.mxu0 %v209
        %v1652 = vpop.f32.mrf.mxu0
        %v1653 = vadd.f32 0.0, %v1652
        %v1654 = vpop.f32.mrf.mxu0
        %v1655 = vadd.f32 0.0, %v1654
        %1656 = vmatprep.mubr.f32.mxu0 %v216
        %1657 = vmatmul.mubr.f32.gmra.mxu0 %v215
        %v1658 = vpop.f32.mrf.mxu0
        %v1659 = vadd.f32 0.0, %v1658
        %v1660 = vpop.f32.mrf.mxu0
        %v1661 = vadd.f32 0.0, %v1660
        %1662 = vmatprep.mubr.f32.mxu0 %v222
        %1663 = vmatmul.mubr.f32.gmra.mxu0 %v221
        %v1664 = vpop.f32.mrf.mxu0
        %v1665 = vadd.f32 0.0, %v1664
        %v1666 = vpop.f32.mrf.mxu0
        %v1667 = vadd.f32 0.0, %v1666
        %1668 = vmatprep.mubr.f32.mxu0 %v228
        %1669 = vmatmul.mubr.f32.gmra.mxu0 %v227
        %v1670 = vpop.f32.mrf.mxu0
        %v1671 = vadd.f32 0.0, %v1670
        %v1672 = vpop.f32.mrf.mxu0
        %v1673 = vadd.f32 0.0, %v1672
        %1674 = vmatprep.mubr.f32.mxu0 %v234
        %1675 = vmatmul.mubr.f32.gmra.mxu0 %v233
        %v1676 = vpop.f32.mrf.mxu0
        %v1677 = vadd.f32 0.0, %v1676
        %v1678 = vpop.f32.mrf.mxu0
        %v1679 = vadd.f32 0.0, %v1678
        %1680 = vmatprep.mubr.f32.mxu0 %v240
        %1681 = vmatmul.mubr.f32.gmra.mxu0 %v239
        %v1682 = vpop.f32.mrf.mxu0
        %v1683 = vadd.f32 0.0, %v1682
        %v1684 = vpop.f32.mrf.mxu0
        %v1685 = vadd.f32 0.0, %v1684
        %1686 = vmatprep.mubr.f32.mxu0 %v246
        %1687 = vmatmul.mubr.f32.gmra.mxu0 %v245
        %v1688 = vpop.f32.mrf.mxu0
        %v1689 = vadd.f32 0.0, %v1688
        %v1690 = vpop.f32.mrf.mxu0
        %v1691 = vadd.f32 0.0, %v1690
        %1692 = vdwg.mxu0
        %1693 = vmatprep.subr.mxu0 %v1579
        %1694 = vmatpush1.msra.mxu0 %v1578
        %1695 = vmatprep.subr.mxu0 %v1577
        %1696 = vmatpush1.msra.mxu0 %v1576
        %1697 = vmatprep.subr.mxu0 %v1575
        %1698 = vmatpush1.msra.mxu0 %v1574
        %1699 = vmatprep.subr.mxu0 %v1573
        %1700 = vmatpush1.msra.mxu0 %v1572
        %1701 = vmatprep.subr.mxu0 %v1571
        %1702 = vmatpush1.msra.mxu0 %v1570
        %1703 = vmatprep.subr.mxu0 %v1569
        %1704 = vmatpush1.msra.mxu0 %v1568
        %1705 = vmatprep.subr.mxu0 %v1567
        %1706 = vmatpush1.msra.mxu0 %v1566
        %1707 = vmatprep.subr.mxu0 %v1565
        %1708 = vmatpush1.msra.mxu0 %v1564
        %1709 = vmatprep.subr.mxu0 %v1563
        %1710 = vmatpush1.msra.mxu0 %v1562
        %1711 = vmatprep.subr.mxu0 %v1561
        %1712 = vmatpush1.msra.mxu0 %v1560
        %1713 = vmatprep.subr.mxu0 %v1559
        %1714 = vmatpush1.msra.mxu0 %v1558
        %1715 = vmatprep.subr.mxu0 %v1557
        %1716 = vmatpush1.msra.mxu0 %v1556
        %1717 = vmatprep.subr.mxu0 %v1555
        %1718 = vmatpush1.msra.mxu0 %v1554
        %1719 = vmatprep.subr.mxu0 %v1553
        %1720 = vmatpush1.msra.mxu0 %v1552
        %1721 = vmatprep.subr.mxu0 %v1551
        %1722 = vmatpush1.msra.mxu0 %v1550
        %1723 = vmatprep.subr.mxu0 %v1549
        %1724 = vmatpush1.msra.mxu0 %v1548
        %1725 = vmatprep.subr.mxu0 0.0
        %1726 = vmatpush2.msra.mxu0 0.0
        %1727 = vmatprep.subr.mxu0 0.0
        %1728 = vmatpush2.msra.mxu0 0.0
        %1729 = vmatprep.subr.mxu0 0.0
        %1730 = vmatpush2.msra.mxu0 0.0
        %1731 = vmatprep.subr.mxu0 0.0
        %1732 = vmatpush2.msra.mxu0 0.0
        %1733 = vmatprep.subr.mxu0 0.0
        %1734 = vmatpush2.msra.mxu0 0.0
        %1735 = vmatprep.subr.mxu0 0.0
        %1736 = vmatpush2.msra.mxu0 0.0
        %1737 = vmatprep.subr.mxu0 0.0
        %1738 = vmatpush2.msra.mxu0 0.0
        %1739 = vmatprep.subr.mxu0 0.0
        %1740 = vmatpush2.msra.mxu0 0.0
        %1741 = vmatprep.subr.mxu0 0.0
        %1742 = vmatpush2.msra.mxu0 0.0
        %1743 = vmatprep.subr.mxu0 0.0
        %1744 = vmatpush2.msra.mxu0 0.0
        %1745 = vmatprep.subr.mxu0 0.0
        %1746 = vmatpush2.msra.mxu0 0.0
        %1747 = vmatprep.subr.mxu0 0.0
        %1748 = vmatpush2.msra.mxu0 0.0
        %1749 = vmatprep.subr.mxu0 0.0
        %1750 = vmatpush2.msra.mxu0 0.0
        %1751 = vmatprep.subr.mxu0 0.0
        %1752 = vmatpush2.msra.mxu0 0.0
        %1753 = vmatprep.subr.mxu0 0.0
        %1754 = vmatpush2.msra.mxu0 0.0
        %1755 = vmatprep.subr.mxu0 0.0
        %1756 = vmatpush2.msra.mxu0 0.0
        %1757 = vmatprep.mubr.f32.mxu0 0.0
        %1758 = vmatmul.mubr.f32.gmra.mxu0 %v205
        %v1759 = vpop.f32.mrf.mxu0
        %v1760 = vadd.f32 %v1647, %v1759
        %v1761 = vpop.f32.mrf.mxu0
        %v1762 = vadd.f32 %v1649, %v1761
        %1763 = vmatprep.mubr.f32.mxu0 0.0
        %1764 = vmatmul.mubr.f32.gmra.mxu0 %v211
        %v1765 = vpop.f32.mrf.mxu0
        %v1766 = vadd.f32 %v1653, %v1765
        %v1767 = vpop.f32.mrf.mxu0
        %v1768 = vadd.f32 %v1655, %v1767
        %1769 = vmatprep.mubr.f32.mxu0 0.0
        %1770 = vmatmul.mubr.f32.gmra.mxu0 %v217
        %v1771 = vpop.f32.mrf.mxu0
        %v1772 = vadd.f32 %v1659, %v1771
        %v1773 = vpop.f32.mrf.mxu0
        %v1774 = vadd.f32 %v1661, %v1773
        %1775 = vmatprep.mubr.f32.mxu0 0.0
        %1776 = vmatmul.mubr.f32.gmra.mxu0 %v223
        %v1777 = vpop.f32.mrf.mxu0
        %v1778 = vadd.f32 %v1665, %v1777
        %v1779 = vpop.f32.mrf.mxu0
        %v1780 = vadd.f32 %v1667, %v1779
        %1781 = vmatprep.mubr.f32.mxu0 0.0
        %1782 = vmatmul.mubr.f32.gmra.mxu0 %v229
        %v1783 = vpop.f32.mrf.mxu0
        %v1784 = vadd.f32 %v1671, %v1783
        %v1785 = vpop.f32.mrf.mxu0
        %v1786 = vadd.f32 %v1673, %v1785
        %1787 = vmatprep.mubr.f32.mxu0 0.0
        %1788 = vmatmul.mubr.f32.gmra.mxu0 %v235
        %v1789 = vpop.f32.mrf.mxu0
        %v1790 = vadd.f32 %v1677, %v1789
        %v1791 = vpop.f32.mrf.mxu0
        %v1792 = vadd.f32 %v1679, %v1791
        %1793 = vmatprep.mubr.f32.mxu0 0.0
        %1794 = vmatmul.mubr.f32.gmra.mxu0 %v241
        %v1795 = vpop.f32.mrf.mxu0
        %v1796 = vadd.f32 %v1683, %v1795
        %v1797 = vpop.f32.mrf.mxu0
        %v1798 = vadd.f32 %v1685, %v1797
        %1799 = vmatprep.mubr.f32.mxu0 0.0
        %1800 = vmatmul.mubr.f32.gmra.mxu0 %v247
        %v1801 = vpop.f32.mrf.mxu0
        %v1802 = vadd.f32 %v1689, %v1801
        %v1803 = vpop.f32.mrf.mxu0
        %v1804 = vadd.f32 %v1691, %v1803
        %1805 = vdwg.mxu0
        %v1806 = vadd.f32 %v1467, %v1760
        %v1807 = vadd.f32 %v1468, %v1762
        %v1808 = vadd.f32 %v1469, %v1766
        %v1809 = vadd.f32 %v1470, %v1768
        %v1810 = vadd.f32 %v1471, %v1772
        %v1811 = vadd.f32 %v1472, %v1774
        %v1812 = vadd.f32 %v1473, %v1778
        %v1813 = vadd.f32 %v1474, %v1780
        %v1814 = vadd.f32 %v1475, %v1784
        %v1815 = vadd.f32 %v1476, %v1786
        %v1816 = vadd.f32 %v1477, %v1790
        %v1817 = vadd.f32 %v1478, %v1792
        %v1818 = vadd.f32 %v1479, %v1796
        %v1819 = vadd.f32 %v1480, %v1798
        %v1820 = vadd.f32 %v1481, %v1802
        %v1821 = vadd.f32 %v1482, %v1804
        %v1828 = vrot.slane %v245, 1
        %v1829 = vrot.slane %v248, 1
        %v1830 = vsel %vm401, %v1828, %v1829
        %v1831 = vrot.slane %v246, 1
        %v1832 = vrot.slane %v249, 1
        %v1833 = vsel %vm401, %v1831, %v1832
        %v1834 = vrot.slane %v247, 1
        %v1835 = vrot.slane %v250, 1
        %v1836 = vsel %vm401, %v1834, %v1835
        %s1840 = scalar_lea.vmem [#allocation2], 3072
        %v1841 = vld [vmem:[%s1840] sm:$0xff]
        %v1842 = vld [vmem:[%s1840 + $0x8] sm:$0xff]
        %v1843 = vld [vmem:[%s1840 + $0x10] sm:$0xff]
        %v1844 = vld [vmem:[%s1840 + $0x18] sm:$0xff]
        %v1845 = vld [vmem:[%s1840 + $0x20] sm:$0xff]
        %v1846 = vld [vmem:[%s1840 + $0x28] sm:$0xff]
        %v1847 = vld [vmem:[%s1840 + $0x30] sm:$0xff]
        %v1848 = vld [vmem:[%s1840 + $0x38] sm:$0xff]
        %v1849 = vld [vmem:[%s1840 + $0x40] sm:$0xff]
        %v1850 = vld [vmem:[%s1840 + $0x48] sm:$0xff]
        %v1851 = vld [vmem:[%s1840 + $0x50] sm:$0xff]
        %v1852 = vld [vmem:[%s1840 + $0x58] sm:$0xff]
        %v1853 = vld [vmem:[%s1840 + $0x60] sm:$0xff]
        %v1854 = vld [vmem:[%s1840 + $0x68] sm:$0xff]
        %v1855 = vld [vmem:[%s1840 + $0x70] sm:$0xff]
        %v1856 = vld [vmem:[%s1840 + $0x78] sm:$0xff]
        %v1857 = vld [vmem:[%s1840 + $0x80] sm:$0xff]
        %v1858 = vld [vmem:[%s1840 + $0x88] sm:$0xff]
        %v1859 = vld [vmem:[%s1840 + $0x90] sm:$0xff]
        %v1860 = vld [vmem:[%s1840 + $0x98] sm:$0xff]
        %v1861 = vld [vmem:[%s1840 + $0xa0] sm:$0xff]
        %v1862 = vld [vmem:[%s1840 + $0xa8] sm:$0xff]
        %v1863 = vld [vmem:[%s1840 + $0xb0] sm:$0xff]
        %v1864 = vld [vmem:[%s1840 + $0xb8] sm:$0xff]
        %v1865 = vld [vmem:[%s1840 + $0xc0] sm:$0xff]
        %v1866 = vld [vmem:[%s1840 + $0xc8] sm:$0xff]
        %v1867 = vld [vmem:[%s1840 + $0xd0] sm:$0xff]
        %v1868 = vld [vmem:[%s1840 + $0xd8] sm:$0xff]
        %v1869 = vld [vmem:[%s1840 + $0xe0] sm:$0xff]
        %v1870 = vld [vmem:[%s1840 + $0xe8] sm:$0xff]
        %v1871 = vld [vmem:[%s1840 + $0xf0] sm:$0xff]
        %v1872 = vld [vmem:[%s1840 + $0xf8] sm:$0xff]
        %v1873 = vld [vmem:[%s1840 + $0x100] sm:$0xff]
        %v1874 = vld [vmem:[%s1840 + $0x108] sm:$0xff]
        %v1875 = vld [vmem:[%s1840 + $0x110] sm:$0xff]
        %v1876 = vld [vmem:[%s1840 + $0x118] sm:$0xff]
        %v1877 = vld [vmem:[%s1840 + $0x120] sm:$0xff]
        %v1878 = vld [vmem:[%s1840 + $0x128] sm:$0xff]
        %v1879 = vld [vmem:[%s1840 + $0x130] sm:$0xff]
        %v1880 = vld [vmem:[%s1840 + $0x138] sm:$0xff]
        %v1881 = vld [vmem:[%s1840 + $0x140] sm:$0xff]
        %v1882 = vld [vmem:[%s1840 + $0x148] sm:$0xff]
        %v1883 = vld [vmem:[%s1840 + $0x150] sm:$0xff]
        %v1884 = vld [vmem:[%s1840 + $0x158] sm:$0xff]
        %v1885 = vld [vmem:[%s1840 + $0x160] sm:$0xff]
        %v1886 = vld [vmem:[%s1840 + $0x168] sm:$0xff]
        %v1887 = vld [vmem:[%s1840 + $0x170] sm:$0xff]
        %v1888 = vld [vmem:[%s1840 + $0x178] sm:$0xff]
        %v1889 = vld [vmem:[%s1840 + $0x180] sm:$0xff]
        %v1890 = vld [vmem:[%s1840 + $0x188] sm:$0xff]
        %v1891 = vld [vmem:[%s1840 + $0x190] sm:$0xff]
        %v1892 = vld [vmem:[%s1840 + $0x198] sm:$0xff]
        %v1893 = vld [vmem:[%s1840 + $0x1a0] sm:$0xff]
        %v1894 = vld [vmem:[%s1840 + $0x1a8] sm:$0xff]
        %v1895 = vld [vmem:[%s1840 + $0x1b0] sm:$0xff]
        %v1896 = vld [vmem:[%s1840 + $0x1b8] sm:$0xff]
        %v1897 = vld [vmem:[%s1840 + $0x1c0] sm:$0xff]
        %v1898 = vld [vmem:[%s1840 + $0x1c8] sm:$0xff]
        %v1899 = vld [vmem:[%s1840 + $0x1d0] sm:$0xff]
        %v1900 = vld [vmem:[%s1840 + $0x1d8] sm:$0xff]
        %v1901 = vld [vmem:[%s1840 + $0x1e0] sm:$0xff]
        %v1902 = vld [vmem:[%s1840 + $0x1e8] sm:$0xff]
        %v1903 = vld [vmem:[%s1840 + $0x1f0] sm:$0xff]
        %v1904 = vld [vmem:[%s1840 + $0x1f8] sm:$0xff]
        %v1905 = vld [vmem:[%s1840 + $0x200] sm:$0xff]
        %v1906 = vld [vmem:[%s1840 + $0x208] sm:$0xff]
        %v1907 = vld [vmem:[%s1840 + $0x210] sm:$0xff]
        %v1908 = vld [vmem:[%s1840 + $0x218] sm:$0xff]
        %v1909 = vld [vmem:[%s1840 + $0x220] sm:$0xff]
        %v1910 = vld [vmem:[%s1840 + $0x228] sm:$0xff]
        %v1911 = vld [vmem:[%s1840 + $0x230] sm:$0xff]
        %v1912 = vld [vmem:[%s1840 + $0x238] sm:$0xff]
        %v1913 = vld [vmem:[%s1840 + $0x240] sm:$0xff]
        %v1914 = vld [vmem:[%s1840 + $0x248] sm:$0xff]
        %v1915 = vld [vmem:[%s1840 + $0x250] sm:$0xff]
        %v1916 = vld [vmem:[%s1840 + $0x258] sm:$0xff]
        %v1917 = vld [vmem:[%s1840 + $0x260] sm:$0xff]
        %v1918 = vld [vmem:[%s1840 + $0x268] sm:$0xff]
        %v1919 = vld [vmem:[%s1840 + $0x270] sm:$0xff]
        %v1920 = vld [vmem:[%s1840 + $0x278] sm:$0xff]
        %v1921 = vld [vmem:[%s1840 + $0x280] sm:$0xff]
        %v1922 = vld [vmem:[%s1840 + $0x288] sm:$0xff]
        %v1923 = vld [vmem:[%s1840 + $0x290] sm:$0xff]
        %v1924 = vld [vmem:[%s1840 + $0x298] sm:$0xff]
        %v1925 = vld [vmem:[%s1840 + $0x2a0] sm:$0xff]
        %v1926 = vld [vmem:[%s1840 + $0x2a8] sm:$0xff]
        %v1927 = vld [vmem:[%s1840 + $0x2b0] sm:$0xff]
        %v1928 = vld [vmem:[%s1840 + $0x2b8] sm:$0xff]
        %v1929 = vld [vmem:[%s1840 + $0x2c0] sm:$0xff]
        %v1930 = vld [vmem:[%s1840 + $0x2c8] sm:$0xff]
        %v1931 = vld [vmem:[%s1840 + $0x2d0] sm:$0xff]
        %v1932 = vld [vmem:[%s1840 + $0x2d8] sm:$0xff]
        %v1933 = vld [vmem:[%s1840 + $0x2e0] sm:$0xff]
        %v1934 = vld [vmem:[%s1840 + $0x2e8] sm:$0xff]
        %v1935 = vld [vmem:[%s1840 + $0x2f0] sm:$0xff]
        %v1936 = vld [vmem:[%s1840 + $0x2f8] sm:$0xff]
        %1937 = vmatprep.subr.mxu0 %v1872
        %1938 = vmatpush1.msra.mxu0 %v1871
        %1939 = vmatprep.subr.mxu0 %v1870
        %1940 = vmatpush1.msra.mxu0 %v1869
        %1941 = vmatprep.subr.mxu0 %v1868
        %1942 = vmatpush1.msra.mxu0 %v1867
        %1943 = vmatprep.subr.mxu0 %v1866
        %1944 = vmatpush1.msra.mxu0 %v1865
        %1945 = vmatprep.subr.mxu0 %v1864
        %1946 = vmatpush1.msra.mxu0 %v1863
        %1947 = vmatprep.subr.mxu0 %v1862
        %1948 = vmatpush1.msra.mxu0 %v1861
        %1949 = vmatprep.subr.mxu0 %v1860
        %1950 = vmatpush1.msra.mxu0 %v1859
        %1951 = vmatprep.subr.mxu0 %v1858
        %1952 = vmatpush1.msra.mxu0 %v1857
        %1953 = vmatprep.subr.mxu0 %v1856
        %1954 = vmatpush1.msra.mxu0 %v1855
        %1955 = vmatprep.subr.mxu0 %v1854
        %1956 = vmatpush1.msra.mxu0 %v1853
        %1957 = vmatprep.subr.mxu0 %v1852
        %1958 = vmatpush1.msra.mxu0 %v1851
        %1959 = vmatprep.subr.mxu0 %v1850
        %1960 = vmatpush1.msra.mxu0 %v1849
        %1961 = vmatprep.subr.mxu0 %v1848
        %1962 = vmatpush1.msra.mxu0 %v1847
        %1963 = vmatprep.subr.mxu0 %v1846
        %1964 = vmatpush1.msra.mxu0 %v1845
        %1965 = vmatprep.subr.mxu0 %v1844
        %1966 = vmatpush1.msra.mxu0 %v1843
        %1967 = vmatprep.subr.mxu0 %v1842
        %1968 = vmatpush1.msra.mxu0 %v1841
        %1969 = vmatprep.subr.mxu0 %v1904
        %1970 = vmatpush2.msra.mxu0 %v1903
        %1971 = vmatprep.subr.mxu0 %v1902
        %1972 = vmatpush2.msra.mxu0 %v1901
        %1973 = vmatprep.subr.mxu0 %v1900
        %1974 = vmatpush2.msra.mxu0 %v1899
        %1975 = vmatprep.subr.mxu0 %v1898
        %1976 = vmatpush2.msra.mxu0 %v1897
        %1977 = vmatprep.subr.mxu0 %v1896
        %1978 = vmatpush2.msra.mxu0 %v1895
        %1979 = vmatprep.subr.mxu0 %v1894
        %1980 = vmatpush2.msra.mxu0 %v1893
        %1981 = vmatprep.subr.mxu0 %v1892
        %1982 = vmatpush2.msra.mxu0 %v1891
        %1983 = vmatprep.subr.mxu0 %v1890
        %1984 = vmatpush2.msra.mxu0 %v1889
        %1985 = vmatprep.subr.mxu0 %v1888
        %1986 = vmatpush2.msra.mxu0 %v1887
        %1987 = vmatprep.subr.mxu0 %v1886
        %1988 = vmatpush2.msra.mxu0 %v1885
        %1989 = vmatprep.subr.mxu0 %v1884
        %1990 = vmatpush2.msra.mxu0 %v1883
        %1991 = vmatprep.subr.mxu0 %v1882
        %1992 = vmatpush2.msra.mxu0 %v1881
        %1993 = vmatprep.subr.mxu0 %v1880
        %1994 = vmatpush2.msra.mxu0 %v1879
        %1995 = vmatprep.subr.mxu0 %v1878
        %1996 = vmatpush2.msra.mxu0 %v1877
        %1997 = vmatprep.subr.mxu0 %v1876
        %1998 = vmatpush2.msra.mxu0 %v1875
        %1999 = vmatprep.subr.mxu0 %v1874
        %2000 = vmatpush2.msra.mxu0 %v1873
        %2001 = vmatprep.mubr.f32.mxu0 %v416
        %2002 = vmatmul.mubr.f32.gmra.mxu0 %v413
        %v2003 = vpop.f32.mrf.mxu0
        %v2004 = vadd.f32 0.0, %v2003
        %v2005 = vpop.f32.mrf.mxu0
        %v2006 = vadd.f32 0.0, %v2005
        %2007 = vmatprep.mubr.f32.mxu0 %v425
        %2008 = vmatmul.mubr.f32.gmra.mxu0 %v422
        %v2009 = vpop.f32.mrf.mxu0
        %v2010 = vadd.f32 0.0, %v2009
        %v2011 = vpop.f32.mrf.mxu0
        %v2012 = vadd.f32 0.0, %v2011
        %2013 = vmatprep.mubr.f32.mxu0 %v434
        %2014 = vmatmul.mubr.f32.gmra.mxu0 %v431
        %v2015 = vpop.f32.mrf.mxu0
        %v2016 = vadd.f32 0.0, %v2015
        %v2017 = vpop.f32.mrf.mxu0
        %v2018 = vadd.f32 0.0, %v2017
        %2019 = vmatprep.mubr.f32.mxu0 %v443
        %2020 = vmatmul.mubr.f32.gmra.mxu0 %v440
        %v2021 = vpop.f32.mrf.mxu0
        %v2022 = vadd.f32 0.0, %v2021
        %v2023 = vpop.f32.mrf.mxu0
        %v2024 = vadd.f32 0.0, %v2023
        %2025 = vmatprep.mubr.f32.mxu0 %v452
        %2026 = vmatmul.mubr.f32.gmra.mxu0 %v449
        %v2027 = vpop.f32.mrf.mxu0
        %v2028 = vadd.f32 0.0, %v2027
        %v2029 = vpop.f32.mrf.mxu0
        %v2030 = vadd.f32 0.0, %v2029
        %2031 = vmatprep.mubr.f32.mxu0 %v461
        %2032 = vmatmul.mubr.f32.gmra.mxu0 %v458
        %v2033 = vpop.f32.mrf.mxu0
        %v2034 = vadd.f32 0.0, %v2033
        %v2035 = vpop.f32.mrf.mxu0
        %v2036 = vadd.f32 0.0, %v2035
        %2037 = vmatprep.mubr.f32.mxu0 %v470
        %2038 = vmatmul.mubr.f32.gmra.mxu0 %v467
        %v2039 = vpop.f32.mrf.mxu0
        %v2040 = vadd.f32 0.0, %v2039
        %v2041 = vpop.f32.mrf.mxu0
        %v2042 = vadd.f32 0.0, %v2041
        %2043 = vmatprep.mubr.f32.mxu0 %v1833
        %2044 = vmatmul.mubr.f32.gmra.mxu0 %v1830
        %v2045 = vpop.f32.mrf.mxu0
        %v2046 = vadd.f32 0.0, %v2045
        %v2047 = vpop.f32.mrf.mxu0
        %v2048 = vadd.f32 0.0, %v2047
        %2049 = vdwg.mxu0
        %2050 = vmatprep.subr.mxu0 %v1936
        %2051 = vmatpush1.msra.mxu0 %v1935
        %2052 = vmatprep.subr.mxu0 %v1934
        %2053 = vmatpush1.msra.mxu0 %v1933
        %2054 = vmatprep.subr.mxu0 %v1932
        %2055 = vmatpush1.msra.mxu0 %v1931
        %2056 = vmatprep.subr.mxu0 %v1930
        %2057 = vmatpush1.msra.mxu0 %v1929
        %2058 = vmatprep.subr.mxu0 %v1928
        %2059 = vmatpush1.msra.mxu0 %v1927
        %2060 = vmatprep.subr.mxu0 %v1926
        %2061 = vmatpush1.msra.mxu0 %v1925
        %2062 = vmatprep.subr.mxu0 %v1924
        %2063 = vmatpush1.msra.mxu0 %v1923
        %2064 = vmatprep.subr.mxu0 %v1922
        %2065 = vmatpush1.msra.mxu0 %v1921
        %2066 = vmatprep.subr.mxu0 %v1920
        %2067 = vmatpush1.msra.mxu0 %v1919
        %2068 = vmatprep.subr.mxu0 %v1918
        %2069 = vmatpush1.msra.mxu0 %v1917
        %2070 = vmatprep.subr.mxu0 %v1916
        %2071 = vmatpush1.msra.mxu0 %v1915
        %2072 = vmatprep.subr.mxu0 %v1914
        %2073 = vmatpush1.msra.mxu0 %v1913
        %2074 = vmatprep.subr.mxu0 %v1912
        %2075 = vmatpush1.msra.mxu0 %v1911
        %2076 = vmatprep.subr.mxu0 %v1910
        %2077 = vmatpush1.msra.mxu0 %v1909
        %2078 = vmatprep.subr.mxu0 %v1908
        %2079 = vmatpush1.msra.mxu0 %v1907
        %2080 = vmatprep.subr.mxu0 %v1906
        %2081 = vmatpush1.msra.mxu0 %v1905
        %2082 = vmatprep.subr.mxu0 0.0
        %2083 = vmatpush2.msra.mxu0 0.0
        %2084 = vmatprep.subr.mxu0 0.0
        %2085 = vmatpush2.msra.mxu0 0.0
        %2086 = vmatprep.subr.mxu0 0.0
        %2087 = vmatpush2.msra.mxu0 0.0
        %2088 = vmatprep.subr.mxu0 0.0
        %2089 = vmatpush2.msra.mxu0 0.0
        %2090 = vmatprep.subr.mxu0 0.0
        %2091 = vmatpush2.msra.mxu0 0.0
        %2092 = vmatprep.subr.mxu0 0.0
        %2093 = vmatpush2.msra.mxu0 0.0
        %2094 = vmatprep.subr.mxu0 0.0
        %2095 = vmatpush2.msra.mxu0 0.0
        %2096 = vmatprep.subr.mxu0 0.0
        %2097 = vmatpush2.msra.mxu0 0.0
        %2098 = vmatprep.subr.mxu0 0.0
        %2099 = vmatpush2.msra.mxu0 0.0
        %2100 = vmatprep.subr.mxu0 0.0
        %2101 = vmatpush2.msra.mxu0 0.0
        %2102 = vmatprep.subr.mxu0 0.0
        %2103 = vmatpush2.msra.mxu0 0.0
        %2104 = vmatprep.subr.mxu0 0.0
        %2105 = vmatpush2.msra.mxu0 0.0
        %2106 = vmatprep.subr.mxu0 0.0
        %2107 = vmatpush2.msra.mxu0 0.0
        %2108 = vmatprep.subr.mxu0 0.0
        %2109 = vmatpush2.msra.mxu0 0.0
        %2110 = vmatprep.subr.mxu0 0.0
        %2111 = vmatpush2.msra.mxu0 0.0
        %2112 = vmatprep.subr.mxu0 0.0
        %2113 = vmatpush2.msra.mxu0 0.0
        %2114 = vmatprep.mubr.f32.mxu0 0.0
        %2115 = vmatmul.mubr.f32.gmra.mxu0 %v419
        %v2116 = vpop.f32.mrf.mxu0
        %v2117 = vadd.f32 %v2004, %v2116
        %v2118 = vpop.f32.mrf.mxu0
        %v2119 = vadd.f32 %v2006, %v2118
        %2120 = vmatprep.mubr.f32.mxu0 0.0
        %2121 = vmatmul.mubr.f32.gmra.mxu0 %v428
        %v2122 = vpop.f32.mrf.mxu0
        %v2123 = vadd.f32 %v2010, %v2122
        %v2124 = vpop.f32.mrf.mxu0
        %v2125 = vadd.f32 %v2012, %v2124
        %2126 = vmatprep.mubr.f32.mxu0 0.0
        %2127 = vmatmul.mubr.f32.gmra.mxu0 %v437
        %v2128 = vpop.f32.mrf.mxu0
        %v2129 = vadd.f32 %v2016, %v2128
        %v2130 = vpop.f32.mrf.mxu0
        %v2131 = vadd.f32 %v2018, %v2130
        %2132 = vmatprep.mubr.f32.mxu0 0.0
        %2133 = vmatmul.mubr.f32.gmra.mxu0 %v446
        %v2134 = vpop.f32.mrf.mxu0
        %v2135 = vadd.f32 %v2022, %v2134
        %v2136 = vpop.f32.mrf.mxu0
        %v2137 = vadd.f32 %v2024, %v2136
        %2138 = vmatprep.mubr.f32.mxu0 0.0
        %2139 = vmatmul.mubr.f32.gmra.mxu0 %v455
        %v2140 = vpop.f32.mrf.mxu0
        %v2141 = vadd.f32 %v2028, %v2140
        %v2142 = vpop.f32.mrf.mxu0
        %v2143 = vadd.f32 %v2030, %v2142
        %2144 = vmatprep.mubr.f32.mxu0 0.0
        %2145 = vmatmul.mubr.f32.gmra.mxu0 %v464
        %v2146 = vpop.f32.mrf.mxu0
        %v2147 = vadd.f32 %v2034, %v2146
        %v2148 = vpop.f32.mrf.mxu0
        %v2149 = vadd.f32 %v2036, %v2148
        %2150 = vmatprep.mubr.f32.mxu0 0.0
        %2151 = vmatmul.mubr.f32.gmra.mxu0 %v473
        %v2152 = vpop.f32.mrf.mxu0
        %v2153 = vadd.f32 %v2040, %v2152
        %v2154 = vpop.f32.mrf.mxu0
        %v2155 = vadd.f32 %v2042, %v2154
        %2156 = vmatprep.mubr.f32.mxu0 0.0
        %2157 = vmatmul.mubr.f32.gmra.mxu0 %v1836
        %v2158 = vpop.f32.mrf.mxu0
        %v2159 = vadd.f32 %v2046, %v2158
        %v2160 = vpop.f32.mrf.mxu0
        %v2161 = vadd.f32 %v2048, %v2160
        %2162 = vdwg.mxu0
        %v2163 = vadd.f32 %v1806, %v2117
        %v2164 = vadd.f32 %v1807, %v2119
        %v2165 = vadd.f32 %v1808, %v2123
        %v2166 = vadd.f32 %v1809, %v2125
        %v2167 = vadd.f32 %v1810, %v2129
        %v2168 = vadd.f32 %v1811, %v2131
        %v2169 = vadd.f32 %v1812, %v2135
        %v2170 = vadd.f32 %v1813, %v2137
        %v2171 = vadd.f32 %v1814, %v2141
        %v2172 = vadd.f32 %v1815, %v2143
        %v2173 = vadd.f32 %v1816, %v2147
        %v2174 = vadd.f32 %v1817, %v2149
        %v2175 = vadd.f32 %v1818, %v2153
        %v2176 = vadd.f32 %v1819, %v2155
        %v2177 = vadd.f32 %v1820, %v2159
        %v2178 = vadd.f32 %v1821, %v2161
        %v2179 = vrot.slane %v245, 2
        %v2180 = vrot.slane %v248, 2
        %v2181 = vsel %vm1047, %v2179, %v2180
        %v2182 = vrot.slane %v246, 2
        %v2183 = vrot.slane %v249, 2
        %v2184 = vsel %vm1047, %v2182, %v2183
        %v2185 = vrot.slane %v247, 2
        %v2186 = vrot.slane %v250, 2
        %v2187 = vsel %vm1047, %v2185, %v2186
        %s2191 = scalar_lea.vmem [#allocation2], 3840
        %v2192 = vld [vmem:[%s2191] sm:$0xff]
        %v2193 = vld [vmem:[%s2191 + $0x8] sm:$0xff]
        %v2194 = vld [vmem:[%s2191 + $0x10] sm:$0xff]
        %v2195 = vld [vmem:[%s2191 + $0x18] sm:$0xff]
        %v2196 = vld [vmem:[%s2191 + $0x20] sm:$0xff]
        %v2197 = vld [vmem:[%s2191 + $0x28] sm:$0xff]
        %v2198 = vld [vmem:[%s2191 + $0x30] sm:$0xff]
        %v2199 = vld [vmem:[%s2191 + $0x38] sm:$0xff]
        %v2200 = vld [vmem:[%s2191 + $0x40] sm:$0xff]
        %v2201 = vld [vmem:[%s2191 + $0x48] sm:$0xff]
        %v2202 = vld [vmem:[%s2191 + $0x50] sm:$0xff]
        %v2203 = vld [vmem:[%s2191 + $0x58] sm:$0xff]
        %v2204 = vld [vmem:[%s2191 + $0x60] sm:$0xff]
        %v2205 = vld [vmem:[%s2191 + $0x68] sm:$0xff]
        %v2206 = vld [vmem:[%s2191 + $0x70] sm:$0xff]
        %v2207 = vld [vmem:[%s2191 + $0x78] sm:$0xff]
        %v2208 = vld [vmem:[%s2191 + $0x80] sm:$0xff]
        %v2209 = vld [vmem:[%s2191 + $0x88] sm:$0xff]
        %v2210 = vld [vmem:[%s2191 + $0x90] sm:$0xff]
        %v2211 = vld [vmem:[%s2191 + $0x98] sm:$0xff]
        %v2212 = vld [vmem:[%s2191 + $0xa0] sm:$0xff]
        %v2213 = vld [vmem:[%s2191 + $0xa8] sm:$0xff]
        %v2214 = vld [vmem:[%s2191 + $0xb0] sm:$0xff]
        %v2215 = vld [vmem:[%s2191 + $0xb8] sm:$0xff]
        %v2216 = vld [vmem:[%s2191 + $0xc0] sm:$0xff]
        %v2217 = vld [vmem:[%s2191 + $0xc8] sm:$0xff]
        %v2218 = vld [vmem:[%s2191 + $0xd0] sm:$0xff]
        %v2219 = vld [vmem:[%s2191 + $0xd8] sm:$0xff]
        %v2220 = vld [vmem:[%s2191 + $0xe0] sm:$0xff]
        %v2221 = vld [vmem:[%s2191 + $0xe8] sm:$0xff]
        %v2222 = vld [vmem:[%s2191 + $0xf0] sm:$0xff]
        %v2223 = vld [vmem:[%s2191 + $0xf8] sm:$0xff]
        %v2224 = vld [vmem:[%s2191 + $0x100] sm:$0xff]
        %v2225 = vld [vmem:[%s2191 + $0x108] sm:$0xff]
        %v2226 = vld [vmem:[%s2191 + $0x110] sm:$0xff]
        %v2227 = vld [vmem:[%s2191 + $0x118] sm:$0xff]
        %v2228 = vld [vmem:[%s2191 + $0x120] sm:$0xff]
        %v2229 = vld [vmem:[%s2191 + $0x128] sm:$0xff]
        %v2230 = vld [vmem:[%s2191 + $0x130] sm:$0xff]
        %v2231 = vld [vmem:[%s2191 + $0x138] sm:$0xff]
        %v2232 = vld [vmem:[%s2191 + $0x140] sm:$0xff]
        %v2233 = vld [vmem:[%s2191 + $0x148] sm:$0xff]
        %v2234 = vld [vmem:[%s2191 + $0x150] sm:$0xff]
        %v2235 = vld [vmem:[%s2191 + $0x158] sm:$0xff]
        %v2236 = vld [vmem:[%s2191 + $0x160] sm:$0xff]
        %v2237 = vld [vmem:[%s2191 + $0x168] sm:$0xff]
        %v2238 = vld [vmem:[%s2191 + $0x170] sm:$0xff]
        %v2239 = vld [vmem:[%s2191 + $0x178] sm:$0xff]
        %v2240 = vld [vmem:[%s2191 + $0x180] sm:$0xff]
        %v2241 = vld [vmem:[%s2191 + $0x188] sm:$0xff]
        %v2242 = vld [vmem:[%s2191 + $0x190] sm:$0xff]
        %v2243 = vld [vmem:[%s2191 + $0x198] sm:$0xff]
        %v2244 = vld [vmem:[%s2191 + $0x1a0] sm:$0xff]
        %v2245 = vld [vmem:[%s2191 + $0x1a8] sm:$0xff]
        %v2246 = vld [vmem:[%s2191 + $0x1b0] sm:$0xff]
        %v2247 = vld [vmem:[%s2191 + $0x1b8] sm:$0xff]
        %v2248 = vld [vmem:[%s2191 + $0x1c0] sm:$0xff]
        %v2249 = vld [vmem:[%s2191 + $0x1c8] sm:$0xff]
        %v2250 = vld [vmem:[%s2191 + $0x1d0] sm:$0xff]
        %v2251 = vld [vmem:[%s2191 + $0x1d8] sm:$0xff]
        %v2252 = vld [vmem:[%s2191 + $0x1e0] sm:$0xff]
        %v2253 = vld [vmem:[%s2191 + $0x1e8] sm:$0xff]
        %v2254 = vld [vmem:[%s2191 + $0x1f0] sm:$0xff]
        %v2255 = vld [vmem:[%s2191 + $0x1f8] sm:$0xff]
        %v2256 = vld [vmem:[%s2191 + $0x200] sm:$0xff]
        %v2257 = vld [vmem:[%s2191 + $0x208] sm:$0xff]
        %v2258 = vld [vmem:[%s2191 + $0x210] sm:$0xff]
        %v2259 = vld [vmem:[%s2191 + $0x218] sm:$0xff]
        %v2260 = vld [vmem:[%s2191 + $0x220] sm:$0xff]
        %v2261 = vld [vmem:[%s2191 + $0x228] sm:$0xff]
        %v2262 = vld [vmem:[%s2191 + $0x230] sm:$0xff]
        %v2263 = vld [vmem:[%s2191 + $0x238] sm:$0xff]
        %v2264 = vld [vmem:[%s2191 + $0x240] sm:$0xff]
        %v2265 = vld [vmem:[%s2191 + $0x248] sm:$0xff]
        %v2266 = vld [vmem:[%s2191 + $0x250] sm:$0xff]
        %v2267 = vld [vmem:[%s2191 + $0x258] sm:$0xff]
        %v2268 = vld [vmem:[%s2191 + $0x260] sm:$0xff]
        %v2269 = vld [vmem:[%s2191 + $0x268] sm:$0xff]
        %v2270 = vld [vmem:[%s2191 + $0x270] sm:$0xff]
        %v2271 = vld [vmem:[%s2191 + $0x278] sm:$0xff]
        %v2272 = vld [vmem:[%s2191 + $0x280] sm:$0xff]
        %v2273 = vld [vmem:[%s2191 + $0x288] sm:$0xff]
        %v2274 = vld [vmem:[%s2191 + $0x290] sm:$0xff]
        %v2275 = vld [vmem:[%s2191 + $0x298] sm:$0xff]
        %v2276 = vld [vmem:[%s2191 + $0x2a0] sm:$0xff]
        %v2277 = vld [vmem:[%s2191 + $0x2a8] sm:$0xff]
        %v2278 = vld [vmem:[%s2191 + $0x2b0] sm:$0xff]
        %v2279 = vld [vmem:[%s2191 + $0x2b8] sm:$0xff]
        %v2280 = vld [vmem:[%s2191 + $0x2c0] sm:$0xff]
        %v2281 = vld [vmem:[%s2191 + $0x2c8] sm:$0xff]
        %v2282 = vld [vmem:[%s2191 + $0x2d0] sm:$0xff]
        %v2283 = vld [vmem:[%s2191 + $0x2d8] sm:$0xff]
        %v2284 = vld [vmem:[%s2191 + $0x2e0] sm:$0xff]
        %v2285 = vld [vmem:[%s2191 + $0x2e8] sm:$0xff]
        %v2286 = vld [vmem:[%s2191 + $0x2f0] sm:$0xff]
        %v2287 = vld [vmem:[%s2191 + $0x2f8] sm:$0xff]
        %2288 = vmatprep.subr.mxu0 %v2223
        %2289 = vmatpush1.msra.mxu0 %v2222
        %2290 = vmatprep.subr.mxu0 %v2221
        %2291 = vmatpush1.msra.mxu0 %v2220
        %2292 = vmatprep.subr.mxu0 %v2219
        %2293 = vmatpush1.msra.mxu0 %v2218
        %2294 = vmatprep.subr.mxu0 %v2217
        %2295 = vmatpush1.msra.mxu0 %v2216
        %2296 = vmatprep.subr.mxu0 %v2215
        %2297 = vmatpush1.msra.mxu0 %v2214
        %2298 = vmatprep.subr.mxu0 %v2213
        %2299 = vmatpush1.msra.mxu0 %v2212
        %2300 = vmatprep.subr.mxu0 %v2211
        %2301 = vmatpush1.msra.mxu0 %v2210
        %2302 = vmatprep.subr.mxu0 %v2209
        %2303 = vmatpush1.msra.mxu0 %v2208
        %2304 = vmatprep.subr.mxu0 %v2207
        %2305 = vmatpush1.msra.mxu0 %v2206
        %2306 = vmatprep.subr.mxu0 %v2205
        %2307 = vmatpush1.msra.mxu0 %v2204
        %2308 = vmatprep.subr.mxu0 %v2203
        %2309 = vmatpush1.msra.mxu0 %v2202
        %2310 = vmatprep.subr.mxu0 %v2201
        %2311 = vmatpush1.msra.mxu0 %v2200
        %2312 = vmatprep.subr.mxu0 %v2199
        %2313 = vmatpush1.msra.mxu0 %v2198
        %2314 = vmatprep.subr.mxu0 %v2197
        %2315 = vmatpush1.msra.mxu0 %v2196
        %2316 = vmatprep.subr.mxu0 %v2195
        %2317 = vmatpush1.msra.mxu0 %v2194
        %2318 = vmatprep.subr.mxu0 %v2193
        %2319 = vmatpush1.msra.mxu0 %v2192
        %2320 = vmatprep.subr.mxu0 %v2255
        %2321 = vmatpush2.msra.mxu0 %v2254
        %2322 = vmatprep.subr.mxu0 %v2253
        %2323 = vmatpush2.msra.mxu0 %v2252
        %2324 = vmatprep.subr.mxu0 %v2251
        %2325 = vmatpush2.msra.mxu0 %v2250
        %2326 = vmatprep.subr.mxu0 %v2249
        %2327 = vmatpush2.msra.mxu0 %v2248
        %2328 = vmatprep.subr.mxu0 %v2247
        %2329 = vmatpush2.msra.mxu0 %v2246
        %2330 = vmatprep.subr.mxu0 %v2245
        %2331 = vmatpush2.msra.mxu0 %v2244
        %2332 = vmatprep.subr.mxu0 %v2243
        %2333 = vmatpush2.msra.mxu0 %v2242
        %2334 = vmatprep.subr.mxu0 %v2241
        %2335 = vmatpush2.msra.mxu0 %v2240
        %2336 = vmatprep.subr.mxu0 %v2239
        %2337 = vmatpush2.msra.mxu0 %v2238
        %2338 = vmatprep.subr.mxu0 %v2237
        %2339 = vmatpush2.msra.mxu0 %v2236
        %2340 = vmatprep.subr.mxu0 %v2235
        %2341 = vmatpush2.msra.mxu0 %v2234
        %2342 = vmatprep.subr.mxu0 %v2233
        %2343 = vmatpush2.msra.mxu0 %v2232
        %2344 = vmatprep.subr.mxu0 %v2231
        %2345 = vmatpush2.msra.mxu0 %v2230
        %2346 = vmatprep.subr.mxu0 %v2229
        %2347 = vmatpush2.msra.mxu0 %v2228
        %2348 = vmatprep.subr.mxu0 %v2227
        %2349 = vmatpush2.msra.mxu0 %v2226
        %2350 = vmatprep.subr.mxu0 %v2225
        %2351 = vmatpush2.msra.mxu0 %v2224
        %2352 = vmatprep.mubr.f32.mxu0 %v1062
        %2353 = vmatmul.mubr.f32.gmra.mxu0 %v1059
        %v2354 = vpop.f32.mrf.mxu0
        %v2355 = vadd.f32 0.0, %v2354
        %v2356 = vpop.f32.mrf.mxu0
        %v2357 = vadd.f32 0.0, %v2356
        %2358 = vmatprep.mubr.f32.mxu0 %v1071
        %2359 = vmatmul.mubr.f32.gmra.mxu0 %v1068
        %v2360 = vpop.f32.mrf.mxu0
        %v2361 = vadd.f32 0.0, %v2360
        %v2362 = vpop.f32.mrf.mxu0
        %v2363 = vadd.f32 0.0, %v2362
        %2364 = vmatprep.mubr.f32.mxu0 %v1080
        %2365 = vmatmul.mubr.f32.gmra.mxu0 %v1077
        %v2366 = vpop.f32.mrf.mxu0
        %v2367 = vadd.f32 0.0, %v2366
        %v2368 = vpop.f32.mrf.mxu0
        %v2369 = vadd.f32 0.0, %v2368
        %2370 = vmatprep.mubr.f32.mxu0 %v1089
        %2371 = vmatmul.mubr.f32.gmra.mxu0 %v1086
        %v2372 = vpop.f32.mrf.mxu0
        %v2373 = vadd.f32 0.0, %v2372
        %v2374 = vpop.f32.mrf.mxu0
        %v2375 = vadd.f32 0.0, %v2374
        %2376 = vmatprep.mubr.f32.mxu0 %v1098
        %2377 = vmatmul.mubr.f32.gmra.mxu0 %v1095
        %v2378 = vpop.f32.mrf.mxu0
        %v2379 = vadd.f32 0.0, %v2378
        %v2380 = vpop.f32.mrf.mxu0
        %v2381 = vadd.f32 0.0, %v2380
        %2382 = vmatprep.mubr.f32.mxu0 %v1107
        %2383 = vmatmul.mubr.f32.gmra.mxu0 %v1104
        %v2384 = vpop.f32.mrf.mxu0
        %v2385 = vadd.f32 0.0, %v2384
        %v2386 = vpop.f32.mrf.mxu0
        %v2387 = vadd.f32 0.0, %v2386
        %2388 = vmatprep.mubr.f32.mxu0 %v1116
        %2389 = vmatmul.mubr.f32.gmra.mxu0 %v1113
        %v2390 = vpop.f32.mrf.mxu0
        %v2391 = vadd.f32 0.0, %v2390
        %v2392 = vpop.f32.mrf.mxu0
        %v2393 = vadd.f32 0.0, %v2392
        %2394 = vmatprep.mubr.f32.mxu0 %v2184
        %2395 = vmatmul.mubr.f32.gmra.mxu0 %v2181
        %v2396 = vpop.f32.mrf.mxu0
        %v2397 = vadd.f32 0.0, %v2396
        %v2398 = vpop.f32.mrf.mxu0
        %v2399 = vadd.f32 0.0, %v2398
        %2400 = vdwg.mxu0
        %2401 = vmatprep.subr.mxu0 %v2287
        %2402 = vmatpush1.msra.mxu0 %v2286
        %2403 = vmatprep.subr.mxu0 %v2285
        %2404 = vmatpush1.msra.mxu0 %v2284
        %2405 = vmatprep.subr.mxu0 %v2283
        %2406 = vmatpush1.msra.mxu0 %v2282
        %2407 = vmatprep.subr.mxu0 %v2281
        %2408 = vmatpush1.msra.mxu0 %v2280
        %2409 = vmatprep.subr.mxu0 %v2279
        %2410 = vmatpush1.msra.mxu0 %v2278
        %2411 = vmatprep.subr.mxu0 %v2277
        %2412 = vmatpush1.msra.mxu0 %v2276
        %2413 = vmatprep.subr.mxu0 %v2275
        %2414 = vmatpush1.msra.mxu0 %v2274
        %2415 = vmatprep.subr.mxu0 %v2273
        %2416 = vmatpush1.msra.mxu0 %v2272
        %2417 = vmatprep.subr.mxu0 %v2271
        %2418 = vmatpush1.msra.mxu0 %v2270
        %2419 = vmatprep.subr.mxu0 %v2269
        %2420 = vmatpush1.msra.mxu0 %v2268
        %2421 = vmatprep.subr.mxu0 %v2267
        %2422 = vmatpush1.msra.mxu0 %v2266
        %2423 = vmatprep.subr.mxu0 %v2265
        %2424 = vmatpush1.msra.mxu0 %v2264
        %2425 = vmatprep.subr.mxu0 %v2263
        %2426 = vmatpush1.msra.mxu0 %v2262
        %2427 = vmatprep.subr.mxu0 %v2261
        %2428 = vmatpush1.msra.mxu0 %v2260
        %2429 = vmatprep.subr.mxu0 %v2259
        %2430 = vmatpush1.msra.mxu0 %v2258
        %2431 = vmatprep.subr.mxu0 %v2257
        %2432 = vmatpush1.msra.mxu0 %v2256
        %2433 = vmatprep.subr.mxu0 0.0
        %2434 = vmatpush2.msra.mxu0 0.0
        %2435 = vmatprep.subr.mxu0 0.0
        %2436 = vmatpush2.msra.mxu0 0.0
        %2437 = vmatprep.subr.mxu0 0.0
        %2438 = vmatpush2.msra.mxu0 0.0
        %2439 = vmatprep.subr.mxu0 0.0
        %2440 = vmatpush2.msra.mxu0 0.0
        %2441 = vmatprep.subr.mxu0 0.0
        %2442 = vmatpush2.msra.mxu0 0.0
        %2443 = vmatprep.subr.mxu0 0.0
        %2444 = vmatpush2.msra.mxu0 0.0
        %2445 = vmatprep.subr.mxu0 0.0
        %2446 = vmatpush2.msra.mxu0 0.0
        %2447 = vmatprep.subr.mxu0 0.0
        %2448 = vmatpush2.msra.mxu0 0.0
        %2449 = vmatprep.subr.mxu0 0.0
        %2450 = vmatpush2.msra.mxu0 0.0
        %2451 = vmatprep.subr.mxu0 0.0
        %2452 = vmatpush2.msra.mxu0 0.0
        %2453 = vmatprep.subr.mxu0 0.0
        %2454 = vmatpush2.msra.mxu0 0.0
        %2455 = vmatprep.subr.mxu0 0.0
        %2456 = vmatpush2.msra.mxu0 0.0
        %2457 = vmatprep.subr.mxu0 0.0
        %2458 = vmatpush2.msra.mxu0 0.0
        %2459 = vmatprep.subr.mxu0 0.0
        %2460 = vmatpush2.msra.mxu0 0.0
        %2461 = vmatprep.subr.mxu0 0.0
        %2462 = vmatpush2.msra.mxu0 0.0
        %2463 = vmatprep.subr.mxu0 0.0
        %2464 = vmatpush2.msra.mxu0 0.0
        %2465 = vmatprep.mubr.f32.mxu0 0.0
        %2466 = vmatmul.mubr.f32.gmra.mxu0 %v1065
        %v2467 = vpop.f32.mrf.mxu0
        %v2468 = vadd.f32 %v2355, %v2467
        %v2469 = vpop.f32.mrf.mxu0
        %v2470 = vadd.f32 %v2357, %v2469
        %2471 = vmatprep.mubr.f32.mxu0 0.0
        %2472 = vmatmul.mubr.f32.gmra.mxu0 %v1074
        %v2473 = vpop.f32.mrf.mxu0
        %v2474 = vadd.f32 %v2361, %v2473
        %v2475 = vpop.f32.mrf.mxu0
        %v2476 = vadd.f32 %v2363, %v2475
        %2477 = vmatprep.mubr.f32.mxu0 0.0
        %2478 = vmatmul.mubr.f32.gmra.mxu0 %v1083
        %v2479 = vpop.f32.mrf.mxu0
        %v2480 = vadd.f32 %v2367, %v2479
        %v2481 = vpop.f32.mrf.mxu0
        %v2482 = vadd.f32 %v2369, %v2481
        %2483 = vmatprep.mubr.f32.mxu0 0.0
        %2484 = vmatmul.mubr.f32.gmra.mxu0 %v1092
        %v2485 = vpop.f32.mrf.mxu0
        %v2486 = vadd.f32 %v2373, %v2485
        %v2487 = vpop.f32.mrf.mxu0
        %v2488 = vadd.f32 %v2375, %v2487
        %2489 = vmatprep.mubr.f32.mxu0 0.0
        %2490 = vmatmul.mubr.f32.gmra.mxu0 %v1101
        %v2491 = vpop.f32.mrf.mxu0
        %v2492 = vadd.f32 %v2379, %v2491
        %v2493 = vpop.f32.mrf.mxu0
        %v2494 = vadd.f32 %v2381, %v2493
        %2495 = vmatprep.mubr.f32.mxu0 0.0
        %2496 = vmatmul.mubr.f32.gmra.mxu0 %v1110
        %v2497 = vpop.f32.mrf.mxu0
        %v2498 = vadd.f32 %v2385, %v2497
        %v2499 = vpop.f32.mrf.mxu0
        %v2500 = vadd.f32 %v2387, %v2499
        %2501 = vmatprep.mubr.f32.mxu0 0.0
        %2502 = vmatmul.mubr.f32.gmra.mxu0 %v1119
        %v2503 = vpop.f32.mrf.mxu0
        %v2504 = vadd.f32 %v2391, %v2503
        %v2505 = vpop.f32.mrf.mxu0
        %v2506 = vadd.f32 %v2393, %v2505
        %2507 = vmatprep.mubr.f32.mxu0 0.0
        %2508 = vmatmul.mubr.f32.gmra.mxu0 %v2187
        %v2509 = vpop.f32.mrf.mxu0
        %v2510 = vadd.f32 %v2397, %v2509
        %v2511 = vpop.f32.mrf.mxu0
        %v2512 = vadd.f32 %v2399, %v2511
        %2513 = vdwg.mxu0
        %v2514 = vadd.f32 %v2163, %v2468
        %v2515 = vadd.f32 %v2164, %v2470
        %v2516 = vadd.f32 %v2165, %v2474
        %v2517 = vadd.f32 %v2166, %v2476
        %v2518 = vadd.f32 %v2167, %v2480
        %v2519 = vadd.f32 %v2168, %v2482
        %v2520 = vadd.f32 %v2169, %v2486
        %v2521 = vadd.f32 %v2170, %v2488
        %v2522 = vadd.f32 %v2171, %v2492
        %v2523 = vadd.f32 %v2172, %v2494
        %v2524 = vadd.f32 %v2173, %v2498
        %v2525 = vadd.f32 %v2174, %v2500
        %v2526 = vadd.f32 %v2175, %v2504
        %v2527 = vadd.f32 %v2176, %v2506
        %v2528 = vadd.f32 %v2177, %v2510
        %v2529 = vadd.f32 %v2178, %v2512
        %s2530 = scalar_lea.vmem [#allocation2], 4608
        %v2531 = vld [vmem:[%s2530] sm:$0xff]
        %v2532 = vld [vmem:[%s2530 + $0x8] sm:$0xff]
        %v2533 = vld [vmem:[%s2530 + $0x10] sm:$0xff]
        %v2534 = vld [vmem:[%s2530 + $0x18] sm:$0xff]
        %v2535 = vld [vmem:[%s2530 + $0x20] sm:$0xff]
        %v2536 = vld [vmem:[%s2530 + $0x28] sm:$0xff]
        %v2537 = vld [vmem:[%s2530 + $0x30] sm:$0xff]
        %v2538 = vld [vmem:[%s2530 + $0x38] sm:$0xff]
        %v2539 = vld [vmem:[%s2530 + $0x40] sm:$0xff]
        %v2540 = vld [vmem:[%s2530 + $0x48] sm:$0xff]
        %v2541 = vld [vmem:[%s2530 + $0x50] sm:$0xff]
        %v2542 = vld [vmem:[%s2530 + $0x58] sm:$0xff]
        %v2543 = vld [vmem:[%s2530 + $0x60] sm:$0xff]
        %v2544 = vld [vmem:[%s2530 + $0x68] sm:$0xff]
        %v2545 = vld [vmem:[%s2530 + $0x70] sm:$0xff]
        %v2546 = vld [vmem:[%s2530 + $0x78] sm:$0xff]
        %v2547 = vld [vmem:[%s2530 + $0x80] sm:$0xff]
        %v2548 = vld [vmem:[%s2530 + $0x88] sm:$0xff]
        %v2549 = vld [vmem:[%s2530 + $0x90] sm:$0xff]
        %v2550 = vld [vmem:[%s2530 + $0x98] sm:$0xff]
        %v2551 = vld [vmem:[%s2530 + $0xa0] sm:$0xff]
        %v2552 = vld [vmem:[%s2530 + $0xa8] sm:$0xff]
        %v2553 = vld [vmem:[%s2530 + $0xb0] sm:$0xff]
        %v2554 = vld [vmem:[%s2530 + $0xb8] sm:$0xff]
        %v2555 = vld [vmem:[%s2530 + $0xc0] sm:$0xff]
        %v2556 = vld [vmem:[%s2530 + $0xc8] sm:$0xff]
        %v2557 = vld [vmem:[%s2530 + $0xd0] sm:$0xff]
        %v2558 = vld [vmem:[%s2530 + $0xd8] sm:$0xff]
        %v2559 = vld [vmem:[%s2530 + $0xe0] sm:$0xff]
        %v2560 = vld [vmem:[%s2530 + $0xe8] sm:$0xff]
        %v2561 = vld [vmem:[%s2530 + $0xf0] sm:$0xff]
        %v2562 = vld [vmem:[%s2530 + $0xf8] sm:$0xff]
        %v2563 = vld [vmem:[%s2530 + $0x100] sm:$0xff]
        %v2564 = vld [vmem:[%s2530 + $0x108] sm:$0xff]
        %v2565 = vld [vmem:[%s2530 + $0x110] sm:$0xff]
        %v2566 = vld [vmem:[%s2530 + $0x118] sm:$0xff]
        %v2567 = vld [vmem:[%s2530 + $0x120] sm:$0xff]
        %v2568 = vld [vmem:[%s2530 + $0x128] sm:$0xff]
        %v2569 = vld [vmem:[%s2530 + $0x130] sm:$0xff]
        %v2570 = vld [vmem:[%s2530 + $0x138] sm:$0xff]
        %v2571 = vld [vmem:[%s2530 + $0x140] sm:$0xff]
        %v2572 = vld [vmem:[%s2530 + $0x148] sm:$0xff]
        %v2573 = vld [vmem:[%s2530 + $0x150] sm:$0xff]
        %v2574 = vld [vmem:[%s2530 + $0x158] sm:$0xff]
        %v2575 = vld [vmem:[%s2530 + $0x160] sm:$0xff]
        %v2576 = vld [vmem:[%s2530 + $0x168] sm:$0xff]
        %v2577 = vld [vmem:[%s2530 + $0x170] sm:$0xff]
        %v2578 = vld [vmem:[%s2530 + $0x178] sm:$0xff]
        %v2579 = vld [vmem:[%s2530 + $0x180] sm:$0xff]
        %v2580 = vld [vmem:[%s2530 + $0x188] sm:$0xff]
        %v2581 = vld [vmem:[%s2530 + $0x190] sm:$0xff]
        %v2582 = vld [vmem:[%s2530 + $0x198] sm:$0xff]
        %v2583 = vld [vmem:[%s2530 + $0x1a0] sm:$0xff]
        %v2584 = vld [vmem:[%s2530 + $0x1a8] sm:$0xff]
        %v2585 = vld [vmem:[%s2530 + $0x1b0] sm:$0xff]
        %v2586 = vld [vmem:[%s2530 + $0x1b8] sm:$0xff]
        %v2587 = vld [vmem:[%s2530 + $0x1c0] sm:$0xff]
        %v2588 = vld [vmem:[%s2530 + $0x1c8] sm:$0xff]
        %v2589 = vld [vmem:[%s2530 + $0x1d0] sm:$0xff]
        %v2590 = vld [vmem:[%s2530 + $0x1d8] sm:$0xff]
        %v2591 = vld [vmem:[%s2530 + $0x1e0] sm:$0xff]
        %v2592 = vld [vmem:[%s2530 + $0x1e8] sm:$0xff]
        %v2593 = vld [vmem:[%s2530 + $0x1f0] sm:$0xff]
        %v2594 = vld [vmem:[%s2530 + $0x1f8] sm:$0xff]
        %v2595 = vld [vmem:[%s2530 + $0x200] sm:$0xff]
        %v2596 = vld [vmem:[%s2530 + $0x208] sm:$0xff]
        %v2597 = vld [vmem:[%s2530 + $0x210] sm:$0xff]
        %v2598 = vld [vmem:[%s2530 + $0x218] sm:$0xff]
        %v2599 = vld [vmem:[%s2530 + $0x220] sm:$0xff]
        %v2600 = vld [vmem:[%s2530 + $0x228] sm:$0xff]
        %v2601 = vld [vmem:[%s2530 + $0x230] sm:$0xff]
        %v2602 = vld [vmem:[%s2530 + $0x238] sm:$0xff]
        %v2603 = vld [vmem:[%s2530 + $0x240] sm:$0xff]
        %v2604 = vld [vmem:[%s2530 + $0x248] sm:$0xff]
        %v2605 = vld [vmem:[%s2530 + $0x250] sm:$0xff]
        %v2606 = vld [vmem:[%s2530 + $0x258] sm:$0xff]
        %v2607 = vld [vmem:[%s2530 + $0x260] sm:$0xff]
        %v2608 = vld [vmem:[%s2530 + $0x268] sm:$0xff]
        %v2609 = vld [vmem:[%s2530 + $0x270] sm:$0xff]
        %v2610 = vld [vmem:[%s2530 + $0x278] sm:$0xff]
        %v2611 = vld [vmem:[%s2530 + $0x280] sm:$0xff]
        %v2612 = vld [vmem:[%s2530 + $0x288] sm:$0xff]
        %v2613 = vld [vmem:[%s2530 + $0x290] sm:$0xff]
        %v2614 = vld [vmem:[%s2530 + $0x298] sm:$0xff]
        %v2615 = vld [vmem:[%s2530 + $0x2a0] sm:$0xff]
        %v2616 = vld [vmem:[%s2530 + $0x2a8] sm:$0xff]
        %v2617 = vld [vmem:[%s2530 + $0x2b0] sm:$0xff]
        %v2618 = vld [vmem:[%s2530 + $0x2b8] sm:$0xff]
        %v2619 = vld [vmem:[%s2530 + $0x2c0] sm:$0xff]
        %v2620 = vld [vmem:[%s2530 + $0x2c8] sm:$0xff]
        %v2621 = vld [vmem:[%s2530 + $0x2d0] sm:$0xff]
        %v2622 = vld [vmem:[%s2530 + $0x2d8] sm:$0xff]
        %v2623 = vld [vmem:[%s2530 + $0x2e0] sm:$0xff]
        %v2624 = vld [vmem:[%s2530 + $0x2e8] sm:$0xff]
        %v2625 = vld [vmem:[%s2530 + $0x2f0] sm:$0xff]
        %v2626 = vld [vmem:[%s2530 + $0x2f8] sm:$0xff]
        %2627 = vmatprep.subr.mxu0 %v2562
        %2628 = vmatpush1.msra.mxu0 %v2561
        %2629 = vmatprep.subr.mxu0 %v2560
        %2630 = vmatpush1.msra.mxu0 %v2559
        %2631 = vmatprep.subr.mxu0 %v2558
        %2632 = vmatpush1.msra.mxu0 %v2557
        %2633 = vmatprep.subr.mxu0 %v2556
        %2634 = vmatpush1.msra.mxu0 %v2555
        %2635 = vmatprep.subr.mxu0 %v2554
        %2636 = vmatpush1.msra.mxu0 %v2553
        %2637 = vmatprep.subr.mxu0 %v2552
        %2638 = vmatpush1.msra.mxu0 %v2551
        %2639 = vmatprep.subr.mxu0 %v2550
        %2640 = vmatpush1.msra.mxu0 %v2549
        %2641 = vmatprep.subr.mxu0 %v2548
        %2642 = vmatpush1.msra.mxu0 %v2547
        %2643 = vmatprep.subr.mxu0 %v2546
        %2644 = vmatpush1.msra.mxu0 %v2545
        %2645 = vmatprep.subr.mxu0 %v2544
        %2646 = vmatpush1.msra.mxu0 %v2543
        %2647 = vmatprep.subr.mxu0 %v2542
        %2648 = vmatpush1.msra.mxu0 %v2541
        %2649 = vmatprep.subr.mxu0 %v2540
        %2650 = vmatpush1.msra.mxu0 %v2539
        %2651 = vmatprep.subr.mxu0 %v2538
        %2652 = vmatpush1.msra.mxu0 %v2537
        %2653 = vmatprep.subr.mxu0 %v2536
        %2654 = vmatpush1.msra.mxu0 %v2535
        %2655 = vmatprep.subr.mxu0 %v2534
        %2656 = vmatpush1.msra.mxu0 %v2533
        %2657 = vmatprep.subr.mxu0 %v2532
        %2658 = vmatpush1.msra.mxu0 %v2531
        %2659 = vmatprep.subr.mxu0 %v2594
        %2660 = vmatpush2.msra.mxu0 %v2593
        %2661 = vmatprep.subr.mxu0 %v2592
        %2662 = vmatpush2.msra.mxu0 %v2591
        %2663 = vmatprep.subr.mxu0 %v2590
        %2664 = vmatpush2.msra.mxu0 %v2589
        %2665 = vmatprep.subr.mxu0 %v2588
        %2666 = vmatpush2.msra.mxu0 %v2587
        %2667 = vmatprep.subr.mxu0 %v2586
        %2668 = vmatpush2.msra.mxu0 %v2585
        %2669 = vmatprep.subr.mxu0 %v2584
        %2670 = vmatpush2.msra.mxu0 %v2583
        %2671 = vmatprep.subr.mxu0 %v2582
        %2672 = vmatpush2.msra.mxu0 %v2581
        %2673 = vmatprep.subr.mxu0 %v2580
        %2674 = vmatpush2.msra.mxu0 %v2579
        %2675 = vmatprep.subr.mxu0 %v2578
        %2676 = vmatpush2.msra.mxu0 %v2577
        %2677 = vmatprep.subr.mxu0 %v2576
        %2678 = vmatpush2.msra.mxu0 %v2575
        %2679 = vmatprep.subr.mxu0 %v2574
        %2680 = vmatpush2.msra.mxu0 %v2573
        %2681 = vmatprep.subr.mxu0 %v2572
        %2682 = vmatpush2.msra.mxu0 %v2571
        %2683 = vmatprep.subr.mxu0 %v2570
        %2684 = vmatpush2.msra.mxu0 %v2569
        %2685 = vmatprep.subr.mxu0 %v2568
        %2686 = vmatpush2.msra.mxu0 %v2567
        %2687 = vmatprep.subr.mxu0 %v2566
        %2688 = vmatpush2.msra.mxu0 %v2565
        %2689 = vmatprep.subr.mxu0 %v2564
        %2690 = vmatpush2.msra.mxu0 %v2563
        %2691 = vmatprep.mubr.f32.mxu0 %v210
        %2692 = vmatmul.mubr.f32.gmra.mxu0 %v209
        %v2693 = vpop.f32.mrf.mxu0
        %v2694 = vadd.f32 0.0, %v2693
        %v2695 = vpop.f32.mrf.mxu0
        %v2696 = vadd.f32 0.0, %v2695
        %2697 = vmatprep.mubr.f32.mxu0 %v216
        %2698 = vmatmul.mubr.f32.gmra.mxu0 %v215
        %v2699 = vpop.f32.mrf.mxu0
        %v2700 = vadd.f32 0.0, %v2699
        %v2701 = vpop.f32.mrf.mxu0
        %v2702 = vadd.f32 0.0, %v2701
        %2703 = vmatprep.mubr.f32.mxu0 %v222
        %2704 = vmatmul.mubr.f32.gmra.mxu0 %v221
        %v2705 = vpop.f32.mrf.mxu0
        %v2706 = vadd.f32 0.0, %v2705
        %v2707 = vpop.f32.mrf.mxu0
        %v2708 = vadd.f32 0.0, %v2707
        %2709 = vmatprep.mubr.f32.mxu0 %v228
        %2710 = vmatmul.mubr.f32.gmra.mxu0 %v227
        %v2711 = vpop.f32.mrf.mxu0
        %v2712 = vadd.f32 0.0, %v2711
        %v2713 = vpop.f32.mrf.mxu0
        %v2714 = vadd.f32 0.0, %v2713
        %2715 = vmatprep.mubr.f32.mxu0 %v234
        %2716 = vmatmul.mubr.f32.gmra.mxu0 %v233
        %v2717 = vpop.f32.mrf.mxu0
        %v2718 = vadd.f32 0.0, %v2717
        %v2719 = vpop.f32.mrf.mxu0
        %v2720 = vadd.f32 0.0, %v2719
        %2721 = vmatprep.mubr.f32.mxu0 %v240
        %2722 = vmatmul.mubr.f32.gmra.mxu0 %v239
        %v2723 = vpop.f32.mrf.mxu0
        %v2724 = vadd.f32 0.0, %v2723
        %v2725 = vpop.f32.mrf.mxu0
        %v2726 = vadd.f32 0.0, %v2725
        %2727 = vmatprep.mubr.f32.mxu0 %v246
        %2728 = vmatmul.mubr.f32.gmra.mxu0 %v245
        %v2729 = vpop.f32.mrf.mxu0
        %v2730 = vadd.f32 0.0, %v2729
        %v2731 = vpop.f32.mrf.mxu0
        %v2732 = vadd.f32 0.0, %v2731
        %2733 = vmatprep.mubr.f32.mxu0 %v252
        %2734 = vmatmul.mubr.f32.gmra.mxu0 %v251
        %v2735 = vpop.f32.mrf.mxu0
        %v2736 = vadd.f32 0.0, %v2735
        %v2737 = vpop.f32.mrf.mxu0
        %v2738 = vadd.f32 0.0, %v2737
        %2739 = vdwg.mxu0
        %2740 = vmatprep.subr.mxu0 %v2626
        %2741 = vmatpush1.msra.mxu0 %v2625
        %2742 = vmatprep.subr.mxu0 %v2624
        %2743 = vmatpush1.msra.mxu0 %v2623
        %2744 = vmatprep.subr.mxu0 %v2622
        %2745 = vmatpush1.msra.mxu0 %v2621
        %2746 = vmatprep.subr.mxu0 %v2620
        %2747 = vmatpush1.msra.mxu0 %v2619
        %2748 = vmatprep.subr.mxu0 %v2618
        %2749 = vmatpush1.msra.mxu0 %v2617
        %2750 = vmatprep.subr.mxu0 %v2616
        %2751 = vmatpush1.msra.mxu0 %v2615
        %2752 = vmatprep.subr.mxu0 %v2614
        %2753 = vmatpush1.msra.mxu0 %v2613
        %2754 = vmatprep.subr.mxu0 %v2612
        %2755 = vmatpush1.msra.mxu0 %v2611
        %2756 = vmatprep.subr.mxu0 %v2610
        %2757 = vmatpush1.msra.mxu0 %v2609
        %2758 = vmatprep.subr.mxu0 %v2608
        %2759 = vmatpush1.msra.mxu0 %v2607
        %2760 = vmatprep.subr.mxu0 %v2606
        %2761 = vmatpush1.msra.mxu0 %v2605
        %2762 = vmatprep.subr.mxu0 %v2604
        %2763 = vmatpush1.msra.mxu0 %v2603
        %2764 = vmatprep.subr.mxu0 %v2602
        %2765 = vmatpush1.msra.mxu0 %v2601
        %2766 = vmatprep.subr.mxu0 %v2600
        %2767 = vmatpush1.msra.mxu0 %v2599
        %2768 = vmatprep.subr.mxu0 %v2598
        %2769 = vmatpush1.msra.mxu0 %v2597
        %2770 = vmatprep.subr.mxu0 %v2596
        %2771 = vmatpush1.msra.mxu0 %v2595
        %2772 = vmatprep.subr.mxu0 0.0
        %2773 = vmatpush2.msra.mxu0 0.0
        %2774 = vmatprep.subr.mxu0 0.0
        %2775 = vmatpush2.msra.mxu0 0.0
        %2776 = vmatprep.subr.mxu0 0.0
        %2777 = vmatpush2.msra.mxu0 0.0
        %2778 = vmatprep.subr.mxu0 0.0
        %2779 = vmatpush2.msra.mxu0 0.0
        %2780 = vmatprep.subr.mxu0 0.0
        %2781 = vmatpush2.msra.mxu0 0.0
        %2782 = vmatprep.subr.mxu0 0.0
        %2783 = vmatpush2.msra.mxu0 0.0
        %2784 = vmatprep.subr.mxu0 0.0
        %2785 = vmatpush2.msra.mxu0 0.0
        %2786 = vmatprep.subr.mxu0 0.0
        %2787 = vmatpush2.msra.mxu0 0.0
        %2788 = vmatprep.subr.mxu0 0.0
        %2789 = vmatpush2.msra.mxu0 0.0
        %2790 = vmatprep.subr.mxu0 0.0
        %2791 = vmatpush2.msra.mxu0 0.0
        %2792 = vmatprep.subr.mxu0 0.0
        %2793 = vmatpush2.msra.mxu0 0.0
        %2794 = vmatprep.subr.mxu0 0.0
        %2795 = vmatpush2.msra.mxu0 0.0
        %2796 = vmatprep.subr.mxu0 0.0
        %2797 = vmatpush2.msra.mxu0 0.0
        %2798 = vmatprep.subr.mxu0 0.0
        %2799 = vmatpush2.msra.mxu0 0.0
        %2800 = vmatprep.subr.mxu0 0.0
        %2801 = vmatpush2.msra.mxu0 0.0
        %2802 = vmatprep.subr.mxu0 0.0
        %2803 = vmatpush2.msra.mxu0 0.0
        %2804 = vmatprep.mubr.f32.mxu0 0.0
        %2805 = vmatmul.mubr.f32.gmra.mxu0 %v211
        %v2806 = vpop.f32.mrf.mxu0
        %v2807 = vadd.f32 %v2694, %v2806
        %v2808 = vpop.f32.mrf.mxu0
        %v2809 = vadd.f32 %v2696, %v2808
        %2810 = vmatprep.mubr.f32.mxu0 0.0
        %2811 = vmatmul.mubr.f32.gmra.mxu0 %v217
        %v2812 = vpop.f32.mrf.mxu0
        %v2813 = vadd.f32 %v2700, %v2812
        %v2814 = vpop.f32.mrf.mxu0
        %v2815 = vadd.f32 %v2702, %v2814
        %2816 = vmatprep.mubr.f32.mxu0 0.0
        %2817 = vmatmul.mubr.f32.gmra.mxu0 %v223
        %v2818 = vpop.f32.mrf.mxu0
        %v2819 = vadd.f32 %v2706, %v2818
        %v2820 = vpop.f32.mrf.mxu0
        %v2821 = vadd.f32 %v2708, %v2820
        %2822 = vmatprep.mubr.f32.mxu0 0.0
        %2823 = vmatmul.mubr.f32.gmra.mxu0 %v229
        %v2824 = vpop.f32.mrf.mxu0
        %v2825 = vadd.f32 %v2712, %v2824
        %v2826 = vpop.f32.mrf.mxu0
        %v2827 = vadd.f32 %v2714, %v2826
        %2828 = vmatprep.mubr.f32.mxu0 0.0
        %2829 = vmatmul.mubr.f32.gmra.mxu0 %v235
        %v2830 = vpop.f32.mrf.mxu0
        %v2831 = vadd.f32 %v2718, %v2830
        %v2832 = vpop.f32.mrf.mxu0
        %v2833 = vadd.f32 %v2720, %v2832
        %2834 = vmatprep.mubr.f32.mxu0 0.0
        %2835 = vmatmul.mubr.f32.gmra.mxu0 %v241
        %v2836 = vpop.f32.mrf.mxu0
        %v2837 = vadd.f32 %v2724, %v2836
        %v2838 = vpop.f32.mrf.mxu0
        %v2839 = vadd.f32 %v2726, %v2838
        %2840 = vmatprep.mubr.f32.mxu0 0.0
        %2841 = vmatmul.mubr.f32.gmra.mxu0 %v247
        %v2842 = vpop.f32.mrf.mxu0
        %v2843 = vadd.f32 %v2730, %v2842
        %v2844 = vpop.f32.mrf.mxu0
        %v2845 = vadd.f32 %v2732, %v2844
        %2846 = vmatprep.mubr.f32.mxu0 0.0
        %2847 = vmatmul.mubr.f32.gmra.mxu0 %v253
        %v2848 = vpop.f32.mrf.mxu0
        %v2849 = vadd.f32 %v2736, %v2848
        %v2850 = vpop.f32.mrf.mxu0
        %v2851 = vadd.f32 %v2738, %v2850
        %2852 = vdwg.mxu0
        %v2853 = vadd.f32 %v2514, %v2807
        %v2854 = vadd.f32 %v2515, %v2809
        %v2855 = vadd.f32 %v2516, %v2813
        %v2856 = vadd.f32 %v2517, %v2815
        %v2857 = vadd.f32 %v2518, %v2819
        %v2858 = vadd.f32 %v2519, %v2821
        %v2859 = vadd.f32 %v2520, %v2825
        %v2860 = vadd.f32 %v2521, %v2827
        %v2861 = vadd.f32 %v2522, %v2831
        %v2862 = vadd.f32 %v2523, %v2833
        %v2863 = vadd.f32 %v2524, %v2837
        %v2864 = vadd.f32 %v2525, %v2839
        %v2865 = vadd.f32 %v2526, %v2843
        %v2866 = vadd.f32 %v2527, %v2845
        %v2867 = vadd.f32 %v2528, %v2849
        %v2868 = vadd.f32 %v2529, %v2851
        %v2875 = vrot.slane %v251, 1
        %v2876 = vrot.slane %v254, 1
        %v2877 = vsel %vm401, %v2875, %v2876
        %v2878 = vrot.slane %v252, 1
        %v2879 = vrot.slane %v255, 1
        %v2880 = vsel %vm401, %v2878, %v2879
        %v2881 = vrot.slane %v253, 1
        %v2882 = vrot.slane %v256, 1
        %v2883 = vsel %vm401, %v2881, %v2882
        %s2887 = scalar_lea.vmem [#allocation2], 5376
        %v2888 = vld [vmem:[%s2887] sm:$0xff]
        %v2889 = vld [vmem:[%s2887 + $0x8] sm:$0xff]
        %v2890 = vld [vmem:[%s2887 + $0x10] sm:$0xff]
        %v2891 = vld [vmem:[%s2887 + $0x18] sm:$0xff]
        %v2892 = vld [vmem:[%s2887 + $0x20] sm:$0xff]
        %v2893 = vld [vmem:[%s2887 + $0x28] sm:$0xff]
        %v2894 = vld [vmem:[%s2887 + $0x30] sm:$0xff]
        %v2895 = vld [vmem:[%s2887 + $0x38] sm:$0xff]
        %v2896 = vld [vmem:[%s2887 + $0x40] sm:$0xff]
        %v2897 = vld [vmem:[%s2887 + $0x48] sm:$0xff]
        %v2898 = vld [vmem:[%s2887 + $0x50] sm:$0xff]
        %v2899 = vld [vmem:[%s2887 + $0x58] sm:$0xff]
        %v2900 = vld [vmem:[%s2887 + $0x60] sm:$0xff]
        %v2901 = vld [vmem:[%s2887 + $0x68] sm:$0xff]
        %v2902 = vld [vmem:[%s2887 + $0x70] sm:$0xff]
        %v2903 = vld [vmem:[%s2887 + $0x78] sm:$0xff]
        %v2904 = vld [vmem:[%s2887 + $0x80] sm:$0xff]
        %v2905 = vld [vmem:[%s2887 + $0x88] sm:$0xff]
        %v2906 = vld [vmem:[%s2887 + $0x90] sm:$0xff]
        %v2907 = vld [vmem:[%s2887 + $0x98] sm:$0xff]
        %v2908 = vld [vmem:[%s2887 + $0xa0] sm:$0xff]
        %v2909 = vld [vmem:[%s2887 + $0xa8] sm:$0xff]
        %v2910 = vld [vmem:[%s2887 + $0xb0] sm:$0xff]
        %v2911 = vld [vmem:[%s2887 + $0xb8] sm:$0xff]
        %v2912 = vld [vmem:[%s2887 + $0xc0] sm:$0xff]
        %v2913 = vld [vmem:[%s2887 + $0xc8] sm:$0xff]
        %v2914 = vld [vmem:[%s2887 + $0xd0] sm:$0xff]
        %v2915 = vld [vmem:[%s2887 + $0xd8] sm:$0xff]
        %v2916 = vld [vmem:[%s2887 + $0xe0] sm:$0xff]
        %v2917 = vld [vmem:[%s2887 + $0xe8] sm:$0xff]
        %v2918 = vld [vmem:[%s2887 + $0xf0] sm:$0xff]
        %v2919 = vld [vmem:[%s2887 + $0xf8] sm:$0xff]
        %v2920 = vld [vmem:[%s2887 + $0x100] sm:$0xff]
        %v2921 = vld [vmem:[%s2887 + $0x108] sm:$0xff]
        %v2922 = vld [vmem:[%s2887 + $0x110] sm:$0xff]
        %v2923 = vld [vmem:[%s2887 + $0x118] sm:$0xff]
        %v2924 = vld [vmem:[%s2887 + $0x120] sm:$0xff]
        %v2925 = vld [vmem:[%s2887 + $0x128] sm:$0xff]
        %v2926 = vld [vmem:[%s2887 + $0x130] sm:$0xff]
        %v2927 = vld [vmem:[%s2887 + $0x138] sm:$0xff]
        %v2928 = vld [vmem:[%s2887 + $0x140] sm:$0xff]
        %v2929 = vld [vmem:[%s2887 + $0x148] sm:$0xff]
        %v2930 = vld [vmem:[%s2887 + $0x150] sm:$0xff]
        %v2931 = vld [vmem:[%s2887 + $0x158] sm:$0xff]
        %v2932 = vld [vmem:[%s2887 + $0x160] sm:$0xff]
        %v2933 = vld [vmem:[%s2887 + $0x168] sm:$0xff]
        %v2934 = vld [vmem:[%s2887 + $0x170] sm:$0xff]
        %v2935 = vld [vmem:[%s2887 + $0x178] sm:$0xff]
        %v2936 = vld [vmem:[%s2887 + $0x180] sm:$0xff]
        %v2937 = vld [vmem:[%s2887 + $0x188] sm:$0xff]
        %v2938 = vld [vmem:[%s2887 + $0x190] sm:$0xff]
        %v2939 = vld [vmem:[%s2887 + $0x198] sm:$0xff]
        %v2940 = vld [vmem:[%s2887 + $0x1a0] sm:$0xff]
        %v2941 = vld [vmem:[%s2887 + $0x1a8] sm:$0xff]
        %v2942 = vld [vmem:[%s2887 + $0x1b0] sm:$0xff]
        %v2943 = vld [vmem:[%s2887 + $0x1b8] sm:$0xff]
        %v2944 = vld [vmem:[%s2887 + $0x1c0] sm:$0xff]
        %v2945 = vld [vmem:[%s2887 + $0x1c8] sm:$0xff]
        %v2946 = vld [vmem:[%s2887 + $0x1d0] sm:$0xff]
        %v2947 = vld [vmem:[%s2887 + $0x1d8] sm:$0xff]
        %v2948 = vld [vmem:[%s2887 + $0x1e0] sm:$0xff]
        %v2949 = vld [vmem:[%s2887 + $0x1e8] sm:$0xff]
        %v2950 = vld [vmem:[%s2887 + $0x1f0] sm:$0xff]
        %v2951 = vld [vmem:[%s2887 + $0x1f8] sm:$0xff]
        %v2952 = vld [vmem:[%s2887 + $0x200] sm:$0xff]
        %v2953 = vld [vmem:[%s2887 + $0x208] sm:$0xff]
        %v2954 = vld [vmem:[%s2887 + $0x210] sm:$0xff]
        %v2955 = vld [vmem:[%s2887 + $0x218] sm:$0xff]
        %v2956 = vld [vmem:[%s2887 + $0x220] sm:$0xff]
        %v2957 = vld [vmem:[%s2887 + $0x228] sm:$0xff]
        %v2958 = vld [vmem:[%s2887 + $0x230] sm:$0xff]
        %v2959 = vld [vmem:[%s2887 + $0x238] sm:$0xff]
        %v2960 = vld [vmem:[%s2887 + $0x240] sm:$0xff]
        %v2961 = vld [vmem:[%s2887 + $0x248] sm:$0xff]
        %v2962 = vld [vmem:[%s2887 + $0x250] sm:$0xff]
        %v2963 = vld [vmem:[%s2887 + $0x258] sm:$0xff]
        %v2964 = vld [vmem:[%s2887 + $0x260] sm:$0xff]
        %v2965 = vld [vmem:[%s2887 + $0x268] sm:$0xff]
        %v2966 = vld [vmem:[%s2887 + $0x270] sm:$0xff]
        %v2967 = vld [vmem:[%s2887 + $0x278] sm:$0xff]
        %v2968 = vld [vmem:[%s2887 + $0x280] sm:$0xff]
        %v2969 = vld [vmem:[%s2887 + $0x288] sm:$0xff]
        %v2970 = vld [vmem:[%s2887 + $0x290] sm:$0xff]
        %v2971 = vld [vmem:[%s2887 + $0x298] sm:$0xff]
        %v2972 = vld [vmem:[%s2887 + $0x2a0] sm:$0xff]
        %v2973 = vld [vmem:[%s2887 + $0x2a8] sm:$0xff]
        %v2974 = vld [vmem:[%s2887 + $0x2b0] sm:$0xff]
        %v2975 = vld [vmem:[%s2887 + $0x2b8] sm:$0xff]
        %v2976 = vld [vmem:[%s2887 + $0x2c0] sm:$0xff]
        %v2977 = vld [vmem:[%s2887 + $0x2c8] sm:$0xff]
        %v2978 = vld [vmem:[%s2887 + $0x2d0] sm:$0xff]
        %v2979 = vld [vmem:[%s2887 + $0x2d8] sm:$0xff]
        %v2980 = vld [vmem:[%s2887 + $0x2e0] sm:$0xff]
        %v2981 = vld [vmem:[%s2887 + $0x2e8] sm:$0xff]
        %v2982 = vld [vmem:[%s2887 + $0x2f0] sm:$0xff]
        %v2983 = vld [vmem:[%s2887 + $0x2f8] sm:$0xff]
        %2984 = vmatprep.subr.mxu0 %v2919
        %2985 = vmatpush1.msra.mxu0 %v2918
        %2986 = vmatprep.subr.mxu0 %v2917
        %2987 = vmatpush1.msra.mxu0 %v2916
        %2988 = vmatprep.subr.mxu0 %v2915
        %2989 = vmatpush1.msra.mxu0 %v2914
        %2990 = vmatprep.subr.mxu0 %v2913
        %2991 = vmatpush1.msra.mxu0 %v2912
        %2992 = vmatprep.subr.mxu0 %v2911
        %2993 = vmatpush1.msra.mxu0 %v2910
        %2994 = vmatprep.subr.mxu0 %v2909
        %2995 = vmatpush1.msra.mxu0 %v2908
        %2996 = vmatprep.subr.mxu0 %v2907
        %2997 = vmatpush1.msra.mxu0 %v2906
        %2998 = vmatprep.subr.mxu0 %v2905
        %2999 = vmatpush1.msra.mxu0 %v2904
        %3000 = vmatprep.subr.mxu0 %v2903
        %3001 = vmatpush1.msra.mxu0 %v2902
        %3002 = vmatprep.subr.mxu0 %v2901
        %3003 = vmatpush1.msra.mxu0 %v2900
        %3004 = vmatprep.subr.mxu0 %v2899
        %3005 = vmatpush1.msra.mxu0 %v2898
        %3006 = vmatprep.subr.mxu0 %v2897
        %3007 = vmatpush1.msra.mxu0 %v2896
        %3008 = vmatprep.subr.mxu0 %v2895
        %3009 = vmatpush1.msra.mxu0 %v2894
        %3010 = vmatprep.subr.mxu0 %v2893
        %3011 = vmatpush1.msra.mxu0 %v2892
        %3012 = vmatprep.subr.mxu0 %v2891
        %3013 = vmatpush1.msra.mxu0 %v2890
        %3014 = vmatprep.subr.mxu0 %v2889
        %3015 = vmatpush1.msra.mxu0 %v2888
        %3016 = vmatprep.subr.mxu0 %v2951
        %3017 = vmatpush2.msra.mxu0 %v2950
        %3018 = vmatprep.subr.mxu0 %v2949
        %3019 = vmatpush2.msra.mxu0 %v2948
        %3020 = vmatprep.subr.mxu0 %v2947
        %3021 = vmatpush2.msra.mxu0 %v2946
        %3022 = vmatprep.subr.mxu0 %v2945
        %3023 = vmatpush2.msra.mxu0 %v2944
        %3024 = vmatprep.subr.mxu0 %v2943
        %3025 = vmatpush2.msra.mxu0 %v2942
        %3026 = vmatprep.subr.mxu0 %v2941
        %3027 = vmatpush2.msra.mxu0 %v2940
        %3028 = vmatprep.subr.mxu0 %v2939
        %3029 = vmatpush2.msra.mxu0 %v2938
        %3030 = vmatprep.subr.mxu0 %v2937
        %3031 = vmatpush2.msra.mxu0 %v2936
        %3032 = vmatprep.subr.mxu0 %v2935
        %3033 = vmatpush2.msra.mxu0 %v2934
        %3034 = vmatprep.subr.mxu0 %v2933
        %3035 = vmatpush2.msra.mxu0 %v2932
        %3036 = vmatprep.subr.mxu0 %v2931
        %3037 = vmatpush2.msra.mxu0 %v2930
        %3038 = vmatprep.subr.mxu0 %v2929
        %3039 = vmatpush2.msra.mxu0 %v2928
        %3040 = vmatprep.subr.mxu0 %v2927
        %3041 = vmatpush2.msra.mxu0 %v2926
        %3042 = vmatprep.subr.mxu0 %v2925
        %3043 = vmatpush2.msra.mxu0 %v2924
        %3044 = vmatprep.subr.mxu0 %v2923
        %3045 = vmatpush2.msra.mxu0 %v2922
        %3046 = vmatprep.subr.mxu0 %v2921
        %3047 = vmatpush2.msra.mxu0 %v2920
        %3048 = vmatprep.mubr.f32.mxu0 %v425
        %3049 = vmatmul.mubr.f32.gmra.mxu0 %v422
        %v3050 = vpop.f32.mrf.mxu0
        %v3051 = vadd.f32 0.0, %v3050
        %v3052 = vpop.f32.mrf.mxu0
        %v3053 = vadd.f32 0.0, %v3052
        %3054 = vmatprep.mubr.f32.mxu0 %v434
        %3055 = vmatmul.mubr.f32.gmra.mxu0 %v431
        %v3056 = vpop.f32.mrf.mxu0
        %v3057 = vadd.f32 0.0, %v3056
        %v3058 = vpop.f32.mrf.mxu0
        %v3059 = vadd.f32 0.0, %v3058
        %3060 = vmatprep.mubr.f32.mxu0 %v443
        %3061 = vmatmul.mubr.f32.gmra.mxu0 %v440
        %v3062 = vpop.f32.mrf.mxu0
        %v3063 = vadd.f32 0.0, %v3062
        %v3064 = vpop.f32.mrf.mxu0
        %v3065 = vadd.f32 0.0, %v3064
        %3066 = vmatprep.mubr.f32.mxu0 %v452
        %3067 = vmatmul.mubr.f32.gmra.mxu0 %v449
        %v3068 = vpop.f32.mrf.mxu0
        %v3069 = vadd.f32 0.0, %v3068
        %v3070 = vpop.f32.mrf.mxu0
        %v3071 = vadd.f32 0.0, %v3070
        %3072 = vmatprep.mubr.f32.mxu0 %v461
        %3073 = vmatmul.mubr.f32.gmra.mxu0 %v458
        %v3074 = vpop.f32.mrf.mxu0
        %v3075 = vadd.f32 0.0, %v3074
        %v3076 = vpop.f32.mrf.mxu0
        %v3077 = vadd.f32 0.0, %v3076
        %3078 = vmatprep.mubr.f32.mxu0 %v470
        %3079 = vmatmul.mubr.f32.gmra.mxu0 %v467
        %v3080 = vpop.f32.mrf.mxu0
        %v3081 = vadd.f32 0.0, %v3080
        %v3082 = vpop.f32.mrf.mxu0
        %v3083 = vadd.f32 0.0, %v3082
        %3084 = vmatprep.mubr.f32.mxu0 %v1833
        %3085 = vmatmul.mubr.f32.gmra.mxu0 %v1830
        %v3086 = vpop.f32.mrf.mxu0
        %v3087 = vadd.f32 0.0, %v3086
        %v3088 = vpop.f32.mrf.mxu0
        %v3089 = vadd.f32 0.0, %v3088
        %3090 = vmatprep.mubr.f32.mxu0 %v2880
        %3091 = vmatmul.mubr.f32.gmra.mxu0 %v2877
        %v3092 = vpop.f32.mrf.mxu0
        %v3093 = vadd.f32 0.0, %v3092
        %v3094 = vpop.f32.mrf.mxu0
        %v3095 = vadd.f32 0.0, %v3094
        %3096 = vdwg.mxu0
        %3097 = vmatprep.subr.mxu0 %v2983
        %3098 = vmatpush1.msra.mxu0 %v2982
        %3099 = vmatprep.subr.mxu0 %v2981
        %3100 = vmatpush1.msra.mxu0 %v2980
        %3101 = vmatprep.subr.mxu0 %v2979
        %3102 = vmatpush1.msra.mxu0 %v2978
        %3103 = vmatprep.subr.mxu0 %v2977
        %3104 = vmatpush1.msra.mxu0 %v2976
        %3105 = vmatprep.subr.mxu0 %v2975
        %3106 = vmatpush1.msra.mxu0 %v2974
        %3107 = vmatprep.subr.mxu0 %v2973
        %3108 = vmatpush1.msra.mxu0 %v2972
        %3109 = vmatprep.subr.mxu0 %v2971
        %3110 = vmatpush1.msra.mxu0 %v2970
        %3111 = vmatprep.subr.mxu0 %v2969
        %3112 = vmatpush1.msra.mxu0 %v2968
        %3113 = vmatprep.subr.mxu0 %v2967
        %3114 = vmatpush1.msra.mxu0 %v2966
        %3115 = vmatprep.subr.mxu0 %v2965
        %3116 = vmatpush1.msra.mxu0 %v2964
        %3117 = vmatprep.subr.mxu0 %v2963
        %3118 = vmatpush1.msra.mxu0 %v2962
        %3119 = vmatprep.subr.mxu0 %v2961
        %3120 = vmatpush1.msra.mxu0 %v2960
        %3121 = vmatprep.subr.mxu0 %v2959
        %3122 = vmatpush1.msra.mxu0 %v2958
        %3123 = vmatprep.subr.mxu0 %v2957
        %3124 = vmatpush1.msra.mxu0 %v2956
        %3125 = vmatprep.subr.mxu0 %v2955
        %3126 = vmatpush1.msra.mxu0 %v2954
        %3127 = vmatprep.subr.mxu0 %v2953
        %3128 = vmatpush1.msra.mxu0 %v2952
        %3129 = vmatprep.subr.mxu0 0.0
        %3130 = vmatpush2.msra.mxu0 0.0
        %3131 = vmatprep.subr.mxu0 0.0
        %3132 = vmatpush2.msra.mxu0 0.0
        %3133 = vmatprep.subr.mxu0 0.0
        %3134 = vmatpush2.msra.mxu0 0.0
        %3135 = vmatprep.subr.mxu0 0.0
        %3136 = vmatpush2.msra.mxu0 0.0
        %3137 = vmatprep.subr.mxu0 0.0
        %3138 = vmatpush2.msra.mxu0 0.0
        %3139 = vmatprep.subr.mxu0 0.0
        %3140 = vmatpush2.msra.mxu0 0.0
        %3141 = vmatprep.subr.mxu0 0.0
        %3142 = vmatpush2.msra.mxu0 0.0
        %3143 = vmatprep.subr.mxu0 0.0
        %3144 = vmatpush2.msra.mxu0 0.0
        %3145 = vmatprep.subr.mxu0 0.0
        %3146 = vmatpush2.msra.mxu0 0.0
        %3147 = vmatprep.subr.mxu0 0.0
        %3148 = vmatpush2.msra.mxu0 0.0
        %3149 = vmatprep.subr.mxu0 0.0
        %3150 = vmatpush2.msra.mxu0 0.0
        %3151 = vmatprep.subr.mxu0 0.0
        %3152 = vmatpush2.msra.mxu0 0.0
        %3153 = vmatprep.subr.mxu0 0.0
        %3154 = vmatpush2.msra.mxu0 0.0
        %3155 = vmatprep.subr.mxu0 0.0
        %3156 = vmatpush2.msra.mxu0 0.0
        %3157 = vmatprep.subr.mxu0 0.0
        %3158 = vmatpush2.msra.mxu0 0.0
        %3159 = vmatprep.subr.mxu0 0.0
        %3160 = vmatpush2.msra.mxu0 0.0
        %3161 = vmatprep.mubr.f32.mxu0 0.0
        %3162 = vmatmul.mubr.f32.gmra.mxu0 %v428
        %v3163 = vpop.f32.mrf.mxu0
        %v3164 = vadd.f32 %v3051, %v3163
        %v3165 = vpop.f32.mrf.mxu0
        %v3166 = vadd.f32 %v3053, %v3165
        %3167 = vmatprep.mubr.f32.mxu0 0.0
        %3168 = vmatmul.mubr.f32.gmra.mxu0 %v437
        %v3169 = vpop.f32.mrf.mxu0
        %v3170 = vadd.f32 %v3057, %v3169
        %v3171 = vpop.f32.mrf.mxu0
        %v3172 = vadd.f32 %v3059, %v3171
        %3173 = vmatprep.mubr.f32.mxu0 0.0
        %3174 = vmatmul.mubr.f32.gmra.mxu0 %v446
        %v3175 = vpop.f32.mrf.mxu0
        %v3176 = vadd.f32 %v3063, %v3175
        %v3177 = vpop.f32.mrf.mxu0
        %v3178 = vadd.f32 %v3065, %v3177
        %3179 = vmatprep.mubr.f32.mxu0 0.0
        %3180 = vmatmul.mubr.f32.gmra.mxu0 %v455
        %v3181 = vpop.f32.mrf.mxu0
        %v3182 = vadd.f32 %v3069, %v3181
        %v3183 = vpop.f32.mrf.mxu0
        %v3184 = vadd.f32 %v3071, %v3183
        %3185 = vmatprep.mubr.f32.mxu0 0.0
        %3186 = vmatmul.mubr.f32.gmra.mxu0 %v464
        %v3187 = vpop.f32.mrf.mxu0
        %v3188 = vadd.f32 %v3075, %v3187
        %v3189 = vpop.f32.mrf.mxu0
        %v3190 = vadd.f32 %v3077, %v3189
        %3191 = vmatprep.mubr.f32.mxu0 0.0
        %3192 = vmatmul.mubr.f32.gmra.mxu0 %v473
        %v3193 = vpop.f32.mrf.mxu0
        %v3194 = vadd.f32 %v3081, %v3193
        %v3195 = vpop.f32.mrf.mxu0
        %v3196 = vadd.f32 %v3083, %v3195
        %3197 = vmatprep.mubr.f32.mxu0 0.0
        %3198 = vmatmul.mubr.f32.gmra.mxu0 %v1836
        %v3199 = vpop.f32.mrf.mxu0
        %v3200 = vadd.f32 %v3087, %v3199
        %v3201 = vpop.f32.mrf.mxu0
        %v3202 = vadd.f32 %v3089, %v3201
        %3203 = vmatprep.mubr.f32.mxu0 0.0
        %3204 = vmatmul.mubr.f32.gmra.mxu0 %v2883
        %v3205 = vpop.f32.mrf.mxu0
        %v3206 = vadd.f32 %v3093, %v3205
        %v3207 = vpop.f32.mrf.mxu0
        %v3208 = vadd.f32 %v3095, %v3207
        %3209 = vdwg.mxu0
        %v3210 = vadd.f32 %v2853, %v3164
        %v3211 = vadd.f32 %v2854, %v3166
        %v3212 = vadd.f32 %v2855, %v3170
        %v3213 = vadd.f32 %v2856, %v3172
        %v3214 = vadd.f32 %v2857, %v3176
        %v3215 = vadd.f32 %v2858, %v3178
        %v3216 = vadd.f32 %v2859, %v3182
        %v3217 = vadd.f32 %v2860, %v3184
        %v3218 = vadd.f32 %v2861, %v3188
        %v3219 = vadd.f32 %v2862, %v3190
        %v3220 = vadd.f32 %v2863, %v3194
        %v3221 = vadd.f32 %v2864, %v3196
        %v3222 = vadd.f32 %v2865, %v3200
        %v3223 = vadd.f32 %v2866, %v3202
        %v3224 = vadd.f32 %v2867, %v3206
        %v3225 = vadd.f32 %v2868, %v3208
        %v3226 = vrot.slane %v251, 2
        %v3227 = vrot.slane %v254, 2
        %v3228 = vsel %vm1047, %v3226, %v3227
        %v3229 = vrot.slane %v252, 2
        %v3230 = vrot.slane %v255, 2
        %v3231 = vsel %vm1047, %v3229, %v3230
        %v3232 = vrot.slane %v253, 2
        %v3233 = vrot.slane %v256, 2
        %v3234 = vsel %vm1047, %v3232, %v3233
        %s3238 = scalar_lea.vmem [#allocation2], 6144
        %v3239 = vld [vmem:[%s3238] sm:$0xff]
        %v3240 = vld [vmem:[%s3238 + $0x8] sm:$0xff]
        %v3241 = vld [vmem:[%s3238 + $0x10] sm:$0xff]
        %v3242 = vld [vmem:[%s3238 + $0x18] sm:$0xff]
        %v3243 = vld [vmem:[%s3238 + $0x20] sm:$0xff]
        %v3244 = vld [vmem:[%s3238 + $0x28] sm:$0xff]
        %v3245 = vld [vmem:[%s3238 + $0x30] sm:$0xff]
        %v3246 = vld [vmem:[%s3238 + $0x38] sm:$0xff]
        %v3247 = vld [vmem:[%s3238 + $0x40] sm:$0xff]
        %v3248 = vld [vmem:[%s3238 + $0x48] sm:$0xff]
        %v3249 = vld [vmem:[%s3238 + $0x50] sm:$0xff]
        %v3250 = vld [vmem:[%s3238 + $0x58] sm:$0xff]
        %v3251 = vld [vmem:[%s3238 + $0x60] sm:$0xff]
        %v3252 = vld [vmem:[%s3238 + $0x68] sm:$0xff]
        %v3253 = vld [vmem:[%s3238 + $0x70] sm:$0xff]
        %v3254 = vld [vmem:[%s3238 + $0x78] sm:$0xff]
        %v3255 = vld [vmem:[%s3238 + $0x80] sm:$0xff]
        %v3256 = vld [vmem:[%s3238 + $0x88] sm:$0xff]
        %v3257 = vld [vmem:[%s3238 + $0x90] sm:$0xff]
        %v3258 = vld [vmem:[%s3238 + $0x98] sm:$0xff]
        %v3259 = vld [vmem:[%s3238 + $0xa0] sm:$0xff]
        %v3260 = vld [vmem:[%s3238 + $0xa8] sm:$0xff]
        %v3261 = vld [vmem:[%s3238 + $0xb0] sm:$0xff]
        %v3262 = vld [vmem:[%s3238 + $0xb8] sm:$0xff]
        %v3263 = vld [vmem:[%s3238 + $0xc0] sm:$0xff]
        %v3264 = vld [vmem:[%s3238 + $0xc8] sm:$0xff]
        %v3265 = vld [vmem:[%s3238 + $0xd0] sm:$0xff]
        %v3266 = vld [vmem:[%s3238 + $0xd8] sm:$0xff]
        %v3267 = vld [vmem:[%s3238 + $0xe0] sm:$0xff]
        %v3268 = vld [vmem:[%s3238 + $0xe8] sm:$0xff]
        %v3269 = vld [vmem:[%s3238 + $0xf0] sm:$0xff]
        %v3270 = vld [vmem:[%s3238 + $0xf8] sm:$0xff]
        %v3271 = vld [vmem:[%s3238 + $0x100] sm:$0xff]
        %v3272 = vld [vmem:[%s3238 + $0x108] sm:$0xff]
        %v3273 = vld [vmem:[%s3238 + $0x110] sm:$0xff]
        %v3274 = vld [vmem:[%s3238 + $0x118] sm:$0xff]
        %v3275 = vld [vmem:[%s3238 + $0x120] sm:$0xff]
        %v3276 = vld [vmem:[%s3238 + $0x128] sm:$0xff]
        %v3277 = vld [vmem:[%s3238 + $0x130] sm:$0xff]
        %v3278 = vld [vmem:[%s3238 + $0x138] sm:$0xff]
        %v3279 = vld [vmem:[%s3238 + $0x140] sm:$0xff]
        %v3280 = vld [vmem:[%s3238 + $0x148] sm:$0xff]
        %v3281 = vld [vmem:[%s3238 + $0x150] sm:$0xff]
        %v3282 = vld [vmem:[%s3238 + $0x158] sm:$0xff]
        %v3283 = vld [vmem:[%s3238 + $0x160] sm:$0xff]
        %v3284 = vld [vmem:[%s3238 + $0x168] sm:$0xff]
        %v3285 = vld [vmem:[%s3238 + $0x170] sm:$0xff]
        %v3286 = vld [vmem:[%s3238 + $0x178] sm:$0xff]
        %v3287 = vld [vmem:[%s3238 + $0x180] sm:$0xff]
        %v3288 = vld [vmem:[%s3238 + $0x188] sm:$0xff]
        %v3289 = vld [vmem:[%s3238 + $0x190] sm:$0xff]
        %v3290 = vld [vmem:[%s3238 + $0x198] sm:$0xff]
        %v3291 = vld [vmem:[%s3238 + $0x1a0] sm:$0xff]
        %v3292 = vld [vmem:[%s3238 + $0x1a8] sm:$0xff]
        %v3293 = vld [vmem:[%s3238 + $0x1b0] sm:$0xff]
        %v3294 = vld [vmem:[%s3238 + $0x1b8] sm:$0xff]
        %v3295 = vld [vmem:[%s3238 + $0x1c0] sm:$0xff]
        %v3296 = vld [vmem:[%s3238 + $0x1c8] sm:$0xff]
        %v3297 = vld [vmem:[%s3238 + $0x1d0] sm:$0xff]
        %v3298 = vld [vmem:[%s3238 + $0x1d8] sm:$0xff]
        %v3299 = vld [vmem:[%s3238 + $0x1e0] sm:$0xff]
        %v3300 = vld [vmem:[%s3238 + $0x1e8] sm:$0xff]
        %v3301 = vld [vmem:[%s3238 + $0x1f0] sm:$0xff]
        %v3302 = vld [vmem:[%s3238 + $0x1f8] sm:$0xff]
        %v3303 = vld [vmem:[%s3238 + $0x200] sm:$0xff]
        %v3304 = vld [vmem:[%s3238 + $0x208] sm:$0xff]
        %v3305 = vld [vmem:[%s3238 + $0x210] sm:$0xff]
        %v3306 = vld [vmem:[%s3238 + $0x218] sm:$0xff]
        %v3307 = vld [vmem:[%s3238 + $0x220] sm:$0xff]
        %v3308 = vld [vmem:[%s3238 + $0x228] sm:$0xff]
        %v3309 = vld [vmem:[%s3238 + $0x230] sm:$0xff]
        %v3310 = vld [vmem:[%s3238 + $0x238] sm:$0xff]
        %v3311 = vld [vmem:[%s3238 + $0x240] sm:$0xff]
        %v3312 = vld [vmem:[%s3238 + $0x248] sm:$0xff]
        %v3313 = vld [vmem:[%s3238 + $0x250] sm:$0xff]
        %v3314 = vld [vmem:[%s3238 + $0x258] sm:$0xff]
        %v3315 = vld [vmem:[%s3238 + $0x260] sm:$0xff]
        %v3316 = vld [vmem:[%s3238 + $0x268] sm:$0xff]
        %v3317 = vld [vmem:[%s3238 + $0x270] sm:$0xff]
        %v3318 = vld [vmem:[%s3238 + $0x278] sm:$0xff]
        %v3319 = vld [vmem:[%s3238 + $0x280] sm:$0xff]
        %v3320 = vld [vmem:[%s3238 + $0x288] sm:$0xff]
        %v3321 = vld [vmem:[%s3238 + $0x290] sm:$0xff]
        %v3322 = vld [vmem:[%s3238 + $0x298] sm:$0xff]
        %v3323 = vld [vmem:[%s3238 + $0x2a0] sm:$0xff]
        %v3324 = vld [vmem:[%s3238 + $0x2a8] sm:$0xff]
        %v3325 = vld [vmem:[%s3238 + $0x2b0] sm:$0xff]
        %v3326 = vld [vmem:[%s3238 + $0x2b8] sm:$0xff]
        %v3327 = vld [vmem:[%s3238 + $0x2c0] sm:$0xff]
        %v3328 = vld [vmem:[%s3238 + $0x2c8] sm:$0xff]
        %v3329 = vld [vmem:[%s3238 + $0x2d0] sm:$0xff]
        %v3330 = vld [vmem:[%s3238 + $0x2d8] sm:$0xff]
        %v3331 = vld [vmem:[%s3238 + $0x2e0] sm:$0xff]
        %v3332 = vld [vmem:[%s3238 + $0x2e8] sm:$0xff]
        %v3333 = vld [vmem:[%s3238 + $0x2f0] sm:$0xff]
        %v3334 = vld [vmem:[%s3238 + $0x2f8] sm:$0xff]
        %3335 = vmatprep.subr.mxu0 %v3270
        %3336 = vmatpush1.msra.mxu0 %v3269
        %3337 = vmatprep.subr.mxu0 %v3268
        %3338 = vmatpush1.msra.mxu0 %v3267
        %3339 = vmatprep.subr.mxu0 %v3266
        %3340 = vmatpush1.msra.mxu0 %v3265
        %3341 = vmatprep.subr.mxu0 %v3264
        %3342 = vmatpush1.msra.mxu0 %v3263
        %3343 = vmatprep.subr.mxu0 %v3262
        %3344 = vmatpush1.msra.mxu0 %v3261
        %3345 = vmatprep.subr.mxu0 %v3260
        %3346 = vmatpush1.msra.mxu0 %v3259
        %3347 = vmatprep.subr.mxu0 %v3258
        %3348 = vmatpush1.msra.mxu0 %v3257
        %3349 = vmatprep.subr.mxu0 %v3256
        %3350 = vmatpush1.msra.mxu0 %v3255
        %3351 = vmatprep.subr.mxu0 %v3254
        %3352 = vmatpush1.msra.mxu0 %v3253
        %3353 = vmatprep.subr.mxu0 %v3252
        %3354 = vmatpush1.msra.mxu0 %v3251
        %3355 = vmatprep.subr.mxu0 %v3250
        %3356 = vmatpush1.msra.mxu0 %v3249
        %3357 = vmatprep.subr.mxu0 %v3248
        %3358 = vmatpush1.msra.mxu0 %v3247
        %3359 = vmatprep.subr.mxu0 %v3246
        %3360 = vmatpush1.msra.mxu0 %v3245
        %3361 = vmatprep.subr.mxu0 %v3244
        %3362 = vmatpush1.msra.mxu0 %v3243
        %3363 = vmatprep.subr.mxu0 %v3242
        %3364 = vmatpush1.msra.mxu0 %v3241
        %3365 = vmatprep.subr.mxu0 %v3240
        %3366 = vmatpush1.msra.mxu0 %v3239
        %3367 = vmatprep.subr.mxu0 %v3302
        %3368 = vmatpush2.msra.mxu0 %v3301
        %3369 = vmatprep.subr.mxu0 %v3300
        %3370 = vmatpush2.msra.mxu0 %v3299
        %3371 = vmatprep.subr.mxu0 %v3298
        %3372 = vmatpush2.msra.mxu0 %v3297
        %3373 = vmatprep.subr.mxu0 %v3296
        %3374 = vmatpush2.msra.mxu0 %v3295
        %3375 = vmatprep.subr.mxu0 %v3294
        %3376 = vmatpush2.msra.mxu0 %v3293
        %3377 = vmatprep.subr.mxu0 %v3292
        %3378 = vmatpush2.msra.mxu0 %v3291
        %3379 = vmatprep.subr.mxu0 %v3290
        %3380 = vmatpush2.msra.mxu0 %v3289
        %3381 = vmatprep.subr.mxu0 %v3288
        %3382 = vmatpush2.msra.mxu0 %v3287
        %3383 = vmatprep.subr.mxu0 %v3286
        %3384 = vmatpush2.msra.mxu0 %v3285
        %3385 = vmatprep.subr.mxu0 %v3284
        %3386 = vmatpush2.msra.mxu0 %v3283
        %3387 = vmatprep.subr.mxu0 %v3282
        %3388 = vmatpush2.msra.mxu0 %v3281
        %3389 = vmatprep.subr.mxu0 %v3280
        %3390 = vmatpush2.msra.mxu0 %v3279
        %3391 = vmatprep.subr.mxu0 %v3278
        %3392 = vmatpush2.msra.mxu0 %v3277
        %3393 = vmatprep.subr.mxu0 %v3276
        %3394 = vmatpush2.msra.mxu0 %v3275
        %3395 = vmatprep.subr.mxu0 %v3274
        %3396 = vmatpush2.msra.mxu0 %v3273
        %3397 = vmatprep.subr.mxu0 %v3272
        %3398 = vmatpush2.msra.mxu0 %v3271
        %3399 = vmatprep.mubr.f32.mxu0 %v1071
        %3400 = vmatmul.mubr.f32.gmra.mxu0 %v1068
        %v3401 = vpop.f32.mrf.mxu0
        %v3402 = vadd.f32 0.0, %v3401
        %v3403 = vpop.f32.mrf.mxu0
        %v3404 = vadd.f32 0.0, %v3403
        %3405 = vmatprep.mubr.f32.mxu0 %v1080
        %3406 = vmatmul.mubr.f32.gmra.mxu0 %v1077
        %v3407 = vpop.f32.mrf.mxu0
        %v3408 = vadd.f32 0.0, %v3407
        %v3409 = vpop.f32.mrf.mxu0
        %v3410 = vadd.f32 0.0, %v3409
        %3411 = vmatprep.mubr.f32.mxu0 %v1089
        %3412 = vmatmul.mubr.f32.gmra.mxu0 %v1086
        %v3413 = vpop.f32.mrf.mxu0
        %v3414 = vadd.f32 0.0, %v3413
        %v3415 = vpop.f32.mrf.mxu0
        %v3416 = vadd.f32 0.0, %v3415
        %3417 = vmatprep.mubr.f32.mxu0 %v1098
        %3418 = vmatmul.mubr.f32.gmra.mxu0 %v1095
        %v3419 = vpop.f32.mrf.mxu0
        %v3420 = vadd.f32 0.0, %v3419
        %v3421 = vpop.f32.mrf.mxu0
        %v3422 = vadd.f32 0.0, %v3421
        %3423 = vmatprep.mubr.f32.mxu0 %v1107
        %3424 = vmatmul.mubr.f32.gmra.mxu0 %v1104
        %v3425 = vpop.f32.mrf.mxu0
        %v3426 = vadd.f32 0.0, %v3425
        %v3427 = vpop.f32.mrf.mxu0
        %v3428 = vadd.f32 0.0, %v3427
        %3429 = vmatprep.mubr.f32.mxu0 %v1116
        %3430 = vmatmul.mubr.f32.gmra.mxu0 %v1113
        %v3431 = vpop.f32.mrf.mxu0
        %v3432 = vadd.f32 0.0, %v3431
        %v3433 = vpop.f32.mrf.mxu0
        %v3434 = vadd.f32 0.0, %v3433
        %3435 = vmatprep.mubr.f32.mxu0 %v2184
        %3436 = vmatmul.mubr.f32.gmra.mxu0 %v2181
        %v3437 = vpop.f32.mrf.mxu0
        %v3438 = vadd.f32 0.0, %v3437
        %v3439 = vpop.f32.mrf.mxu0
        %v3440 = vadd.f32 0.0, %v3439
        %3441 = vmatprep.mubr.f32.mxu0 %v3231
        %3442 = vmatmul.mubr.f32.gmra.mxu0 %v3228
        %v3443 = vpop.f32.mrf.mxu0
        %v3444 = vadd.f32 0.0, %v3443
        %v3445 = vpop.f32.mrf.mxu0
        %v3446 = vadd.f32 0.0, %v3445
        %3447 = vdwg.mxu0
        %3448 = vmatprep.subr.mxu0 %v3334
        %3449 = vmatpush1.msra.mxu0 %v3333
        %3450 = vmatprep.subr.mxu0 %v3332
        %3451 = vmatpush1.msra.mxu0 %v3331
        %3452 = vmatprep.subr.mxu0 %v3330
        %3453 = vmatpush1.msra.mxu0 %v3329
        %3454 = vmatprep.subr.mxu0 %v3328
        %3455 = vmatpush1.msra.mxu0 %v3327
        %3456 = vmatprep.subr.mxu0 %v3326
        %3457 = vmatpush1.msra.mxu0 %v3325
        %3458 = vmatprep.subr.mxu0 %v3324
        %3459 = vmatpush1.msra.mxu0 %v3323
        %3460 = vmatprep.subr.mxu0 %v3322
        %3461 = vmatpush1.msra.mxu0 %v3321
        %3462 = vmatprep.subr.mxu0 %v3320
        %3463 = vmatpush1.msra.mxu0 %v3319
        %3464 = vmatprep.subr.mxu0 %v3318
        %3465 = vmatpush1.msra.mxu0 %v3317
        %3466 = vmatprep.subr.mxu0 %v3316
        %3467 = vmatpush1.msra.mxu0 %v3315
        %3468 = vmatprep.subr.mxu0 %v3314
        %3469 = vmatpush1.msra.mxu0 %v3313
        %3470 = vmatprep.subr.mxu0 %v3312
        %3471 = vmatpush1.msra.mxu0 %v3311
        %3472 = vmatprep.subr.mxu0 %v3310
        %3473 = vmatpush1.msra.mxu0 %v3309
        %3474 = vmatprep.subr.mxu0 %v3308
        %3475 = vmatpush1.msra.mxu0 %v3307
        %3476 = vmatprep.subr.mxu0 %v3306
        %3477 = vmatpush1.msra.mxu0 %v3305
        %3478 = vmatprep.subr.mxu0 %v3304
        %3479 = vmatpush1.msra.mxu0 %v3303
        %3480 = vmatprep.subr.mxu0 0.0
        %3481 = vmatpush2.msra.mxu0 0.0
        %3482 = vmatprep.subr.mxu0 0.0
        %3483 = vmatpush2.msra.mxu0 0.0
        %3484 = vmatprep.subr.mxu0 0.0
        %3485 = vmatpush2.msra.mxu0 0.0
        %3486 = vmatprep.subr.mxu0 0.0
        %3487 = vmatpush2.msra.mxu0 0.0
        %3488 = vmatprep.subr.mxu0 0.0
        %3489 = vmatpush2.msra.mxu0 0.0
        %3490 = vmatprep.subr.mxu0 0.0
        %3491 = vmatpush2.msra.mxu0 0.0
        %3492 = vmatprep.subr.mxu0 0.0
        %3493 = vmatpush2.msra.mxu0 0.0
        %3494 = vmatprep.subr.mxu0 0.0
        %3495 = vmatpush2.msra.mxu0 0.0
        %3496 = vmatprep.subr.mxu0 0.0
        %3497 = vmatpush2.msra.mxu0 0.0
        %3498 = vmatprep.subr.mxu0 0.0
        %3499 = vmatpush2.msra.mxu0 0.0
        %3500 = vmatprep.subr.mxu0 0.0
        %3501 = vmatpush2.msra.mxu0 0.0
        %3502 = vmatprep.subr.mxu0 0.0
        %3503 = vmatpush2.msra.mxu0 0.0
        %3504 = vmatprep.subr.mxu0 0.0
        %3505 = vmatpush2.msra.mxu0 0.0
        %3506 = vmatprep.subr.mxu0 0.0
        %3507 = vmatpush2.msra.mxu0 0.0
        %3508 = vmatprep.subr.mxu0 0.0
        %3509 = vmatpush2.msra.mxu0 0.0
        %3510 = vmatprep.subr.mxu0 0.0
        %3511 = vmatpush2.msra.mxu0 0.0
        %3512 = vmatprep.mubr.f32.mxu0 0.0
        %3513 = vmatmul.mubr.f32.gmra.mxu0 %v1074
        %v3514 = vpop.f32.mrf.mxu0
        %v3515 = vadd.f32 %v3402, %v3514
        %v3516 = vpop.f32.mrf.mxu0
        %v3517 = vadd.f32 %v3404, %v3516
        %3518 = vmatprep.mubr.f32.mxu0 0.0
        %3519 = vmatmul.mubr.f32.gmra.mxu0 %v1083
        %v3520 = vpop.f32.mrf.mxu0
        %v3521 = vadd.f32 %v3408, %v3520
        %v3522 = vpop.f32.mrf.mxu0
        %v3523 = vadd.f32 %v3410, %v3522
        %3524 = vmatprep.mubr.f32.mxu0 0.0
        %3525 = vmatmul.mubr.f32.gmra.mxu0 %v1092
        %v3526 = vpop.f32.mrf.mxu0
        %v3527 = vadd.f32 %v3414, %v3526
        %v3528 = vpop.f32.mrf.mxu0
        %v3529 = vadd.f32 %v3416, %v3528
        %3530 = vmatprep.mubr.f32.mxu0 0.0
        %3531 = vmatmul.mubr.f32.gmra.mxu0 %v1101
        %v3532 = vpop.f32.mrf.mxu0
        %v3533 = vadd.f32 %v3420, %v3532
        %v3534 = vpop.f32.mrf.mxu0
        %v3535 = vadd.f32 %v3422, %v3534
        %3536 = vmatprep.mubr.f32.mxu0 0.0
        %3537 = vmatmul.mubr.f32.gmra.mxu0 %v1110
        %v3538 = vpop.f32.mrf.mxu0
        %v3539 = vadd.f32 %v3426, %v3538
        %v3540 = vpop.f32.mrf.mxu0
        %v3541 = vadd.f32 %v3428, %v3540
        %3542 = vmatprep.mubr.f32.mxu0 0.0
        %3543 = vmatmul.mubr.f32.gmra.mxu0 %v1119
        %v3544 = vpop.f32.mrf.mxu0
        %v3545 = vadd.f32 %v3432, %v3544
        %v3546 = vpop.f32.mrf.mxu0
        %v3547 = vadd.f32 %v3434, %v3546
        %3548 = vmatprep.mubr.f32.mxu0 0.0
        %3549 = vmatmul.mubr.f32.gmra.mxu0 %v2187
        %v3550 = vpop.f32.mrf.mxu0
        %v3551 = vadd.f32 %v3438, %v3550
        %v3552 = vpop.f32.mrf.mxu0
        %v3553 = vadd.f32 %v3440, %v3552
        %3554 = vmatprep.mubr.f32.mxu0 0.0
        %3555 = vmatmul.mubr.f32.gmra.mxu0 %v3234
        %v3556 = vpop.f32.mrf.mxu0
        %v3557 = vadd.f32 %v3444, %v3556
        %v3558 = vpop.f32.mrf.mxu0
        %v3559 = vadd.f32 %v3446, %v3558
        %3560 = vdwg.mxu0
        %v3561 = vadd.f32 %v3210, %v3515
        %v3562 = vadd.f32 %v3211, %v3517
        %v3563 = vadd.f32 %v3212, %v3521
        %v3564 = vadd.f32 %v3213, %v3523
        %v3565 = vadd.f32 %v3214, %v3527
        %v3566 = vadd.f32 %v3215, %v3529
        %v3567 = vadd.f32 %v3216, %v3533
        %v3568 = vadd.f32 %v3217, %v3535
        %v3569 = vadd.f32 %v3218, %v3539
        %v3570 = vadd.f32 %v3219, %v3541
        %v3571 = vadd.f32 %v3220, %v3545
        %v3572 = vadd.f32 %v3221, %v3547
        %v3573 = vadd.f32 %v3222, %v3551
        %v3574 = vadd.f32 %v3223, %v3553
        %v3575 = vadd.f32 %v3224, %v3557
        %v3576 = vadd.f32 %v3225, %v3559
        %v3577 = vld [vmem:[#allocation5] sm:$0x3]
        %v3579 = vlaneseq
        %v3580 = vshrl.u32 %v3579, 7
        %v3581 = vsub.s32 0, %v3580
        %v3582 = vrot.slane %v3577, %v3581
        %v3583 = vlaneseq
        %v3584 = vshrl.u32 %v3583, 7
        %v3585 = vsub.s32 1, %v3584
        %v3586 = vrot.slane %v3577, %v3585
        %v3589 = vadd.f32 %v3561, %v3582
        %v3590 = vadd.f32 %v3562, %v3586
        %v3591 = vadd.f32 %v3563, %v3582
        %v3592 = vadd.f32 %v3564, %v3586
        %v3593 = vadd.f32 %v3565, %v3582
        %v3594 = vadd.f32 %v3566, %v3586
        %v3595 = vadd.f32 %v3567, %v3582
        %v3596 = vadd.f32 %v3568, %v3586
        %v3597 = vadd.f32 %v3569, %v3582
        %v3598 = vadd.f32 %v3570, %v3586
        %v3599 = vadd.f32 %v3571, %v3582
        %v3600 = vadd.f32 %v3572, %v3586
        %v3601 = vadd.f32 %v3573, %v3582
        %v3602 = vadd.f32 %v3574, %v3586
        %v3603 = vadd.f32 %v3575, %v3582
        %v3604 = vadd.f32 %v3576, %v3586
        %v3605 = vmax.f32 %v3589, 0.0
        %v3606 = vmax.f32 %v3590, 0.0
        %v3607 = vmax.f32 %v3591, 0.0
        %v3608 = vmax.f32 %v3592, 0.0
        %v3609 = vmax.f32 %v3593, 0.0
        %v3610 = vmax.f32 %v3594, 0.0
        %v3611 = vmax.f32 %v3595, 0.0
        %v3612 = vmax.f32 %v3596, 0.0
        %v3613 = vmax.f32 %v3597, 0.0
        %v3614 = vmax.f32 %v3598, 0.0
        %v3615 = vmax.f32 %v3599, 0.0
        %v3616 = vmax.f32 %v3600, 0.0
        %v3617 = vmax.f32 %v3601, 0.0
        %v3618 = vmax.f32 %v3602, 0.0
        %v3619 = vmax.f32 %v3603, 0.0
        %v3620 = vmax.f32 %v3604, 0.0
        %3621 = vst [vmem:[%s191] sm:$0xff] %v3605
        %3622 = vst [vmem:[%s191 + $0x8] sm:$0xff] %v3606
        %3623 = vst [vmem:[%s191 + $0x10] sm:$0xff] %v3607
        %3624 = vst [vmem:[%s191 + $0x18] sm:$0xff] %v3608
        %3625 = vst [vmem:[%s191 + $0x20] sm:$0xff] %v3609
        %3626 = vst [vmem:[%s191 + $0x28] sm:$0xff] %v3610
        %3627 = vst [vmem:[%s191 + $0x30] sm:$0xff] %v3611
        %3628 = vst [vmem:[%s191 + $0x38] sm:$0xff] %v3612
        %3629 = vst [vmem:[%s191 + $0x40] sm:$0xff] %v3613
        %3630 = vst [vmem:[%s191 + $0x48] sm:$0xff] %v3614
        %3631 = vst [vmem:[%s191 + $0x50] sm:$0xff] %v3615
        %3632 = vst [vmem:[%s191 + $0x58] sm:$0xff] %v3616
        %3633 = vst [vmem:[%s191 + $0x60] sm:$0xff] %v3617
        %3634 = vst [vmem:[%s191 + $0x68] sm:$0xff] %v3618
        %3635 = vst [vmem:[%s191 + $0x70] sm:$0xff] %v3619
        %3636 = vst [vmem:[%s191 + $0x78] sm:$0xff] %v3620
        %s3637 = sand.u32 %s95, 1
        %s3638 = scalar_lea.sflag [#allocation4], %s3637
        %s3639 = sand.u32 %s95, 1
        %s3640 = smul.addr %s3639, 128
        %s3641 = scalar_lea.vmem [#allocation7], %s3640
        // Predicated region
        $region41: #{tpu_custom_call.1} parent=31 // pred_check
          %p3642 = pneg %p105
        $region42: #{tpu_custom_call.1} parent=31 // pred_check_branch
          %3644 = sbr.rel (%p3642) target = $region44
        $region43: #{tpu_custom_call.1} parent=31 // pred_region
          %s3646 = ssub.s32 2048, 2048
          %3647 = vsyncadd %s3638, %s3646
          %s3648 = smul.addr %s19, 16
          %s3649 = smul.addr %s3648, 128
          %s3650 = scalar_lea.hbm %s3, %s3649
          %s3651 = sshll.u32 %s3641, 4
          %s3652 = int_to_ptr.vmem [resolvable:$true] %s3651
          %3657 = dma.vmem_to_hbm [thread:$0]  %s3652, 2048, %s3650, %s3638, 256, 256, 16
        $region44: #{tpu_custom_call.1} parent=31 // pred_fallthru
          _
      $region32: #{tpu_custom_call.1} parent=5 // pred_fallthru
        _
      %p3658 = scmp.le.s32.totalorder 2, %s14
      // Predicated region
      $region45: #{tpu_custom_call.1} parent=5 // pred_check
        %p3659 = pneg %p3658
      $region46: #{tpu_custom_call.1} parent=5 // pred_check_branch
        %3661 = sbr.rel (%p3659) target = $region48
      $region47: #{tpu_custom_call.1} parent=5 // pred_region
        %s3662 = ssub.s32 %s14, 2
        // Predicated region
        $region49: #{tpu_custom_call.1} parent=47 // pred_check
          %p3663 = pneg %p111
        $region50: #{tpu_custom_call.1} parent=47 // pred_check_branch
          %3665 = sbr.rel (%p3663) target = $region52
        $region51: #{tpu_custom_call.1} parent=47 // pred_region
          %s3666 = sand.u32 %s96, 1
          %s3667 = scalar_lea.sflag [#allocation4], %s3666
          %s3668 = sand.u32 %s96, 1
          %s3669 = smul.addr %s3668, 128
          %s3670 = scalar_lea.vmem [#allocation7], %s3669
          %3671 = dma.done %s3667, 2048
        $region52: #{tpu_custom_call.1} parent=47 // pred_fallthru
          _
      $region48: #{tpu_custom_call.1} parent=5 // pred_fallthru
        _
    $region6: #{tpu_custom_call.1} parent=1 // loop_footer
      %s18 = sadd.s32 1, %s14
    $region7: #{tpu_custom_call.1} parent=1 // loop_footer_branch
      %13 = sbr.rel target = $region3
    $region8: #{tpu_custom_call.1} parent=1 // loop_exit
      _
    %3672 = vsyncpa [#allocation3], 1
    %s3673 = scalar_lea.sflag [#allocation3], 1
    %3674 = vsyncpa %s3673, 1
    %3675 = vsyncpa [#allocation6], 1
    %3676 = vsyncpa [#allocation4], 1
    %s3677 = scalar_lea.sflag [#allocation4], 1
    %3678 = vsyncpa %s3677, 1

</llo_original>
